<compile_context>
chip_gen: v6e
topology: v6e:2x2x1
jax: 0.10.0
libtpu: 0.0.40
codegen_flags: <defaults>
</compile_context>

<pallas_src>
import functools

import jax
import jax.numpy as jnp
from jax import lax
from jax.experimental import pallas as pl
from jax.experimental.pallas import tpu as pltpu

LANE = 128


def _round_up(x, m):
    return (x + m - 1) // m * m


# ----------------------------------------------------------------------------
# Fused student forward kernel (one grid step == one batch element):
#   conv3x3(pad=1) + bias + ReLU  ->  GAP  ->  FC + bias  ->  per-example CE
# ----------------------------------------------------------------------------
def _student_fused_kernel(tgt_ref,        # SMEM (B,) int32   (scalar prefetch)
                          xpad_ref,       # (1, H+2, W+2, Cp) bf16
                          cw_ref,         # (9, Cp, Mp)       bf16
                          cb_ref,         # (1, Mp)           f32
                          fw_ref,         # (Mp, Np)          bf16
                          fb_ref,         # (1, Np)           f32
                          feat_ref,       # out (1, H, W, Mp) f32
                          logits_ref,     # out (1, 1, Np)    f32
                          nll_ref,        # out (1, 1, 1)     f32
                          *, H, W, n_classes):
    b = pl.program_id(0)
    cp = cw_ref.shape[1]
    mp = cw_ref.shape[2]
    npad = fw_ref.shape[1]

    # --- conv as 9 shifted MXU dots, f32 accumulation ------------------------
    acc = jnp.zeros((H * W, mp), jnp.float32)
    for dy in range(3):
        for dx in range(3):
            patch = xpad_ref[0, dy:dy + H, dx:dx + W, :].reshape(H * W, cp)
            acc = acc + jnp.dot(patch, cw_ref[dy * 3 + dx],
                                preferred_element_type=jnp.float32)

    feat = jnp.maximum(acc + cb_ref[...], 0.0)                 # f32 epilogue
    feat_ref[0] = feat.reshape(H, W, mp).astype(feat_ref.dtype)

    # --- global average pool via MXU: (1, H*W) @ (H*W, Mp) -------------------
    avg_vec = jnp.full((1, H * W), 1.0 / (H * W), dtype=jnp.float32)
    pooled = jnp.dot(avg_vec, feat, preferred_element_type=jnp.float32)  # (1, Mp)

    # --- linear classifier ----------------------------------------------------
    logits = jnp.dot(pooled.astype(jnp.bfloat16), fw_ref[...],
                     preferred_element_type=jnp.float32) + fb_ref[...]   # (1, Np)
    logits_ref[...] = logits.reshape(1, 1, npad)

    # --- per-example cross-entropy (padded class lanes masked out) ------------
    cls = lax.broadcasted_iota(jnp.int32, (1, npad), 1)
    valid = cls < n_classes
    lg = jnp.where(valid, logits, jnp.full_like(logits, -1e30))
    m = jnp.max(lg, axis=-1, keepdims=True)
    z = lg - m
    e = jnp.where(valid, jnp.exp(z), jnp.zeros_like(z))
    lse = jnp.log(jnp.sum(e, axis=-1, keepdims=True))
    logp = z - lse
    t = tgt_ref[b]
    onehot = (cls == t).astype(jnp.float32)
    nll = -jnp.sum(onehot * logp, axis=-1, keepdims=True)      # (1, 1)
    nll_ref[...] = nll.reshape(1, 1, 1)


# ----------------------------------------------------------------------------
# Parameter construction (deterministic) + packing to the kernel layout.
# ----------------------------------------------------------------------------
def init_student_params(key, c_in, c_mid, num_classes):
    k1, k2, k3, k4 = jax.random.split(key, 4)
    cp = _round_up(c_in, LANE)
    mp = _round_up(c_mid, LANE)
    npad = _round_up(num_classes, LANE)

    conv_w = jax.random.normal(k1, (3 * 3 * c_in, c_mid), jnp.float32) * 0.1
    conv_b = jax.random.normal(k2, (c_mid,), jnp.float32) * 0.1
    fc_w = jax.random.normal(k3, (c_mid, num_classes), jnp.float32) * 0.1
    fc_b = jax.random.normal(k4, (num_classes,), jnp.float32) * 0.1

    # Pack to lane-dense kernel layout; matmul operands in bf16, biases in f32.
    cw = conv_w.reshape(9, c_in, c_mid)
    cw_p = jnp.zeros((9, cp, mp), jnp.float32).at[:, :c_in, :c_mid].set(cw)
    cb_p = jnp.zeros((1, mp), jnp.float32).at[0, :c_mid].set(conv_b)
    fw_p = jnp.zeros((mp, npad), jnp.float32).at[:c_mid, :num_classes].set(fc_w)
    fb_p = jnp.zeros((1, npad), jnp.float32).at[0, :num_classes].set(fc_b)

    return dict(
        conv_w=cw_p.astype(jnp.bfloat16),
        conv_b=cb_p,
        fc_w=fw_p.astype(jnp.bfloat16),
        fc_b=fb_p,
        dims=dict(c_in=c_in, c_mid=c_mid, n_classes=num_classes,
                  c_in_pad=cp, c_mid_pad=mp, n_cls_pad=npad),
    )


# ----------------------------------------------------------------------------
# Single fused pallas_call for the whole student forward (+ per-example CE).
# ----------------------------------------------------------------------------
def _run_student(params, image_nchw, target_i32):
    d = params["dims"]
    B, C, H, W = image_nchw.shape
    assert C == d["c_in"]
    cp, mp, npad = d["c_in_pad"], d["c_mid_pad"], d["n_cls_pad"]

    # NCHW -> NHWC, pad channels to lane width, pad spatially by 1 (conv pad=1),
    # cast to bf16.  One cheap pass over the input — no im2col materialization.
    x = jnp.transpose(image_nchw, (0, 2, 3, 1)).astype(jnp.bfloat16)
    x_pad = jnp.pad(x, ((0, 0), (1, 1), (1, 1), (0, cp - C)))

    kernel = functools.partial(_student_fused_kernel, H=H, W=W,
                               n_classes=d["n_classes"])

    flops = (2 * B * H * W * 9 * cp * mp      # conv
             + 2 * B * H * W * mp             # GAP dot
             + 2 * B * mp * npad)             # FC
    bytes_accessed = (x_pad.size * 2
                      + params["conv_w"].size * 2 + params["fc_w"].size * 2
                      + params["conv_b"].size * 4 + params["fc_b"].size * 4
                      + B * H * W * mp * 4 + B * npad * 4 + B * 4)

    grid_spec = pltpu.PrefetchScalarGridSpec(
        num_scalar_prefetch=1,                # targets -> SMEM
        grid=(B,),
        in_specs=[
            pl.BlockSpec((1, H + 2, W + 2, cp), lambda b, tgt: (b, 0, 0, 0)),
            pl.BlockSpec((9, cp, mp), lambda b, tgt: (0, 0, 0)),
            pl.BlockSpec((1, mp), lambda b, tgt: (0, 0)),
            pl.BlockSpec((mp, npad), lambda b, tgt: (0, 0)),
            pl.BlockSpec((1, npad), lambda b, tgt: (0, 0)),
        ],
        out_specs=[
            pl.BlockSpec((1, H, W, mp), lambda b, tgt: (b, 0, 0, 0)),
            pl.BlockSpec((1, 1, npad), lambda b, tgt: (b, 0, 0)),
            pl.BlockSpec((1, 1, 1), lambda b, tgt: (b, 0, 0)),
        ],
    )

    feat_pad, logits_pad, nll = pl.pallas_call(
        kernel,
        out_shape=(
            jax.ShapeDtypeStruct((B, H, W, mp), jnp.float32),
            jax.ShapeDtypeStruct((B, 1, npad), jnp.float32),
            jax.ShapeDtypeStruct((B, 1, 1), jnp.float32),
        ),
        grid_spec=grid_spec,
        compiler_params=pltpu.CompilerParams(
            dimension_semantics=("parallel",),        # megacore on v7x
            vmem_limit_bytes=32 * 1024 * 1024),
        cost_estimate=pl.CostEstimate(
            flops=int(flops),
            transcendentals=int(B * npad),
            bytes_accessed=int(bytes_accessed)),
    )(target_i32, x_pad, params["conv_w"], params["conv_b"],
      params["fc_w"], params["fc_b"])

    logits = logits_pad[:, 0, :d["n_classes"]]       # strip class padding
    feat = feat_pad[..., :d["c_mid"]]                # NHWC feature map, real channels
    nll = nll[:, 0, 0]                               # (B,) per-example CE
    return logits, feat, nll


def student_forward(params, image_nchw):
    dummy_tgt = jnp.zeros((image_nchw.shape[0],), jnp.int32)
    logits, feat, _ = _run_student(params, image_nchw, dummy_tgt)
    return logits, feat


# ----------------------------------------------------------------------------
# transfer wrapper (forward_train / forward_test semantics)
# ----------------------------------------------------------------------------
# TODO(synk): the parameter-freezing logic (requires_grad on all but the last two
# student params) is an optimizer/setup concern with no forward-pass equivalent.
def transfer_forward_train(params, image, target):
    tgt = target.astype(jnp.int32)
    logits_student, _feature_student, nll = _run_student(params, image, tgt)
    loss_ce = jnp.mean(nll)    # mean over B per-example CE scalars (B tiny values)
    losses_dict = {"loss_ce": loss_ce}
    return logits_student, losses_dict


def transfer_forward_test(params, image):
    return student_forward(params, image)[0]


if __name__ == "__main__":
    key = jax.random.PRNGKey(0)
    k_img, k_tgt, k_param = jax.random.split(key, 3)

    B, C, H, W = 2, 4, 16, 16
    C_MID, NUM_CLASSES = 8, 10

    image = jax.random.normal(k_img, (B, C, H, W), jnp.float32)
    target = jax.random.randint(k_tgt, (B,), 0, NUM_CLASSES, jnp.int32)
    params = init_student_params(k_param, C, C_MID, NUM_CLASSES)

    # training-mode forward
    logits, losses = transfer_forward_train(params, image, target)
    jax.block_until_ready(logits)
    jax.block_until_ready(losses["loss_ce"])

    # eval-mode forward
    logits_eval = transfer_forward_test(params, image)
    jax.block_until_ready(logits_eval)

    assert logits.shape == (B, NUM_CLASSES)
    assert logits_eval.shape == (B, NUM_CLASSES)
    assert losses["loss_ce"].shape == ()
    assert bool(jnp.isfinite(losses["loss_ce"]))
    print("KERNEL_OK")
</pallas_src>

<mosaic_0001>
module attributes {stable_mosaic.version = 11 : i64} {
  func.func @_student_fused_kernel(%arg0: i32, %arg1: memref<2xi32, #tpu.memory_space<smem>>, %arg2: memref<1x18x18x128xbf16, #tpu.memory_space<vmem>>, %arg3: memref<9x128x128xbf16, #tpu.memory_space<vmem>>, %arg4: memref<1x128xf32, #tpu.memory_space<vmem>>, %arg5: memref<128x128xbf16, #tpu.memory_space<vmem>>, %arg6: memref<1x128xf32, #tpu.memory_space<vmem>>, %arg7: memref<1x16x16x128xf32, #tpu.memory_space<vmem>>, %arg8: memref<1x1x128xf32, #tpu.memory_space<vmem>>, %arg9: memref<1x1x1xf32, #tpu.memory_space<vmem>>) attributes {dimension_semantics = [#tpu.dimension_semantics<parallel>], iteration_bounds = array<i64: 2>, scalar_prefetch = 1 : i64, scratch_operands = 0 : i64, tpu.core_type = #tpu.core_type<tc>, window_params = [{transform_indices = @transform_0, window_bounds = array<i64: 1, 18, 18, 128>}, {pipeline_mode = #tpu.pipeline_mode<synchronous>, transform_indices = @transform_1, window_bounds = array<i64: 9, 128, 128>}, {pipeline_mode = #tpu.pipeline_mode<synchronous>, transform_indices = @transform_2, window_bounds = array<i64: 1, 128>}, {pipeline_mode = #tpu.pipeline_mode<synchronous>, transform_indices = @transform_3, window_bounds = array<i64: 128, 128>}, {pipeline_mode = #tpu.pipeline_mode<synchronous>, transform_indices = @transform_4, window_bounds = array<i64: 1, 128>}, {transform_indices = @transform_5, window_bounds = array<i64: 1, 16, 16, 128>}, {transform_indices = @transform_6, window_bounds = array<i64: 1, 1, 128>}, {transform_indices = @transform_7, window_bounds = array<i64: 1, 1, 1>}]} {
    %cst = arith.constant 0.000000e+00 : f32
    %0 = vector.broadcast %cst : f32 to vector<256x128xf32>
    %c0 = arith.constant 0 : index
    %c0_0 = arith.constant 0 : index
    %c0_1 = arith.constant 0 : index
    %c0_2 = arith.constant 0 : index
    %1 = vector.load %arg2[%c0, %c0_0, %c0_1, %c0_2] : memref<1x18x18x128xbf16, #tpu.memory_space<vmem>>, vector<1x16x16x128xbf16>
    %2 = vector.shape_cast %1 : vector<1x16x16x128xbf16> to vector<16x16x128xbf16>
    %3 = vector.shape_cast %2 : vector<16x16x128xbf16> to vector<256x128xbf16>
    %c0_3 = arith.constant 0 : index
    %c0_4 = arith.constant 0 : index
    %c0_5 = arith.constant 0 : index
    %4 = vector.load %arg3[%c0_3, %c0_4, %c0_5] : memref<9x128x128xbf16, #tpu.memory_space<vmem>>, vector<1x128x128xbf16>
    %5 = vector.shape_cast %4 : vector<1x128x128xbf16> to vector<128x128xbf16>
    %cst_6 = arith.constant dense<0.000000e+00> : vector<256x128xf32>
    %6 = tpu.matmul %3, %5, %cst_6 {dimension_numbers = #tpu.dot_dimension_numbers<[1], [0], [0], [1], [0, 0, 1, 1], [], []>} : vector<256x128xbf16>, vector<128x128xbf16>, vector<256x128xf32> -> vector<256x128xf32>
    %7 = arith.addf %0, %6 : vector<256x128xf32>
    %c0_7 = arith.constant 0 : index
    %c0_8 = arith.constant 0 : index
    %c1 = arith.constant 1 : index
    %c0_9 = arith.constant 0 : index
    %8 = vector.load %arg2[%c0_7, %c0_8, %c1, %c0_9] : memref<1x18x18x128xbf16, #tpu.memory_space<vmem>>, vector<1x16x16x128xbf16>
    %9 = vector.shape_cast %8 : vector<1x16x16x128xbf16> to vector<16x16x128xbf16>
    %10 = vector.shape_cast %9 : vector<16x16x128xbf16> to vector<256x128xbf16>
    %c1_10 = arith.constant 1 : index
    %c0_11 = arith.constant 0 : index
    %c0_12 = arith.constant 0 : index
    %11 = vector.load %arg3[%c1_10, %c0_11, %c0_12] : memref<9x128x128xbf16, #tpu.memory_space<vmem>>, vector<1x128x128xbf16>
    %12 = vector.shape_cast %11 : vector<1x128x128xbf16> to vector<128x128xbf16>
    %cst_13 = arith.constant dense<0.000000e+00> : vector<256x128xf32>
    %13 = tpu.matmul %10, %12, %cst_13 {dimension_numbers = #tpu.dot_dimension_numbers<[1], [0], [0], [1], [0, 0, 1, 1], [], []>} : vector<256x128xbf16>, vector<128x128xbf16>, vector<256x128xf32> -> vector<256x128xf32>
    %14 = arith.addf %7, %13 : vector<256x128xf32>
    %c0_14 = arith.constant 0 : index
    %c0_15 = arith.constant 0 : index
    %c2 = arith.constant 2 : index
    %c0_16 = arith.constant 0 : index
    %15 = vector.load %arg2[%c0_14, %c0_15, %c2, %c0_16] : memref<1x18x18x128xbf16, #tpu.memory_space<vmem>>, vector<1x16x16x128xbf16>
    %16 = vector.shape_cast %15 : vector<1x16x16x128xbf16> to vector<16x16x128xbf16>
    %17 = vector.shape_cast %16 : vector<16x16x128xbf16> to vector<256x128xbf16>
    %c2_17 = arith.constant 2 : index
    %c0_18 = arith.constant 0 : index
    %c0_19 = arith.constant 0 : index
    %18 = vector.load %arg3[%c2_17, %c0_18, %c0_19] : memref<9x128x128xbf16, #tpu.memory_space<vmem>>, vector<1x128x128xbf16>
    %19 = vector.shape_cast %18 : vector<1x128x128xbf16> to vector<128x128xbf16>
    %cst_20 = arith.constant dense<0.000000e+00> : vector<256x128xf32>
    %20 = tpu.matmul %17, %19, %cst_20 {dimension_numbers = #tpu.dot_dimension_numbers<[1], [0], [0], [1], [0, 0, 1, 1], [], []>} : vector<256x128xbf16>, vector<128x128xbf16>, vector<256x128xf32> -> vector<256x128xf32>
    %21 = arith.addf %14, %20 : vector<256x128xf32>
    %c0_21 = arith.constant 0 : index
    %c1_22 = arith.constant 1 : index
    %c0_23 = arith.constant 0 : index
    %c0_24 = arith.constant 0 : index
    %22 = vector.load %arg2[%c0_21, %c1_22, %c0_23, %c0_24] : memref<1x18x18x128xbf16, #tpu.memory_space<vmem>>, vector<1x16x16x128xbf16>
    %23 = vector.shape_cast %22 : vector<1x16x16x128xbf16> to vector<16x16x128xbf16>
    %24 = vector.shape_cast %23 : vector<16x16x128xbf16> to vector<256x128xbf16>
    %c3 = arith.constant 3 : index
    %c0_25 = arith.constant 0 : index
    %c0_26 = arith.constant 0 : index
    %25 = vector.load %arg3[%c3, %c0_25, %c0_26] : memref<9x128x128xbf16, #tpu.memory_space<vmem>>, vector<1x128x128xbf16>
    %26 = vector.shape_cast %25 : vector<1x128x128xbf16> to vector<128x128xbf16>
    %cst_27 = arith.constant dense<0.000000e+00> : vector<256x128xf32>
    %27 = tpu.matmul %24, %26, %cst_27 {dimension_numbers = #tpu.dot_dimension_numbers<[1], [0], [0], [1], [0, 0, 1, 1], [], []>} : vector<256x128xbf16>, vector<128x128xbf16>, vector<256x128xf32> -> vector<256x128xf32>
    %28 = arith.addf %21, %27 : vector<256x128xf32>
    %c0_28 = arith.constant 0 : index
    %c1_29 = arith.constant 1 : index
    %c1_30 = arith.constant 1 : index
    %c0_31 = arith.constant 0 : index
    %29 = vector.load %arg2[%c0_28, %c1_29, %c1_30, %c0_31] : memref<1x18x18x128xbf16, #tpu.memory_space<vmem>>, vector<1x16x16x128xbf16>
    %30 = vector.shape_cast %29 : vector<1x16x16x128xbf16> to vector<16x16x128xbf16>
    %31 = vector.shape_cast %30 : vector<16x16x128xbf16> to vector<256x128xbf16>
    %c4 = arith.constant 4 : index
    %c0_32 = arith.constant 0 : index
    %c0_33 = arith.constant 0 : index
    %32 = vector.load %arg3[%c4, %c0_32, %c0_33] : memref<9x128x128xbf16, #tpu.memory_space<vmem>>, vector<1x128x128xbf16>
    %33 = vector.shape_cast %32 : vector<1x128x128xbf16> to vector<128x128xbf16>
    %cst_34 = arith.constant dense<0.000000e+00> : vector<256x128xf32>
    %34 = tpu.matmul %31, %33, %cst_34 {dimension_numbers = #tpu.dot_dimension_numbers<[1], [0], [0], [1], [0, 0, 1, 1], [], []>} : vector<256x128xbf16>, vector<128x128xbf16>, vector<256x128xf32> -> vector<256x128xf32>
    %35 = arith.addf %28, %34 : vector<256x128xf32>
    %c0_35 = arith.constant 0 : index
    %c1_36 = arith.constant 1 : index
    %c2_37 = arith.constant 2 : index
    %c0_38 = arith.constant 0 : index
    %36 = vector.load %arg2[%c0_35, %c1_36, %c2_37, %c0_38] : memref<1x18x18x128xbf16, #tpu.memory_space<vmem>>, vector<1x16x16x128xbf16>
    %37 = vector.shape_cast %36 : vector<1x16x16x128xbf16> to vector<16x16x128xbf16>
    %38 = vector.shape_cast %37 : vector<16x16x128xbf16> to vector<256x128xbf16>
    %c5 = arith.constant 5 : index
    %c0_39 = arith.constant 0 : index
    %c0_40 = arith.constant 0 : index
    %39 = vector.load %arg3[%c5, %c0_39, %c0_40] : memref<9x128x128xbf16, #tpu.memory_space<vmem>>, vector<1x128x128xbf16>
    %40 = vector.shape_cast %39 : vector<1x128x128xbf16> to vector<128x128xbf16>
    %cst_41 = arith.constant dense<0.000000e+00> : vector<256x128xf32>
    %41 = tpu.matmul %38, %40, %cst_41 {dimension_numbers = #tpu.dot_dimension_numbers<[1], [0], [0], [1], [0, 0, 1, 1], [], []>} : vector<256x128xbf16>, vector<128x128xbf16>, vector<256x128xf32> -> vector<256x128xf32>
    %42 = arith.addf %35, %41 : vector<256x128xf32>
    %c0_42 = arith.constant 0 : index
    %c2_43 = arith.constant 2 : index
    %c0_44 = arith.constant 0 : index
    %c0_45 = arith.constant 0 : index
    %43 = vector.load %arg2[%c0_42, %c2_43, %c0_44, %c0_45] : memref<1x18x18x128xbf16, #tpu.memory_space<vmem>>, vector<1x16x16x128xbf16>
    %44 = vector.shape_cast %43 : vector<1x16x16x128xbf16> to vector<16x16x128xbf16>
    %45 = vector.shape_cast %44 : vector<16x16x128xbf16> to vector<256x128xbf16>
    %c6 = arith.constant 6 : index
    %c0_46 = arith.constant 0 : index
    %c0_47 = arith.constant 0 : index
    %46 = vector.load %arg3[%c6, %c0_46, %c0_47] : memref<9x128x128xbf16, #tpu.memory_space<vmem>>, vector<1x128x128xbf16>
    %47 = vector.shape_cast %46 : vector<1x128x128xbf16> to vector<128x128xbf16>
    %cst_48 = arith.constant dense<0.000000e+00> : vector<256x128xf32>
    %48 = tpu.matmul %45, %47, %cst_48 {dimension_numbers = #tpu.dot_dimension_numbers<[1], [0], [0], [1], [0, 0, 1, 1], [], []>} : vector<256x128xbf16>, vector<128x128xbf16>, vector<256x128xf32> -> vector<256x128xf32>
    %49 = arith.addf %42, %48 : vector<256x128xf32>
    %c0_49 = arith.constant 0 : index
    %c2_50 = arith.constant 2 : index
    %c1_51 = arith.constant 1 : index
    %c0_52 = arith.constant 0 : index
    %50 = vector.load %arg2[%c0_49, %c2_50, %c1_51, %c0_52] : memref<1x18x18x128xbf16, #tpu.memory_space<vmem>>, vector<1x16x16x128xbf16>
    %51 = vector.shape_cast %50 : vector<1x16x16x128xbf16> to vector<16x16x128xbf16>
    %52 = vector.shape_cast %51 : vector<16x16x128xbf16> to vector<256x128xbf16>
    %c7 = arith.constant 7 : index
    %c0_53 = arith.constant 0 : index
    %c0_54 = arith.constant 0 : index
    %53 = vector.load %arg3[%c7, %c0_53, %c0_54] : memref<9x128x128xbf16, #tpu.memory_space<vmem>>, vector<1x128x128xbf16>
    %54 = vector.shape_cast %53 : vector<1x128x128xbf16> to vector<128x128xbf16>
    %cst_55 = arith.constant dense<0.000000e+00> : vector<256x128xf32>
    %55 = tpu.matmul %52, %54, %cst_55 {dimension_numbers = #tpu.dot_dimension_numbers<[1], [0], [0], [1], [0, 0, 1, 1], [], []>} : vector<256x128xbf16>, vector<128x128xbf16>, vector<256x128xf32> -> vector<256x128xf32>
    %56 = arith.addf %49, %55 : vector<256x128xf32>
    %c0_56 = arith.constant 0 : index
    %c2_57 = arith.constant 2 : index
    %c2_58 = arith.constant 2 : index
    %c0_59 = arith.constant 0 : index
    %57 = vector.load %arg2[%c0_56, %c2_57, %c2_58, %c0_59] : memref<1x18x18x128xbf16, #tpu.memory_space<vmem>>, vector<1x16x16x128xbf16>
    %58 = vector.shape_cast %57 : vector<1x16x16x128xbf16> to vector<16x16x128xbf16>
    %59 = vector.shape_cast %58 : vector<16x16x128xbf16> to vector<256x128xbf16>
    %c8 = arith.constant 8 : index
    %c0_60 = arith.constant 0 : index
    %c0_61 = arith.constant 0 : index
    %60 = vector.load %arg3[%c8, %c0_60, %c0_61] : memref<9x128x128xbf16, #tpu.memory_space<vmem>>, vector<1x128x128xbf16>
    %61 = vector.shape_cast %60 : vector<1x128x128xbf16> to vector<128x128xbf16>
    %cst_62 = arith.constant dense<0.000000e+00> : vector<256x128xf32>
    %62 = tpu.matmul %59, %61, %cst_62 {dimension_numbers = #tpu.dot_dimension_numbers<[1], [0], [0], [1], [0, 0, 1, 1], [], []>} : vector<256x128xbf16>, vector<128x128xbf16>, vector<256x128xf32> -> vector<256x128xf32>
    %63 = arith.addf %56, %62 : vector<256x128xf32>
    %c0_63 = arith.constant 0 : index
    %c0_64 = arith.constant 0 : index
    %64 = vector.load %arg4[%c0_63, %c0_64] : memref<1x128xf32, #tpu.memory_space<vmem>>, vector<1x128xf32>
    %65 = vector.broadcast %64 : vector<1x128xf32> to vector<256x128xf32>
    %66 = arith.addf %63, %65 : vector<256x128xf32>
    %cst_65 = arith.constant 0.000000e+00 : f32
    %67 = vector.broadcast %cst_65 : f32 to vector<256x128xf32>
    %68 = arith.maximumf %66, %67 : vector<256x128xf32>
    %69 = vector.shape_cast %68 : vector<256x128xf32> to vector<16x16x128xf32>
    %c0_66 = arith.constant 0 : index
    %c0_67 = arith.constant 0 : index
    %c0_68 = arith.constant 0 : index
    %c0_69 = arith.constant 0 : index
    %70 = vector.load %arg7[%c0_66, %c0_67, %c0_68, %c0_69] : memref<1x16x16x128xf32, #tpu.memory_space<vmem>>, vector<1x16x16x128xf32>
    %71 = vector.shape_cast %70 : vector<1x16x16x128xf32> to vector<16x16x128xf32>
    %72 = vector.shape_cast %69 : vector<16x16x128xf32> to vector<1x16x16x128xf32>
    tpu.vector_store %arg7[%c0_66, %c0_67, %c0_68, %c0_69], %72 {strides = array<i32>} : memref<1x16x16x128xf32, #tpu.memory_space<vmem>>, vector<1x16x16x128xf32>,
    %cst_70 = arith.constant 3.906250e-03 : f32
    %73 = vector.broadcast %cst_70 : f32 to vector<1x256xf32>
    %cst_71 = arith.constant dense<0.000000e+00> : vector<1x128xf32>
    %74 = tpu.matmul %73, %68, %cst_71 {dimension_numbers = #tpu.dot_dimension_numbers<[1], [0], [0], [1], [0, 0, 1, 1], [], []>} : vector<1x256xf32>, vector<256x128xf32>, vector<1x128xf32> -> vector<1x128xf32>
    %75 = arith.truncf %74 : vector<1x128xf32> to vector<1x128xbf16>
    %c0_72 = arith.constant 0 : index
    %c0_73 = arith.constant 0 : index
    %76 = vector.load %arg5[%c0_72, %c0_73] : memref<128x128xbf16, #tpu.memory_space<vmem>>, vector<128x128xbf16>
    %cst_74 = arith.constant dense<0.000000e+00> : vector<1x128xf32>
    %77 = tpu.matmul %75, %76, %cst_74 {dimension_numbers = #tpu.dot_dimension_numbers<[1], [0], [0], [1], [0, 0, 1, 1], [], []>} : vector<1x128xbf16>, vector<128x128xbf16>, vector<1x128xf32> -> vector<1x128xf32>
    %c0_75 = arith.constant 0 : index
    %c0_76 = arith.constant 0 : index
    %78 = vector.load %arg6[%c0_75, %c0_76] : memref<1x128xf32, #tpu.memory_space<vmem>>, vector<1x128xf32>
    %79 = arith.addf %77, %78 : vector<1x128xf32>
    %80 = vector.shape_cast %79 : vector<1x128xf32> to vector<1x1x128xf32>
    %c0_77 = arith.constant 0 : index
    %c0_78 = arith.constant 0 : index
    %c0_79 = arith.constant 0 : index
    %81 = vector.load %arg8[%c0_77, %c0_78, %c0_79] : memref<1x1x128xf32, #tpu.memory_space<vmem>>, vector<1x1x128xf32>
    tpu.vector_store %arg8[%c0_77, %c0_78, %c0_79], %80 {strides = array<i32>} : memref<1x1x128xf32, #tpu.memory_space<vmem>>, vector<1x1x128xf32>,
    %82 = tpu.iota {dimensions = array<i32: 1>} : vector<1x128xi32>
    %c10_i32 = arith.constant 10 : i32
    %83 = vector.broadcast %c10_i32 : i32 to vector<1x128xi32>
    %84 = arith.cmpi slt, %82, %83 : vector<1x128xi32>
    %cst_80 = arith.constant -1.000000e+30 : f32
    %85 = vector.broadcast %cst_80 : f32 to vector<1x128xf32>
    %86 = arith.select %84, %79, %85 : vector<1x128xi1>, vector<1x128xf32>
    %cst_81 = arith.constant dense<0xFF800000> : vector<1xf32>
    %87 = vector.multi_reduction <maximumf>, %86, %cst_81 [1] : vector<1x128xf32> to vector<1xf32>
    %88 = vector.shape_cast %87 : vector<1xf32> to vector<1x1xf32>
    %89 = vector.broadcast %88 : vector<1x1xf32> to vector<1x128xf32>
    %90 = arith.subf %86, %89 : vector<1x128xf32>
    %91 = math.exp %90 : vector<1x128xf32>
    %cst_82 = arith.constant 0.000000e+00 : f32
    %92 = vector.broadcast %cst_82 : f32 to vector<1x128xf32>
    %93 = arith.select %84, %91, %92 : vector<1x128xi1>, vector<1x128xf32>
    %cst_83 = arith.constant dense<0.000000e+00> : vector<1xf32>
    %94 = vector.multi_reduction <add>, %93, %cst_83 [1] : vector<1x128xf32> to vector<1xf32>
    %95 = vector.shape_cast %94 : vector<1xf32> to vector<1x1xf32>
    %96 = math.log %95 : vector<1x1xf32>
    %97 = vector.broadcast %96 : vector<1x1xf32> to vector<1x128xf32>
    %98 = arith.subf %90, %97 : vector<1x128xf32>
    %99 = arith.index_cast %arg0 : i32 to index
    %100 = memref.load %arg1[%99] : memref<2xi32, #tpu.memory_space<smem>>
    %101 = vector.broadcast %100 : i32 to vector<1x128xi32>
    %102 = arith.cmpi eq, %82, %101 : vector<1x128xi32>
    %103 = arith.extui %102 : vector<1x128xi1> to vector<1x128xi32>
    %104 = arith.sitofp %103 : vector<1x128xi32> to vector<1x128xf32>
    %105 = arith.mulf %104, %98 : vector<1x128xf32>
    %cst_84 = arith.constant dense<0.000000e+00> : vector<1xf32>
    %106 = vector.multi_reduction <add>, %105, %cst_84 [1] : vector<1x128xf32> to vector<1xf32>
    %107 = vector.shape_cast %106 : vector<1xf32> to vector<1x1xf32>
    %cst_85 = arith.constant 0.000000e+00 : f32
    %108 = vector.broadcast %cst_85 : f32 to vector<1x1xf32>
    %109 = arith.subf %108, %107 : vector<1x1xf32>
    %110 = vector.shape_cast %109 : vector<1x1xf32> to vector<1x1x1xf32>
    %c0_86 = arith.constant 0 : index
    %c0_87 = arith.constant 0 : index
    %c0_88 = arith.constant 0 : index
    %111 = vector.load %arg9[%c0_86, %c0_87, %c0_88] : memref<1x1x1xf32, #tpu.memory_space<vmem>>, vector<1x1x1xf32>
    tpu.vector_store %arg9[%c0_86, %c0_87, %c0_88], %110 {strides = array<i32>} : memref<1x1x1xf32, #tpu.memory_space<vmem>>, vector<1x1x1xf32>,
    return
  }
  func.func @transform_0(%arg0: i32, %arg1: memref<2xi32, #tpu.memory_space<smem>>) -> (i32, i32, i32, i32) {
    %c0_i32 = arith.constant 0 : i32
    %c0_i32_0 = arith.constant 0 : i32
    %c0_i32_1 = arith.constant 0 : i32
    %c0_i32_2 = arith.constant 0 : i32
    return %arg0, %c0_i32, %c0_i32_0, %c0_i32_1 : i32, i32, i32, i32
  }
  func.func @transform_1(%arg0: i32, %arg1: memref<2xi32, #tpu.memory_space<smem>>) -> (i32, i32, i32) {
    %c0_i32 = arith.constant 0 : i32
    %c0_i32_0 = arith.constant 0 : i32
    %c0_i32_1 = arith.constant 0 : i32
    %c0_i32_2 = arith.constant 0 : i32
    return %c0_i32, %c0_i32_0, %c0_i32_1 : i32, i32, i32
  }
  func.func @transform_2(%arg0: i32, %arg1: memref<2xi32, #tpu.memory_space<smem>>) -> (i32, i32) {
    %c0_i32 = arith.constant 0 : i32
    %c0_i32_0 = arith.constant 0 : i32
    %c0_i32_1 = arith.constant 0 : i32
    return %c0_i32, %c0_i32_0 : i32, i32
  }
  func.func @transform_3(%arg0: i32, %arg1: memref<2xi32, #tpu.memory_space<smem>>) -> (i32, i32) {
    %c0_i32 = arith.constant 0 : i32
    %c0_i32_0 = arith.constant 0 : i32
    %c0_i32_1 = arith.constant 0 : i32
    return %c0_i32, %c0_i32_0 : i32, i32
  }
  func.func @transform_4(%arg0: i32, %arg1: memref<2xi32, #tpu.memory_space<smem>>) -> (i32, i32) {
    %c0_i32 = arith.constant 0 : i32
    %c0_i32_0 = arith.constant 0 : i32
    %c0_i32_1 = arith.constant 0 : i32
    return %c0_i32, %c0_i32_0 : i32, i32
  }
  func.func @transform_5(%arg0: i32, %arg1: memref<2xi32, #tpu.memory_space<smem>>) -> (i32, i32, i32, i32) {
    %c0_i32 = arith.constant 0 : i32
    %c0_i32_0 = arith.constant 0 : i32
    %c0_i32_1 = arith.constant 0 : i32
    %c0_i32_2 = arith.constant 0 : i32
    return %arg0, %c0_i32, %c0_i32_0, %c0_i32_1 : i32, i32, i32, i32
  }
  func.func @transform_6(%arg0: i32, %arg1: memref<2xi32, #tpu.memory_space<smem>>) -> (i32, i32, i32) {
    %c0_i32 = arith.constant 0 : i32
    %c0_i32_0 = arith.constant 0 : i32
    %c0_i32_1 = arith.constant 0 : i32
    return %arg0, %c0_i32, %c0_i32_0 : i32, i32, i32
  }
  func.func @transform_7(%arg0: i32, %arg1: memref<2xi32, #tpu.memory_space<smem>>) -> (i32, i32, i32) {
    %c0_i32 = arith.constant 0 : i32
    %c0_i32_0 = arith.constant 0 : i32
    %c0_i32_1 = arith.constant 0 : i32
    return %arg0, %c0_i32, %c0_i32_0 : i32, i32, i32
  }
}

</mosaic_0001>

<llo_original>
// kernel: tpu_custom_call.1
$region0: #{tpu_custom_call.1}
  #allocation0 [shape = 'u32[]', space=smem, size = 0x4, offset = 0x4, fixed_abs, tag = 'smem constant byte address 0x4 - core index']
  #allocation1 [shape = 'u32[144,128]{1,0:T(1,128)}', space=vmem, size = 0x12000, scoped, tag = 'internal scratch']
  #allocation2 [shape = 's32[1]{0}', space=sflag, size = 0x4, scoped, tag = 'scoped memory for tpu_custom_call.1']
  #allocation3 [shape = 'u8[512]{0}', space=smem, size = 0x200, scoped, tag = 'prefetched SMEM operand 0']
  %s0 = inlined_call_operand.vmem [shape: s32[2], index: 0, kind: input, shape index: {}]
  %s1 = inlined_call_operand.vmem [shape: bf16[2,18,18,128], index: 1, kind: input, shape index: {}]
  %s2 = inlined_call_operand.vmem [shape: bf16[9,128,128], index: 2, kind: input, shape index: {}]
  %s3 = inlined_call_operand.vmem [shape: f32[1,128], index: 3, kind: input, shape index: {}]
  %s4 = inlined_call_operand.vmem [shape: bf16[128,128], index: 4, kind: input, shape index: {}]
  %s5 = inlined_call_operand.vmem [shape: f32[1,128], index: 5, kind: input, shape index: {}]
  %s6 = inlined_call_operand.hbm [shape: f32[2,16,16,128], index: 6, kind: output, shape index: {0}]
  %s7 = inlined_call_operand.hbm [shape: f32[2,1,128], index: 7, kind: output, shape index: {1}]
  %s8 = inlined_call_operand.vmem [shape: f32[2,1,1], index: 8, kind: output, shape index: {2}]
  %9 = xla_tuple %s6, %s7, %s8
  %s10 = sld [smem:[#allocation0]]
  $region69: #{tpu_custom_call.1} parent=0
    _
  %s12 = ssub.s32 1, %s10
  %s13 = scalar_select 0, %s12, %s10
  %s14 = sshll.u32 %s0, 4
  %s15 = int_to_ptr.vmem [resolvable:$true] %s14
  %17 = dma.vmem_to_smem %s15, 16, [#allocation3], [#allocation2]
  %18 = dma.done [#allocation2], 16
  %19 = sfence
  $region1: #{tpu_custom_call.1} parent=0
    #allocation4 [shape = 'u8[262144]{0}', space=vmem, size = 0x40000, scoped, tag = 'output window, operand 0']
    #allocation5 [shape = 's32[2]{0}', space=sflag, size = 0x8, scoped, tag = 'scoped memory for tpu_custom_call.1']
    #allocation6 [shape = 'u8[1024]{0}', space=vmem, size = 0x400, scoped, tag = 'output window, operand 1']
    #allocation7 [shape = 's32[2]{0}', space=sflag, size = 0x8, scoped, tag = 'scoped memory for tpu_custom_call.1']
    %20 = vsyncpa [#allocation5], 0
    %s21 = scalar_lea.sflag [#allocation5], 1
    %22 = vsyncpa %s21, 0
    %23 = vsyncpa [#allocation7], 0
    %s24 = scalar_lea.sflag [#allocation7], 1
    %25 = vsyncpa %s24, 0
    loop: start=0, step=1, limit=4
    $region2: #{tpu_custom_call.1} parent=1 // loop_pre_header
      _
    $region3: #{tpu_custom_call.1} parent=1 // loop_header
      %s27 = sphi 0, %s31
      %p28 = scmp.ge.s32.totalorder %s27, 4
      %s37 = sphi 0, %s39
      %s40 = sphi 0, %s37
      %s41 = sphi 0, %s40
      %s57 = sphi 0, %s41
      %s61 = sphi 0, %s61
      %s63 = sphi 0, %s61
      %s64 = sphi 0, %s63
      %s78 = sphi 0, %s64
      %s82 = sphi 0, %s82
      %s84 = sphi 0, %s82
      %s85 = sphi 0, %s84
      %s99 = sphi 0, %s85
      %s103 = sphi 0, %s103
      %s105 = sphi 0, %s103
      %s106 = sphi 0, %s105
      %s120 = sphi 0, %s106
      %s124 = sphi 0, %s124
      %s126 = sphi 0, %s124
      %s127 = sphi 0, %s126
      %s141 = sphi 0, %s127
      %s147 = sphi 0, %s149
      %s150 = sphi 0, %s147
      %s151 = sphi 0, %s150
      %s167 = sphi 0, %s151
      %s173 = sphi 0, %s175
      %s176 = sphi 0, %s173
      %s177 = sphi 0, %s176
      %s193 = sphi 0, %s177
      %s199 = sphi 0, %s201
      %s202 = sphi 0, %s199
      %s203 = sphi 0, %s202
      %s219 = sphi 0, %s203
    $region4: #{tpu_custom_call.1} parent=1 // loop_header_branch
      %30 = sbr.rel (%p28) target = $region8
    $region5: #{tpu_custom_call.1} parent=1 // loop_body
      %s32 = ssub.s32 %s27, 1
      %s33 = ssub.s32 %s27, 2
      %s34 = sadd.s32 %s27, 1
      %s35 = ssub.s32 %s27, %s34
      %p36 = scmp.eq.s32.totalorder %s35, 0
      %s38 = sadd.s32 %s37, 1
      %s39 = scalar_select %p36, %s37, %s38
      %p42 = pneg %p36
      %p43 = scmp.eq.s32.totalorder %s27, 1
      %p44 = por %p42, %p43
      %p45 = scmp.ne.s32.totalorder %s37, %s40
      %p46 = scmp.eq.s32.totalorder %s27, 0
      %p47 = por %p45, %p46
      %p48 = scmp.ne.s32.totalorder %s37, %s40
      %p49 = scmp.eq.s32.totalorder %s32, 1
      %p50 = por %p48, %p49
      %p51 = scmp.ne.s32.totalorder %s40, %s41
      %p52 = scmp.eq.s32.totalorder %s32, 0
      %p53 = por %p51, %p52
      %p54 = scmp.ne.s32.totalorder %s40, %s41
      %p55 = scmp.eq.s32.totalorder %s33, 1
      %p56 = por %p54, %p55
      %p58 = scmp.ne.s32.totalorder %s41, %s57
      %p59 = scmp.eq.s32.totalorder %s33, 0
      %p60 = por %p58, %p59
      %s62 = sadd.s32 %s61, 1
      %p65 = scmp.eq.s32.totalorder %s27, 1
      %p66 = scmp.ne.s32.totalorder %s61, %s63
      %p67 = scmp.eq.s32.totalorder %s27, 0
      %p68 = por %p66, %p67
      %p69 = scmp.ne.s32.totalorder %s61, %s63
      %p70 = scmp.eq.s32.totalorder %s32, 1
      %p71 = por %p69, %p70
      %p72 = scmp.ne.s32.totalorder %s63, %s64
      %p73 = scmp.eq.s32.totalorder %s32, 0
      %p74 = por %p72, %p73
      %p75 = scmp.ne.s32.totalorder %s63, %s64
      %p76 = scmp.eq.s32.totalorder %s33, 1
      %p77 = por %p75, %p76
      %p79 = scmp.ne.s32.totalorder %s64, %s78
      %p80 = scmp.eq.s32.totalorder %s33, 0
      %p81 = por %p79, %p80
      %s83 = sadd.s32 %s82, 1
      %p86 = scmp.eq.s32.totalorder %s27, 1
      %p87 = scmp.ne.s32.totalorder %s82, %s84
      %p88 = scmp.eq.s32.totalorder %s27, 0
      %p89 = por %p87, %p88
      %p90 = scmp.ne.s32.totalorder %s82, %s84
      %p91 = scmp.eq.s32.totalorder %s32, 1
      %p92 = por %p90, %p91
      %p93 = scmp.ne.s32.totalorder %s84, %s85
      %p94 = scmp.eq.s32.totalorder %s32, 0
      %p95 = por %p93, %p94
      %p96 = scmp.ne.s32.totalorder %s84, %s85
      %p97 = scmp.eq.s32.totalorder %s33, 1
      %p98 = por %p96, %p97
      %p100 = scmp.ne.s32.totalorder %s85, %s99
      %p101 = scmp.eq.s32.totalorder %s33, 0
      %p102 = por %p100, %p101
      %s104 = sadd.s32 %s103, 1
      %p107 = scmp.eq.s32.totalorder %s27, 1
      %p108 = scmp.ne.s32.totalorder %s103, %s105
      %p109 = scmp.eq.s32.totalorder %s27, 0
      %p110 = por %p108, %p109
      %p111 = scmp.ne.s32.totalorder %s103, %s105
      %p112 = scmp.eq.s32.totalorder %s32, 1
      %p113 = por %p111, %p112
      %p114 = scmp.ne.s32.totalorder %s105, %s106
      %p115 = scmp.eq.s32.totalorder %s32, 0
      %p116 = por %p114, %p115
      %p117 = scmp.ne.s32.totalorder %s105, %s106
      %p118 = scmp.eq.s32.totalorder %s33, 1
      %p119 = por %p117, %p118
      %p121 = scmp.ne.s32.totalorder %s106, %s120
      %p122 = scmp.eq.s32.totalorder %s33, 0
      %p123 = por %p121, %p122
      %s125 = sadd.s32 %s124, 1
      %p128 = scmp.eq.s32.totalorder %s27, 1
      %p129 = scmp.ne.s32.totalorder %s124, %s126
      %p130 = scmp.eq.s32.totalorder %s27, 0
      %p131 = por %p129, %p130
      %p132 = scmp.ne.s32.totalorder %s124, %s126
      %p133 = scmp.eq.s32.totalorder %s32, 1
      %p134 = por %p132, %p133
      %p135 = scmp.ne.s32.totalorder %s126, %s127
      %p136 = scmp.eq.s32.totalorder %s32, 0
      %p137 = por %p135, %p136
      %p138 = scmp.ne.s32.totalorder %s126, %s127
      %p139 = scmp.eq.s32.totalorder %s33, 1
      %p140 = por %p138, %p139
      %p142 = scmp.ne.s32.totalorder %s127, %s141
      %p143 = scmp.eq.s32.totalorder %s33, 0
      %p144 = por %p142, %p143
      %s145 = ssub.s32 %s27, %s34
      %p146 = scmp.eq.s32.totalorder %s145, 0
      %s148 = sadd.s32 %s147, 1
      %s149 = scalar_select %p146, %s147, %s148
      %p152 = pneg %p146
      %p153 = scmp.eq.s32.totalorder %s27, 1
      %p154 = por %p152, %p153
      %p155 = scmp.ne.s32.totalorder %s147, %s150
      %p156 = scmp.eq.s32.totalorder %s27, 0
      %p157 = por %p155, %p156
      %p158 = scmp.ne.s32.totalorder %s147, %s150
      %p159 = scmp.eq.s32.totalorder %s32, 1
      %p160 = por %p158, %p159
      %p161 = scmp.ne.s32.totalorder %s150, %s151
      %p162 = scmp.eq.s32.totalorder %s32, 0
      %p163 = por %p161, %p162
      %p164 = scmp.ne.s32.totalorder %s150, %s151
      %p165 = scmp.eq.s32.totalorder %s33, 1
      %p166 = por %p164, %p165
      %p168 = scmp.ne.s32.totalorder %s151, %s167
      %p169 = scmp.eq.s32.totalorder %s33, 0
      %p170 = por %p168, %p169
      %s171 = ssub.s32 %s27, %s34
      %p172 = scmp.eq.s32.totalorder %s171, 0
      %s174 = sadd.s32 %s173, 1
      %s175 = scalar_select %p172, %s173, %s174
      %p178 = pneg %p172
      %p179 = scmp.eq.s32.totalorder %s27, 1
      %p180 = por %p178, %p179
      %p181 = scmp.ne.s32.totalorder %s173, %s176
      %p182 = scmp.eq.s32.totalorder %s27, 0
      %p183 = por %p181, %p182
      %p184 = scmp.ne.s32.totalorder %s173, %s176
      %p185 = scmp.eq.s32.totalorder %s32, 1
      %p186 = por %p184, %p185
      %p187 = scmp.ne.s32.totalorder %s176, %s177
      %p188 = scmp.eq.s32.totalorder %s32, 0
      %p189 = por %p187, %p188
      %p190 = scmp.ne.s32.totalorder %s176, %s177
      %p191 = scmp.eq.s32.totalorder %s33, 1
      %p192 = por %p190, %p191
      %p194 = scmp.ne.s32.totalorder %s177, %s193
      %p195 = scmp.eq.s32.totalorder %s33, 0
      %p196 = por %p194, %p195
      %s197 = ssub.s32 %s27, %s34
      %p198 = scmp.eq.s32.totalorder %s197, 0
      %s200 = sadd.s32 %s199, 1
      %s201 = scalar_select %p198, %s199, %s200
      %p204 = pneg %p198
      %p205 = scmp.eq.s32.totalorder %s27, 1
      %p206 = por %p204, %p205
      %p207 = scmp.ne.s32.totalorder %s199, %s202
      %p208 = scmp.eq.s32.totalorder %s27, 0
      %p209 = por %p207, %p208
      %p210 = scmp.ne.s32.totalorder %s199, %s202
      %p211 = scmp.eq.s32.totalorder %s32, 1
      %p212 = por %p210, %p211
      %p213 = scmp.ne.s32.totalorder %s202, %s203
      %p214 = scmp.eq.s32.totalorder %s32, 0
      %p215 = por %p213, %p214
      %p216 = scmp.ne.s32.totalorder %s202, %s203
      %p217 = scmp.eq.s32.totalorder %s33, 1
      %p218 = por %p216, %p217
      %p220 = scmp.ne.s32.totalorder %s203, %s219
      %p221 = scmp.eq.s32.totalorder %s33, 0
      %p222 = por %p220, %p221
      %p223 = scmp.le.s32.totalorder 1, %s27
      %p224 = scmp.lt.s32.totalorder %s27, 3
      %p225 = pnand %p223, %p224
      %p226 = pneg %p225
      // Predicated region
      $region9: #{tpu_custom_call.1} parent=5 // pred_check
        _
      $region10: #{tpu_custom_call.1} parent=5 // pred_check_branch
        %228 = sbr.rel (%p225) target = $region12
      $region11: #{tpu_custom_call.1} parent=5 // pred_region
        %s229 = ssub.s32 %s27, 1
        // Predicated region
        $region13: #{tpu_custom_call.1} parent=11 // pred_check
          %p230 = pneg %p74
        $region14: #{tpu_custom_call.1} parent=11 // pred_check_branch
          %232 = sbr.rel (%p230) target = $region16
        $region15: #{tpu_custom_call.1} parent=11 // pred_region
          _
        $region16: #{tpu_custom_call.1} parent=11 // pred_fallthru
          _
        // Predicated region
        $region17: #{tpu_custom_call.1} parent=11 // pred_check
          %p233 = pneg %p95
        $region18: #{tpu_custom_call.1} parent=11 // pred_check_branch
          %235 = sbr.rel (%p233) target = $region20
        $region19: #{tpu_custom_call.1} parent=11 // pred_region
          _
        $region20: #{tpu_custom_call.1} parent=11 // pred_fallthru
          _
        // Predicated region
        $region21: #{tpu_custom_call.1} parent=11 // pred_check
          %p236 = pneg %p116
        $region22: #{tpu_custom_call.1} parent=11 // pred_check_branch
          %238 = sbr.rel (%p236) target = $region24
        $region23: #{tpu_custom_call.1} parent=11 // pred_region
          _
        $region24: #{tpu_custom_call.1} parent=11 // pred_fallthru
          _
        // Predicated region
        $region25: #{tpu_custom_call.1} parent=11 // pred_check
          %p239 = pneg %p137
        $region26: #{tpu_custom_call.1} parent=11 // pred_check_branch
          %241 = sbr.rel (%p239) target = $region28
        $region27: #{tpu_custom_call.1} parent=11 // pred_region
          _
        $region28: #{tpu_custom_call.1} parent=11 // pred_fallthru
          _
      $region12: #{tpu_custom_call.1} parent=5 // pred_fallthru
        _
      %p242 = scmp.lt.s32.totalorder %s27, 2
      // Predicated region
      $region29: #{tpu_custom_call.1} parent=5 // pred_check
        %p243 = pneg %p242
      $region30: #{tpu_custom_call.1} parent=5 // pred_check_branch
        %245 = sbr.rel (%p243) target = $region32
      $region31: #{tpu_custom_call.1} parent=5 // pred_region
        // Predicated region
        $region33: #{tpu_custom_call.1} parent=31 // pred_check
          %p246 = pneg %p47
        $region34: #{tpu_custom_call.1} parent=31 // pred_check_branch
          %248 = sbr.rel (%p246) target = $region36
        $region35: #{tpu_custom_call.1} parent=31 // pred_region
          %p249 = scmp.lt.s32.totalorder %s27, 1
          %s250 = scalar_select %p249, %s27, 1
          %s251 = smul.addr %s250, 54
          %s252 = smul.addr %s251, 4
          %s253 = scalar_lea.vmem %s1, %s252
        $region36: #{tpu_custom_call.1} parent=31 // pred_fallthru
          _
      $region32: #{tpu_custom_call.1} parent=5 // pred_fallthru
        _
      %p254 = scmp.le.s32.totalorder 1, %s27
      %p255 = scmp.lt.s32.totalorder %s27, 3
      %p256 = pnand %p254, %p255
      %p257 = pneg %p256
      // Predicated region
      $region37: #{tpu_custom_call.1} parent=5 // pred_check
        _
      $region38: #{tpu_custom_call.1} parent=5 // pred_check_branch
        %259 = sbr.rel (%p256) target = $region40
      $region39: #{tpu_custom_call.1} parent=5 // pred_region
        %s260 = ssub.s32 %s27, 1
        %p261 = scmp.lt.s32.totalorder %s32, 1
        %s262 = scalar_select %p261, %s32, 1
        %s263 = smul.addr %s262, 54
        %s264 = smul.addr %s263, 4
        %s265 = scalar_lea.vmem %s1, %s264
        %p266 = pneg %p53
        %p267 = pneg %p50
        %p268 = pneg %p74
        %p269 = pneg %p71
        %p270 = pneg %p95
        %p271 = pneg %p92
        %p272 = pneg %p116
        %p273 = pneg %p113
        %p274 = pneg %p137
        %p275 = pneg %p134
        %p276 = pneg %p163
        %p277 = pneg %p160
        %s278 = sand.u32 %s150, 1
        %s279 = scalar_lea.sflag [#allocation5], %s278
        %s280 = sand.u32 %s150, 1
        %s281 = smul.addr %s280, 256
        %s282 = scalar_lea.vmem [#allocation4], %s281
        %p283 = pneg %p189
        %p284 = pneg %p186
        %s285 = sand.u32 %s176, 1
        %s286 = scalar_lea.sflag [#allocation7], %s285
        %s287 = sand.u32 %s176, 1
        %s288 = scalar_lea.vmem [#allocation6], %s287
        %p289 = pneg %p215
        %p290 = pneg %p212
        %p291 = scmp.lt.s32.totalorder %s32, 1
        %s292 = scalar_select %p291, %s32, 1
        %s293 = scalar_lea.vmem %s8, %s292
        %p294 = scmp.lt.s32.totalorder %s32, 1
        %s295 = scalar_select %p294, %s32, 1
        %s296 = smul.addr %s295, 54
        %s297 = smul.addr %s296, 4
        %s298 = scalar_lea.vmem %s1, %s297
        %p299 = scmp.lt.s32.totalorder %s32, 1
        %s300 = scalar_select %p299, %s32, 1
        %s301 = scalar_lea.vmem %s8, %s300
        %v303 = vld [vmem:[%s298] sm:$0xf]
        %v304 = vld [vmem:[%s298 + $0x4] sm:$0xf]
        %v305 = vld [vmem:[%s298 + $0xc] sm:$0xf]
        %v306 = vld [vmem:[%s298 + $0x10] sm:$0xf]
        %v307 = vld [vmem:[%s298 + $0x18] sm:$0xf]
        %v308 = vld [vmem:[%s298 + $0x1c] sm:$0xf]
        %v309 = vld [vmem:[%s298 + $0x24] sm:$0xf]
        %v310 = vld [vmem:[%s298 + $0x28] sm:$0xf]
        %v311 = vld [vmem:[%s298 + $0x30] sm:$0xf]
        %v312 = vld [vmem:[%s298 + $0x34] sm:$0xf]
        %v313 = vld [vmem:[%s298 + $0x3c] sm:$0xf]
        %v314 = vld [vmem:[%s298 + $0x40] sm:$0xf]
        %v315 = vld [vmem:[%s298 + $0x48] sm:$0xf]
        %v316 = vld [vmem:[%s298 + $0x4c] sm:$0xf]
        %v317 = vld [vmem:[%s298 + $0x54] sm:$0xf]
        %v318 = vld [vmem:[%s298 + $0x58] sm:$0xf]
        %v319 = vld [vmem:[%s298 + $0x60] sm:$0xf]
        %v320 = vld [vmem:[%s298 + $0x64] sm:$0xf]
        %v321 = vld [vmem:[%s298 + $0x6c] sm:$0xf]
        %v322 = vld [vmem:[%s298 + $0x70] sm:$0xf]
        %v323 = vld [vmem:[%s298 + $0x78] sm:$0xf]
        %v324 = vld [vmem:[%s298 + $0x7c] sm:$0xf]
        %v325 = vld [vmem:[%s298 + $0x84] sm:$0xf]
        %v326 = vld [vmem:[%s298 + $0x88] sm:$0xf]
        %v327 = vld [vmem:[%s298 + $0x90] sm:$0xf]
        %v328 = vld [vmem:[%s298 + $0x94] sm:$0xf]
        %v329 = vld [vmem:[%s298 + $0x9c] sm:$0xf]
        %v330 = vld [vmem:[%s298 + $0xa0] sm:$0xf]
        %v331 = vld [vmem:[%s298 + $0xa8] sm:$0xf]
        %v332 = vld [vmem:[%s298 + $0xac] sm:$0xf]
        %v333 = vld [vmem:[%s298 + $0xb4] sm:$0xf]
        %v334 = vld [vmem:[%s298 + $0xb8] sm:$0xf]
        %v335 = vld [vmem:[%s2] sm:$0xf]
        %v336 = vld [vmem:[%s2 + $0x4] sm:$0xf]
        %v337 = vld [vmem:[%s2 + $0x8] sm:$0xf]
        %v338 = vld [vmem:[%s2 + $0xc] sm:$0xf]
        %v339 = vld [vmem:[%s2 + $0x10] sm:$0xf]
        %v340 = vld [vmem:[%s2 + $0x14] sm:$0xf]
        %v341 = vld [vmem:[%s2 + $0x18] sm:$0xf]
        %v342 = vld [vmem:[%s2 + $0x1c] sm:$0xf]
        %v343 = vld [vmem:[%s2 + $0x20] sm:$0xf]
        %v344 = vld [vmem:[%s2 + $0x24] sm:$0xf]
        %v345 = vld [vmem:[%s2 + $0x28] sm:$0xf]
        %v346 = vld [vmem:[%s2 + $0x2c] sm:$0xf]
        %v347 = vld [vmem:[%s2 + $0x30] sm:$0xf]
        %v348 = vld [vmem:[%s2 + $0x34] sm:$0xf]
        %v349 = vld [vmem:[%s2 + $0x38] sm:$0xf]
        %v350 = vld [vmem:[%s2 + $0x3c] sm:$0xf]
        %v351 = vld [vmem:[%s298 + $0x8] sm:$0x1]
        %v352 = vld [vmem:[%s298 + $0x14] sm:$0x1]
        %v353 = vld [vmem:[%s298 + $0x20] sm:$0x1]
        %v354 = vld [vmem:[%s298 + $0x2c] sm:$0x1]
        %v355 = vld [vmem:[%s298 + $0x38] sm:$0x1]
        %v356 = vld [vmem:[%s298 + $0x44] sm:$0x1]
        %v357 = vld [vmem:[%s298 + $0x50] sm:$0x1]
        %v358 = vld [vmem:[%s298 + $0x5c] sm:$0x1]
        %v359 = vld [vmem:[%s298 + $0x68] sm:$0x1]
        %v360 = vld [vmem:[%s298 + $0x74] sm:$0x1]
        %v361 = vld [vmem:[%s298 + $0x80] sm:$0x1]
        %v362 = vld [vmem:[%s298 + $0x8c] sm:$0x1]
        %v363 = vld [vmem:[%s298 + $0x98] sm:$0x1]
        %v364 = vld [vmem:[%s298 + $0xa4] sm:$0x1]
        %v365 = vld [vmem:[%s298 + $0xb0] sm:$0x1]
        %v366 = vld [vmem:[%s298 + $0xbc] sm:$0x1]
        %vm367 = vsmask.f32 3328
        %vm368 = vsmask.f32 7440
        %vm369 = vmor %vm367, %vm368
        %v371 = vshrl.u32 %v303, 16
        %v373 = vrot.slane %v371, 4
        %v374 = vshll.u32 %v303, 16
        %v376 = vrot.slane %v374, 5
        %v377 = vor.u32 %v373, %v376
        %v378 = vrot.slane %v377, 4
        %v380 = vshll.u32 %v304, 16
        %v382 = vrot.slane %v380, 5
        %v383 = vsel %vm369, %v378, %v382
        %v384 = vshrl.u32 %v304, 16
        %v386 = vrot.slane %v384, 4
        %v387 = vor.u32 %v386, %v382
        %v388 = vrot.slane %v387, 4
        %v390 = vshll.u32 %v351, 16
        %v392 = vrot.slane %v390, 5
        %v393 = vsel %vm369, %v388, %v392
        %v395 = vshrl.u32 %v305, 16
        %v397 = vrot.slane %v395, 4
        %v398 = vshll.u32 %v305, 16
        %v400 = vrot.slane %v398, 5
        %v401 = vor.u32 %v397, %v400
        %v402 = vrot.slane %v401, 4
        %v404 = vshll.u32 %v306, 16
        %v406 = vrot.slane %v404, 5
        %v407 = vsel %vm369, %v402, %v406
        %v408 = vshrl.u32 %v306, 16
        %v410 = vrot.slane %v408, 4
        %v411 = vor.u32 %v410, %v406
        %v412 = vrot.slane %v411, 4
        %v414 = vshll.u32 %v352, 16
        %v416 = vrot.slane %v414, 5
        %v417 = vsel %vm369, %v412, %v416
        %v419 = vshrl.u32 %v307, 16
        %v421 = vrot.slane %v419, 4
        %v422 = vshll.u32 %v307, 16
        %v424 = vrot.slane %v422, 5
        %v425 = vor.u32 %v421, %v424
        %v426 = vrot.slane %v425, 4
        %v428 = vshll.u32 %v308, 16
        %v430 = vrot.slane %v428, 5
        %v431 = vsel %vm369, %v426, %v430
        %v432 = vshrl.u32 %v308, 16
        %v434 = vrot.slane %v432, 4
        %v435 = vor.u32 %v434, %v430
        %v436 = vrot.slane %v435, 4
        %v438 = vshll.u32 %v353, 16
        %v440 = vrot.slane %v438, 5
        %v441 = vsel %vm369, %v436, %v440
        %v443 = vshrl.u32 %v309, 16
        %v445 = vrot.slane %v443, 4
        %v446 = vshll.u32 %v309, 16
        %v448 = vrot.slane %v446, 5
        %v449 = vor.u32 %v445, %v448
        %v450 = vrot.slane %v449, 4
        %v452 = vshll.u32 %v310, 16
        %v454 = vrot.slane %v452, 5
        %v455 = vsel %vm369, %v450, %v454
        %v456 = vshrl.u32 %v310, 16
        %v458 = vrot.slane %v456, 4
        %v459 = vor.u32 %v458, %v454
        %v460 = vrot.slane %v459, 4
        %v462 = vshll.u32 %v354, 16
        %v464 = vrot.slane %v462, 5
        %v465 = vsel %vm369, %v460, %v464
        %v467 = vshrl.u32 %v311, 16
        %v469 = vrot.slane %v467, 4
        %v470 = vshll.u32 %v311, 16
        %v472 = vrot.slane %v470, 5
        %v473 = vor.u32 %v469, %v472
        %v474 = vrot.slane %v473, 4
        %v476 = vshll.u32 %v312, 16
        %v478 = vrot.slane %v476, 5
        %v479 = vsel %vm369, %v474, %v478
        %v480 = vshrl.u32 %v312, 16
        %v482 = vrot.slane %v480, 4
        %v483 = vor.u32 %v482, %v478
        %v484 = vrot.slane %v483, 4
        %v486 = vshll.u32 %v355, 16
        %v488 = vrot.slane %v486, 5
        %v489 = vsel %vm369, %v484, %v488
        %v491 = vshrl.u32 %v313, 16
        %v493 = vrot.slane %v491, 4
        %v494 = vshll.u32 %v313, 16
        %v496 = vrot.slane %v494, 5
        %v497 = vor.u32 %v493, %v496
        %v498 = vrot.slane %v497, 4
        %v500 = vshll.u32 %v314, 16
        %v502 = vrot.slane %v500, 5
        %v503 = vsel %vm369, %v498, %v502
        %v504 = vshrl.u32 %v314, 16
        %v506 = vrot.slane %v504, 4
        %v507 = vor.u32 %v506, %v502
        %v508 = vrot.slane %v507, 4
        %v510 = vshll.u32 %v356, 16
        %v512 = vrot.slane %v510, 5
        %v513 = vsel %vm369, %v508, %v512
        %v515 = vshrl.u32 %v315, 16
        %v517 = vrot.slane %v515, 4
        %v518 = vshll.u32 %v315, 16
        %v520 = vrot.slane %v518, 5
        %v521 = vor.u32 %v517, %v520
        %v522 = vrot.slane %v521, 4
        %v524 = vshll.u32 %v316, 16
        %v526 = vrot.slane %v524, 5
        %v527 = vsel %vm369, %v522, %v526
        %v528 = vshrl.u32 %v316, 16
        %v530 = vrot.slane %v528, 4
        %v531 = vor.u32 %v530, %v526
        %v532 = vrot.slane %v531, 4
        %v534 = vshll.u32 %v357, 16
        %v536 = vrot.slane %v534, 5
        %v537 = vsel %vm369, %v532, %v536
        %v539 = vshrl.u32 %v317, 16
        %v541 = vrot.slane %v539, 4
        %v542 = vshll.u32 %v317, 16
        %v544 = vrot.slane %v542, 5
        %v545 = vor.u32 %v541, %v544
        %v546 = vrot.slane %v545, 4
        %v548 = vshll.u32 %v318, 16
        %v550 = vrot.slane %v548, 5
        %v551 = vsel %vm369, %v546, %v550
        %v552 = vshrl.u32 %v318, 16
        %v554 = vrot.slane %v552, 4
        %v555 = vor.u32 %v554, %v550
        %v556 = vrot.slane %v555, 4
        %v558 = vshll.u32 %v358, 16
        %v560 = vrot.slane %v558, 5
        %v561 = vsel %vm369, %v556, %v560
        %v563 = vshrl.u32 %v319, 16
        %v565 = vrot.slane %v563, 4
        %v566 = vshll.u32 %v319, 16
        %v568 = vrot.slane %v566, 5
        %v569 = vor.u32 %v565, %v568
        %v570 = vrot.slane %v569, 4
        %v572 = vshll.u32 %v320, 16
        %v574 = vrot.slane %v572, 5
        %v575 = vsel %vm369, %v570, %v574
        %v576 = vshrl.u32 %v320, 16
        %v578 = vrot.slane %v576, 4
        %v579 = vor.u32 %v578, %v574
        %v580 = vrot.slane %v579, 4
        %v582 = vshll.u32 %v359, 16
        %v584 = vrot.slane %v582, 5
        %v585 = vsel %vm369, %v580, %v584
        %v587 = vshrl.u32 %v321, 16
        %v589 = vrot.slane %v587, 4
        %v590 = vshll.u32 %v321, 16
        %v592 = vrot.slane %v590, 5
        %v593 = vor.u32 %v589, %v592
        %v594 = vrot.slane %v593, 4
        %v596 = vshll.u32 %v322, 16
        %v598 = vrot.slane %v596, 5
        %v599 = vsel %vm369, %v594, %v598
        %v600 = vshrl.u32 %v322, 16
        %v602 = vrot.slane %v600, 4
        %v603 = vor.u32 %v602, %v598
        %v604 = vrot.slane %v603, 4
        %v606 = vshll.u32 %v360, 16
        %v608 = vrot.slane %v606, 5
        %v609 = vsel %vm369, %v604, %v608
        %v611 = vshrl.u32 %v323, 16
        %v613 = vrot.slane %v611, 4
        %v614 = vshll.u32 %v323, 16
        %v616 = vrot.slane %v614, 5
        %v617 = vor.u32 %v613, %v616
        %v618 = vrot.slane %v617, 4
        %v620 = vshll.u32 %v324, 16
        %v622 = vrot.slane %v620, 5
        %v623 = vsel %vm369, %v618, %v622
        %v624 = vshrl.u32 %v324, 16
        %v626 = vrot.slane %v624, 4
        %v627 = vor.u32 %v626, %v622
        %v628 = vrot.slane %v627, 4
        %v630 = vshll.u32 %v361, 16
        %v632 = vrot.slane %v630, 5
        %v633 = vsel %vm369, %v628, %v632
        %v635 = vshrl.u32 %v325, 16
        %v637 = vrot.slane %v635, 4
        %v638 = vshll.u32 %v325, 16
        %v640 = vrot.slane %v638, 5
        %v641 = vor.u32 %v637, %v640
        %v642 = vrot.slane %v641, 4
        %v644 = vshll.u32 %v326, 16
        %v646 = vrot.slane %v644, 5
        %v647 = vsel %vm369, %v642, %v646
        %v648 = vshrl.u32 %v326, 16
        %v650 = vrot.slane %v648, 4
        %v651 = vor.u32 %v650, %v646
        %v652 = vrot.slane %v651, 4
        %v654 = vshll.u32 %v362, 16
        %v656 = vrot.slane %v654, 5
        %v657 = vsel %vm369, %v652, %v656
        %v659 = vshrl.u32 %v327, 16
        %v661 = vrot.slane %v659, 4
        %v662 = vshll.u32 %v327, 16
        %v664 = vrot.slane %v662, 5
        %v665 = vor.u32 %v661, %v664
        %v666 = vrot.slane %v665, 4
        %v668 = vshll.u32 %v328, 16
        %v670 = vrot.slane %v668, 5
        %v671 = vsel %vm369, %v666, %v670
        %v672 = vshrl.u32 %v328, 16
        %v674 = vrot.slane %v672, 4
        %v675 = vor.u32 %v674, %v670
        %v676 = vrot.slane %v675, 4
        %v678 = vshll.u32 %v363, 16
        %v680 = vrot.slane %v678, 5
        %v681 = vsel %vm369, %v676, %v680
        %v683 = vshrl.u32 %v329, 16
        %v685 = vrot.slane %v683, 4
        %v686 = vshll.u32 %v329, 16
        %v688 = vrot.slane %v686, 5
        %v689 = vor.u32 %v685, %v688
        %v690 = vrot.slane %v689, 4
        %v692 = vshll.u32 %v330, 16
        %v694 = vrot.slane %v692, 5
        %v695 = vsel %vm369, %v690, %v694
        %v696 = vshrl.u32 %v330, 16
        %v698 = vrot.slane %v696, 4
        %v699 = vor.u32 %v698, %v694
        %v700 = vrot.slane %v699, 4
        %v702 = vshll.u32 %v364, 16
        %v704 = vrot.slane %v702, 5
        %v705 = vsel %vm369, %v700, %v704
        %v707 = vshrl.u32 %v331, 16
        %v709 = vrot.slane %v707, 4
        %v710 = vshll.u32 %v331, 16
        %v712 = vrot.slane %v710, 5
        %v713 = vor.u32 %v709, %v712
        %v714 = vrot.slane %v713, 4
        %v716 = vshll.u32 %v332, 16
        %v718 = vrot.slane %v716, 5
        %v719 = vsel %vm369, %v714, %v718
        %v720 = vshrl.u32 %v332, 16
        %v722 = vrot.slane %v720, 4
        %v723 = vor.u32 %v722, %v718
        %v724 = vrot.slane %v723, 4
        %v726 = vshll.u32 %v365, 16
        %v728 = vrot.slane %v726, 5
        %v729 = vsel %vm369, %v724, %v728
        %v731 = vshrl.u32 %v333, 16
        %v733 = vrot.slane %v731, 4
        %v734 = vshll.u32 %v333, 16
        %v736 = vrot.slane %v734, 5
        %v737 = vor.u32 %v733, %v736
        %v738 = vrot.slane %v737, 4
        %v740 = vshll.u32 %v334, 16
        %v742 = vrot.slane %v740, 5
        %v743 = vsel %vm369, %v738, %v742
        %v744 = vshrl.u32 %v334, 16
        %v746 = vrot.slane %v744, 4
        %v747 = vor.u32 %v746, %v742
        %v748 = vrot.slane %v747, 4
        %v750 = vshll.u32 %v366, 16
        %v752 = vrot.slane %v750, 5
        %v753 = vsel %vm369, %v748, %v752
        %s754 = scalar_lea.vmem %s2, 64
        %v755 = vld [vmem:[%s754] sm:$0xf]
        %v756 = vld [vmem:[%s754 + $0x4] sm:$0xf]
        %v757 = vld [vmem:[%s754 + $0x8] sm:$0xf]
        %v758 = vld [vmem:[%s754 + $0xc] sm:$0xf]
        %v759 = vld [vmem:[%s754 + $0x10] sm:$0xf]
        %v760 = vld [vmem:[%s754 + $0x14] sm:$0xf]
        %v761 = vld [vmem:[%s754 + $0x18] sm:$0xf]
        %v762 = vld [vmem:[%s754 + $0x1c] sm:$0xf]
        %v763 = vld [vmem:[%s754 + $0x20] sm:$0xf]
        %v764 = vld [vmem:[%s754 + $0x24] sm:$0xf]
        %v765 = vld [vmem:[%s754 + $0x28] sm:$0xf]
        %v766 = vld [vmem:[%s754 + $0x2c] sm:$0xf]
        %v767 = vld [vmem:[%s754 + $0x30] sm:$0xf]
        %v768 = vld [vmem:[%s754 + $0x34] sm:$0xf]
        %v769 = vld [vmem:[%s754 + $0x38] sm:$0xf]
        %v770 = vld [vmem:[%s754 + $0x3c] sm:$0xf]
        %v771 = vunpack.c.l.b16 %v383
        %v772 = vunpack.c.l.b16 %v393
        %v773 = vunpack.c.l.b16 %v407
        %v774 = vunpack.c.l.b16 %v417
        %v775 = vunpack.c.l.b16 %v431
        %v776 = vunpack.c.l.b16 %v441
        %v777 = vunpack.c.l.b16 %v455
        %v778 = vunpack.c.l.b16 %v465
        %v779 = vunpack.c.l.b16 %v479
        %v780 = vunpack.c.l.b16 %v489
        %v781 = vunpack.c.l.b16 %v503
        %v782 = vunpack.c.l.b16 %v513
        %v783 = vunpack.c.l.b16 %v527
        %v784 = vunpack.c.l.b16 %v537
        %v785 = vunpack.c.l.b16 %v551
        %v786 = vunpack.c.l.b16 %v561
        %v787 = vunpack.c.l.b16 %v575
        %v788 = vunpack.c.l.b16 %v585
        %v789 = vunpack.c.l.b16 %v599
        %v790 = vunpack.c.l.b16 %v609
        %v791 = vunpack.c.l.b16 %v623
        %v792 = vunpack.c.l.b16 %v633
        %v793 = vunpack.c.l.b16 %v647
        %v794 = vunpack.c.l.b16 %v657
        %v795 = vunpack.c.l.b16 %v671
        %v796 = vunpack.c.l.b16 %v681
        %v797 = vunpack.c.l.b16 %v695
        %v798 = vunpack.c.l.b16 %v705
        %v799 = vunpack.c.l.b16 %v719
        %v800 = vunpack.c.l.b16 %v729
        %v801 = vunpack.c.l.b16 %v743
        %v802 = vunpack.c.l.b16 %v753
        %v803 = vpack.c.b16 %v772, %v771
        %v804 = vpack.c.b16 %v774, %v773
        %v805 = vpack.c.b16 %v776, %v775
        %v806 = vpack.c.b16 %v778, %v777
        %v807 = vpack.c.b16 %v780, %v779
        %v808 = vpack.c.b16 %v782, %v781
        %v809 = vpack.c.b16 %v784, %v783
        %v810 = vpack.c.b16 %v786, %v785
        %v811 = vpack.c.b16 %v788, %v787
        %v812 = vpack.c.b16 %v790, %v789
        %v813 = vpack.c.b16 %v792, %v791
        %v814 = vpack.c.b16 %v794, %v793
        %v815 = vpack.c.b16 %v796, %v795
        %v816 = vpack.c.b16 %v798, %v797
        %v817 = vpack.c.b16 %v800, %v799
        %v818 = vpack.c.b16 %v802, %v801
        %v851 = vunpack.c.l.b16 %v755
        %v852 = vunpack.c.l.b16 %v756
        %v853 = vunpack.c.l.b16 %v757
        %v854 = vunpack.c.l.b16 %v758
        %v855 = vunpack.c.l.b16 %v759
        %v856 = vunpack.c.l.b16 %v760
        %v857 = vunpack.c.l.b16 %v761
        %v858 = vunpack.c.l.b16 %v762
        %v859 = vunpack.c.l.b16 %v763
        %v860 = vunpack.c.l.b16 %v764
        %v861 = vunpack.c.l.b16 %v765
        %v862 = vunpack.c.l.b16 %v766
        %v863 = vunpack.c.l.b16 %v767
        %v864 = vunpack.c.l.b16 %v768
        %v865 = vunpack.c.l.b16 %v769
        %v866 = vunpack.c.l.b16 %v770
        %v867 = vpack.c.b16 %v852, %v851
        %v868 = vpack.c.b16 %v854, %v853
        %v869 = vpack.c.b16 %v856, %v855
        %v870 = vpack.c.b16 %v858, %v857
        %v871 = vpack.c.b16 %v860, %v859
        %v872 = vpack.c.b16 %v862, %v861
        %v873 = vpack.c.b16 %v864, %v863
        %v874 = vpack.c.b16 %v866, %v865
        %883 = vmatprep.subr.bf16.mxu0 0
        %884 = vmatpush1.bf16.msra.mxu0 %v874
        %885 = vmatprep.subr.bf16.mxu0 0
        %886 = vmatpush1.bf16.msra.mxu0 %v873
        %887 = vmatprep.subr.bf16.mxu0 0
        %888 = vmatpush1.bf16.msra.mxu0 %v872
        %889 = vmatprep.subr.bf16.mxu0 0
        %890 = vmatpush1.bf16.msra.mxu0 %v871
        %891 = vmatprep.subr.bf16.mxu0 0
        %892 = vmatpush1.bf16.msra.mxu0 %v870
        %893 = vmatprep.subr.bf16.mxu0 0
        %894 = vmatpush1.bf16.msra.mxu0 %v869
        %895 = vmatprep.subr.bf16.mxu0 0
        %896 = vmatpush1.bf16.msra.mxu0 %v868
        %897 = vmatprep.subr.bf16.mxu0 0
        %898 = vmatpush1.bf16.msra.mxu0 %v867
        %899 = vmatprep.subr.bf16.mxu0 0
        %900 = vmatpush2.bf16.msra.mxu0 0
        %901 = vmatprep.subr.bf16.mxu0 0
        %902 = vmatpush2.bf16.msra.mxu0 0
        %903 = vmatprep.subr.bf16.mxu0 0
        %904 = vmatpush2.bf16.msra.mxu0 0
        %905 = vmatprep.subr.bf16.mxu0 0
        %906 = vmatpush2.bf16.msra.mxu0 0
        %907 = vmatprep.subr.bf16.mxu0 0
        %908 = vmatpush2.bf16.msra.mxu0 0
        %909 = vmatprep.subr.bf16.mxu0 0
        %910 = vmatpush2.bf16.msra.mxu0 0
        %911 = vmatprep.subr.bf16.mxu0 0
        %912 = vmatpush2.bf16.msra.mxu0 0
        %913 = vmatprep.subr.bf16.mxu0 0
        %914 = vmatpush2.bf16.msra.mxu0 0
        %915 = vmatprep.mubr.bf16.mxu0 0
        %916 = vmatmul.mubr.bf16.gmra.mxu0 %v803
        %v917 = vpop.f32.mrf.mxu0
        %v918 = vadd.f32 0.0, %v917
        %v919 = vpop.f32.mrf.mxu0
        %v920 = vpop.f32.mrf.mxu0
        %v921 = vadd.f32 0.0, %v920
        %v922 = vpop.f32.mrf.mxu0
        %923 = vmatprep.mubr.bf16.mxu0 0
        %924 = vmatmul.mubr.bf16.gmra.mxu0 %v804
        %v925 = vpop.f32.mrf.mxu0
        %v926 = vadd.f32 0.0, %v925
        %v927 = vpop.f32.mrf.mxu0
        %v928 = vpop.f32.mrf.mxu0
        %v929 = vadd.f32 0.0, %v928
        %v930 = vpop.f32.mrf.mxu0
        %931 = vmatprep.mubr.bf16.mxu0 0
        %932 = vmatmul.mubr.bf16.gmra.mxu0 %v805
        %v933 = vpop.f32.mrf.mxu0
        %v934 = vadd.f32 0.0, %v933
        %v935 = vpop.f32.mrf.mxu0
        %v936 = vpop.f32.mrf.mxu0
        %v937 = vadd.f32 0.0, %v936
        %v938 = vpop.f32.mrf.mxu0
        %939 = vmatprep.mubr.bf16.mxu0 0
        %940 = vmatmul.mubr.bf16.gmra.mxu0 %v806
        %v941 = vpop.f32.mrf.mxu0
        %v942 = vadd.f32 0.0, %v941
        %v943 = vpop.f32.mrf.mxu0
        %v944 = vpop.f32.mrf.mxu0
        %v945 = vadd.f32 0.0, %v944
        %v946 = vpop.f32.mrf.mxu0
        %947 = vmatprep.mubr.bf16.mxu0 0
        %948 = vmatmul.mubr.bf16.gmra.mxu0 %v807
        %v949 = vpop.f32.mrf.mxu0
        %v950 = vadd.f32 0.0, %v949
        %v951 = vpop.f32.mrf.mxu0
        %v952 = vpop.f32.mrf.mxu0
        %v953 = vadd.f32 0.0, %v952
        %v954 = vpop.f32.mrf.mxu0
        %955 = vmatprep.mubr.bf16.mxu0 0
        %956 = vmatmul.mubr.bf16.gmra.mxu0 %v808
        %v957 = vpop.f32.mrf.mxu0
        %v958 = vadd.f32 0.0, %v957
        %v959 = vpop.f32.mrf.mxu0
        %v960 = vpop.f32.mrf.mxu0
        %v961 = vadd.f32 0.0, %v960
        %v962 = vpop.f32.mrf.mxu0
        %963 = vmatprep.mubr.bf16.mxu0 0
        %964 = vmatmul.mubr.bf16.gmra.mxu0 %v809
        %v965 = vpop.f32.mrf.mxu0
        %v966 = vadd.f32 0.0, %v965
        %v967 = vpop.f32.mrf.mxu0
        %v968 = vpop.f32.mrf.mxu0
        %v969 = vadd.f32 0.0, %v968
        %v970 = vpop.f32.mrf.mxu0
        %971 = vmatprep.mubr.bf16.mxu0 0
        %972 = vmatmul.mubr.bf16.gmra.mxu0 %v810
        %v973 = vpop.f32.mrf.mxu0
        %v974 = vadd.f32 0.0, %v973
        %v975 = vpop.f32.mrf.mxu0
        %v976 = vpop.f32.mrf.mxu0
        %v977 = vadd.f32 0.0, %v976
        %v978 = vpop.f32.mrf.mxu0
        %979 = vmatprep.mubr.bf16.mxu0 0
        %980 = vmatmul.mubr.bf16.gmra.mxu0 %v811
        %v981 = vpop.f32.mrf.mxu0
        %v982 = vadd.f32 0.0, %v981
        %v983 = vpop.f32.mrf.mxu0
        %v984 = vpop.f32.mrf.mxu0
        %v985 = vadd.f32 0.0, %v984
        %v986 = vpop.f32.mrf.mxu0
        %987 = vmatprep.mubr.bf16.mxu0 0
        %988 = vmatmul.mubr.bf16.gmra.mxu0 %v812
        %v989 = vpop.f32.mrf.mxu0
        %v990 = vadd.f32 0.0, %v989
        %v991 = vpop.f32.mrf.mxu0
        %v992 = vpop.f32.mrf.mxu0
        %v993 = vadd.f32 0.0, %v992
        %v994 = vpop.f32.mrf.mxu0
        %995 = vmatprep.mubr.bf16.mxu0 0
        %996 = vmatmul.mubr.bf16.gmra.mxu0 %v813
        %v997 = vpop.f32.mrf.mxu0
        %v998 = vadd.f32 0.0, %v997
        %v999 = vpop.f32.mrf.mxu0
        %v1000 = vpop.f32.mrf.mxu0
        %v1001 = vadd.f32 0.0, %v1000
        %v1002 = vpop.f32.mrf.mxu0
        %1003 = vmatprep.mubr.bf16.mxu0 0
        %1004 = vmatmul.mubr.bf16.gmra.mxu0 %v814
        %v1005 = vpop.f32.mrf.mxu0
        %v1006 = vadd.f32 0.0, %v1005
        %v1007 = vpop.f32.mrf.mxu0
        %v1008 = vpop.f32.mrf.mxu0
        %v1009 = vadd.f32 0.0, %v1008
        %v1010 = vpop.f32.mrf.mxu0
        %1011 = vmatprep.mubr.bf16.mxu0 0
        %1012 = vmatmul.mubr.bf16.gmra.mxu0 %v815
        %v1013 = vpop.f32.mrf.mxu0
        %v1014 = vadd.f32 0.0, %v1013
        %v1015 = vpop.f32.mrf.mxu0
        %v1016 = vpop.f32.mrf.mxu0
        %v1017 = vadd.f32 0.0, %v1016
        %v1018 = vpop.f32.mrf.mxu0
        %1019 = vmatprep.mubr.bf16.mxu0 0
        %1020 = vmatmul.mubr.bf16.gmra.mxu0 %v816
        %v1021 = vpop.f32.mrf.mxu0
        %v1022 = vadd.f32 0.0, %v1021
        %v1023 = vpop.f32.mrf.mxu0
        %v1024 = vpop.f32.mrf.mxu0
        %v1025 = vadd.f32 0.0, %v1024
        %v1026 = vpop.f32.mrf.mxu0
        %1027 = vmatprep.mubr.bf16.mxu0 0
        %1028 = vmatmul.mubr.bf16.gmra.mxu0 %v817
        %v1029 = vpop.f32.mrf.mxu0
        %v1030 = vadd.f32 0.0, %v1029
        %v1031 = vpop.f32.mrf.mxu0
        %v1032 = vpop.f32.mrf.mxu0
        %v1033 = vadd.f32 0.0, %v1032
        %v1034 = vpop.f32.mrf.mxu0
        %1035 = vmatprep.mubr.bf16.mxu0 0
        %1036 = vmatmul.mubr.bf16.gmra.mxu0 %v818
        %v1037 = vpop.f32.mrf.mxu0
        %v1038 = vadd.f32 0.0, %v1037
        %v1039 = vpop.f32.mrf.mxu0
        %v1040 = vpop.f32.mrf.mxu0
        %v1041 = vadd.f32 0.0, %v1040
        %v1042 = vpop.f32.mrf.mxu0
        %1043 = vdwg.mxu0
        %v1076 = vunpack.c.l.b16 %v303
        %v1077 = vunpack.c.l.b16 %v304
        %v1078 = vunpack.c.l.b16 %v305
        %v1079 = vunpack.c.l.b16 %v306
        %v1080 = vunpack.c.l.b16 %v307
        %v1081 = vunpack.c.l.b16 %v308
        %v1082 = vunpack.c.l.b16 %v309
        %v1083 = vunpack.c.l.b16 %v310
        %v1084 = vunpack.c.l.b16 %v311
        %v1085 = vunpack.c.l.b16 %v312
        %v1086 = vunpack.c.l.b16 %v313
        %v1087 = vunpack.c.l.b16 %v314
        %v1088 = vunpack.c.l.b16 %v315
        %v1089 = vunpack.c.l.b16 %v316
        %v1090 = vunpack.c.l.b16 %v317
        %v1091 = vunpack.c.l.b16 %v318
        %v1092 = vunpack.c.l.b16 %v319
        %v1093 = vunpack.c.l.b16 %v320
        %v1094 = vunpack.c.l.b16 %v321
        %v1095 = vunpack.c.l.b16 %v322
        %v1096 = vunpack.c.l.b16 %v323
        %v1097 = vunpack.c.l.b16 %v324
        %v1098 = vunpack.c.l.b16 %v325
        %v1099 = vunpack.c.l.b16 %v326
        %v1100 = vunpack.c.l.b16 %v327
        %v1101 = vunpack.c.l.b16 %v328
        %v1102 = vunpack.c.l.b16 %v329
        %v1103 = vunpack.c.l.b16 %v330
        %v1104 = vunpack.c.l.b16 %v331
        %v1105 = vunpack.c.l.b16 %v332
        %v1106 = vunpack.c.l.b16 %v333
        %v1107 = vunpack.c.l.b16 %v334
        %v1108 = vpack.c.b16 %v1077, %v1076
        %v1109 = vpack.c.b16 %v1079, %v1078
        %v1110 = vpack.c.b16 %v1081, %v1080
        %v1111 = vpack.c.b16 %v1083, %v1082
        %v1112 = vpack.c.b16 %v1085, %v1084
        %v1113 = vpack.c.b16 %v1087, %v1086
        %v1114 = vpack.c.b16 %v1089, %v1088
        %v1115 = vpack.c.b16 %v1091, %v1090
        %v1116 = vpack.c.b16 %v1093, %v1092
        %v1117 = vpack.c.b16 %v1095, %v1094
        %v1118 = vpack.c.b16 %v1097, %v1096
        %v1119 = vpack.c.b16 %v1099, %v1098
        %v1120 = vpack.c.b16 %v1101, %v1100
        %v1121 = vpack.c.b16 %v1103, %v1102
        %v1122 = vpack.c.b16 %v1105, %v1104
        %v1123 = vpack.c.b16 %v1107, %v1106
        %v1156 = vunpack.c.l.b16 %v335
        %v1157 = vunpack.c.l.b16 %v336
        %v1158 = vunpack.c.l.b16 %v337
        %v1159 = vunpack.c.l.b16 %v338
        %v1160 = vunpack.c.l.b16 %v339
        %v1161 = vunpack.c.l.b16 %v340
        %v1162 = vunpack.c.l.b16 %v341
        %v1163 = vunpack.c.l.b16 %v342
        %v1164 = vunpack.c.l.b16 %v343
        %v1165 = vunpack.c.l.b16 %v344
        %v1166 = vunpack.c.l.b16 %v345
        %v1167 = vunpack.c.l.b16 %v346
        %v1168 = vunpack.c.l.b16 %v347
        %v1169 = vunpack.c.l.b16 %v348
        %v1170 = vunpack.c.l.b16 %v349
        %v1171 = vunpack.c.l.b16 %v350
        %v1172 = vpack.c.b16 %v1157, %v1156
        %v1173 = vpack.c.b16 %v1159, %v1158
        %v1174 = vpack.c.b16 %v1161, %v1160
        %v1175 = vpack.c.b16 %v1163, %v1162
        %v1176 = vpack.c.b16 %v1165, %v1164
        %v1177 = vpack.c.b16 %v1167, %v1166
        %v1178 = vpack.c.b16 %v1169, %v1168
        %v1179 = vpack.c.b16 %v1171, %v1170
        %1188 = vmatprep.subr.bf16.mxu0 0
        %1189 = vmatpush1.bf16.msra.mxu0 %v1179
        %1190 = vmatprep.subr.bf16.mxu0 0
        %1191 = vmatpush1.bf16.msra.mxu0 %v1178
        %1192 = vmatprep.subr.bf16.mxu0 0
        %1193 = vmatpush1.bf16.msra.mxu0 %v1177
        %1194 = vmatprep.subr.bf16.mxu0 0
        %1195 = vmatpush1.bf16.msra.mxu0 %v1176
        %1196 = vmatprep.subr.bf16.mxu0 0
        %1197 = vmatpush1.bf16.msra.mxu0 %v1175
        %1198 = vmatprep.subr.bf16.mxu0 0
        %1199 = vmatpush1.bf16.msra.mxu0 %v1174
        %1200 = vmatprep.subr.bf16.mxu0 0
        %1201 = vmatpush1.bf16.msra.mxu0 %v1173
        %1202 = vmatprep.subr.bf16.mxu0 0
        %1203 = vmatpush1.bf16.msra.mxu0 %v1172
        %1204 = vmatprep.subr.bf16.mxu0 0
        %1205 = vmatpush2.bf16.msra.mxu0 0
        %1206 = vmatprep.subr.bf16.mxu0 0
        %1207 = vmatpush2.bf16.msra.mxu0 0
        %1208 = vmatprep.subr.bf16.mxu0 0
        %1209 = vmatpush2.bf16.msra.mxu0 0
        %1210 = vmatprep.subr.bf16.mxu0 0
        %1211 = vmatpush2.bf16.msra.mxu0 0
        %1212 = vmatprep.subr.bf16.mxu0 0
        %1213 = vmatpush2.bf16.msra.mxu0 0
        %1214 = vmatprep.subr.bf16.mxu0 0
        %1215 = vmatpush2.bf16.msra.mxu0 0
        %1216 = vmatprep.subr.bf16.mxu0 0
        %1217 = vmatpush2.bf16.msra.mxu0 0
        %1218 = vmatprep.subr.bf16.mxu0 0
        %1219 = vmatpush2.bf16.msra.mxu0 0
        %1220 = vmatprep.mubr.bf16.mxu0 0
        %1221 = vmatmul.mubr.bf16.gmra.mxu0 %v1108
        %v1222 = vpop.f32.mrf.mxu0
        %v1223 = vadd.f32 %v918, %v1222
        %v1224 = vpop.f32.mrf.mxu0
        %v1225 = vpop.f32.mrf.mxu0
        %v1226 = vadd.f32 %v921, %v1225
        %v1227 = vpop.f32.mrf.mxu0
        %1228 = vmatprep.mubr.bf16.mxu0 0
        %1229 = vmatmul.mubr.bf16.gmra.mxu0 %v1109
        %v1230 = vpop.f32.mrf.mxu0
        %v1231 = vadd.f32 %v926, %v1230
        %v1232 = vpop.f32.mrf.mxu0
        %v1233 = vpop.f32.mrf.mxu0
        %v1234 = vadd.f32 %v929, %v1233
        %v1235 = vpop.f32.mrf.mxu0
        %1236 = vmatprep.mubr.bf16.mxu0 0
        %1237 = vmatmul.mubr.bf16.gmra.mxu0 %v1110
        %v1238 = vpop.f32.mrf.mxu0
        %v1239 = vadd.f32 %v934, %v1238
        %v1240 = vpop.f32.mrf.mxu0
        %v1241 = vpop.f32.mrf.mxu0
        %v1242 = vadd.f32 %v937, %v1241
        %v1243 = vpop.f32.mrf.mxu0
        %1244 = vmatprep.mubr.bf16.mxu0 0
        %1245 = vmatmul.mubr.bf16.gmra.mxu0 %v1111
        %v1246 = vpop.f32.mrf.mxu0
        %v1247 = vadd.f32 %v942, %v1246
        %v1248 = vpop.f32.mrf.mxu0
        %v1249 = vpop.f32.mrf.mxu0
        %v1250 = vadd.f32 %v945, %v1249
        %v1251 = vpop.f32.mrf.mxu0
        %1252 = vmatprep.mubr.bf16.mxu0 0
        %1253 = vmatmul.mubr.bf16.gmra.mxu0 %v1112
        %v1254 = vpop.f32.mrf.mxu0
        %v1255 = vadd.f32 %v950, %v1254
        %v1256 = vpop.f32.mrf.mxu0
        %v1257 = vpop.f32.mrf.mxu0
        %v1258 = vadd.f32 %v953, %v1257
        %v1259 = vpop.f32.mrf.mxu0
        %1260 = vmatprep.mubr.bf16.mxu0 0
        %1261 = vmatmul.mubr.bf16.gmra.mxu0 %v1113
        %v1262 = vpop.f32.mrf.mxu0
        %v1263 = vadd.f32 %v958, %v1262
        %v1264 = vpop.f32.mrf.mxu0
        %v1265 = vpop.f32.mrf.mxu0
        %v1266 = vadd.f32 %v961, %v1265
        %v1267 = vpop.f32.mrf.mxu0
        %1268 = vmatprep.mubr.bf16.mxu0 0
        %1269 = vmatmul.mubr.bf16.gmra.mxu0 %v1114
        %v1270 = vpop.f32.mrf.mxu0
        %v1271 = vadd.f32 %v966, %v1270
        %v1272 = vpop.f32.mrf.mxu0
        %v1273 = vpop.f32.mrf.mxu0
        %v1274 = vadd.f32 %v969, %v1273
        %v1275 = vpop.f32.mrf.mxu0
        %1276 = vmatprep.mubr.bf16.mxu0 0
        %1277 = vmatmul.mubr.bf16.gmra.mxu0 %v1115
        %v1278 = vpop.f32.mrf.mxu0
        %v1279 = vadd.f32 %v974, %v1278
        %v1280 = vpop.f32.mrf.mxu0
        %v1281 = vpop.f32.mrf.mxu0
        %v1282 = vadd.f32 %v977, %v1281
        %v1283 = vpop.f32.mrf.mxu0
        %1284 = vmatprep.mubr.bf16.mxu0 0
        %1285 = vmatmul.mubr.bf16.gmra.mxu0 %v1116
        %v1286 = vpop.f32.mrf.mxu0
        %v1287 = vadd.f32 %v982, %v1286
        %v1288 = vpop.f32.mrf.mxu0
        %v1289 = vpop.f32.mrf.mxu0
        %v1290 = vadd.f32 %v985, %v1289
        %v1291 = vpop.f32.mrf.mxu0
        %1292 = vmatprep.mubr.bf16.mxu0 0
        %1293 = vmatmul.mubr.bf16.gmra.mxu0 %v1117
        %v1294 = vpop.f32.mrf.mxu0
        %v1295 = vadd.f32 %v990, %v1294
        %v1296 = vpop.f32.mrf.mxu0
        %v1297 = vpop.f32.mrf.mxu0
        %v1298 = vadd.f32 %v993, %v1297
        %v1299 = vpop.f32.mrf.mxu0
        %1300 = vmatprep.mubr.bf16.mxu0 0
        %1301 = vmatmul.mubr.bf16.gmra.mxu0 %v1118
        %v1302 = vpop.f32.mrf.mxu0
        %v1303 = vadd.f32 %v998, %v1302
        %v1304 = vpop.f32.mrf.mxu0
        %v1305 = vpop.f32.mrf.mxu0
        %v1306 = vadd.f32 %v1001, %v1305
        %v1307 = vpop.f32.mrf.mxu0
        %1308 = vmatprep.mubr.bf16.mxu0 0
        %1309 = vmatmul.mubr.bf16.gmra.mxu0 %v1119
        %v1310 = vpop.f32.mrf.mxu0
        %v1311 = vadd.f32 %v1006, %v1310
        %v1312 = vpop.f32.mrf.mxu0
        %v1313 = vpop.f32.mrf.mxu0
        %v1314 = vadd.f32 %v1009, %v1313
        %v1315 = vpop.f32.mrf.mxu0
        %1316 = vmatprep.mubr.bf16.mxu0 0
        %1317 = vmatmul.mubr.bf16.gmra.mxu0 %v1120
        %v1318 = vpop.f32.mrf.mxu0
        %v1319 = vadd.f32 %v1014, %v1318
        %v1320 = vpop.f32.mrf.mxu0
        %v1321 = vpop.f32.mrf.mxu0
        %v1322 = vadd.f32 %v1017, %v1321
        %v1323 = vpop.f32.mrf.mxu0
        %1324 = vmatprep.mubr.bf16.mxu0 0
        %1325 = vmatmul.mubr.bf16.gmra.mxu0 %v1121
        %v1326 = vpop.f32.mrf.mxu0
        %v1327 = vadd.f32 %v1022, %v1326
        %v1328 = vpop.f32.mrf.mxu0
        %v1329 = vpop.f32.mrf.mxu0
        %v1330 = vadd.f32 %v1025, %v1329
        %v1331 = vpop.f32.mrf.mxu0
        %1332 = vmatprep.mubr.bf16.mxu0 0
        %1333 = vmatmul.mubr.bf16.gmra.mxu0 %v1122
        %v1334 = vpop.f32.mrf.mxu0
        %v1335 = vadd.f32 %v1030, %v1334
        %v1336 = vpop.f32.mrf.mxu0
        %v1337 = vpop.f32.mrf.mxu0
        %v1338 = vadd.f32 %v1033, %v1337
        %v1339 = vpop.f32.mrf.mxu0
        %1340 = vmatprep.mubr.bf16.mxu0 0
        %1341 = vmatmul.mubr.bf16.gmra.mxu0 %v1123
        %v1342 = vpop.f32.mrf.mxu0
        %v1343 = vadd.f32 %v1038, %v1342
        %v1344 = vpop.f32.mrf.mxu0
        %v1345 = vpop.f32.mrf.mxu0
        %v1346 = vadd.f32 %v1041, %v1345
        %v1347 = vpop.f32.mrf.mxu0
        %1348 = vdwg.mxu0
        %v1349 = vld [vmem:[%s298] sm:$0xe]
        %v1350 = vld [vmem:[%s298 + $0xc] sm:$0xe]
        %v1351 = vld [vmem:[%s298 + $0x18] sm:$0xe]
        %v1352 = vld [vmem:[%s298 + $0x24] sm:$0xe]
        %v1353 = vld [vmem:[%s298 + $0x30] sm:$0xe]
        %v1354 = vld [vmem:[%s298 + $0x3c] sm:$0xe]
        %v1355 = vld [vmem:[%s298 + $0x48] sm:$0xe]
        %v1356 = vld [vmem:[%s298 + $0x54] sm:$0xe]
        %v1357 = vld [vmem:[%s298 + $0x60] sm:$0xe]
        %v1358 = vld [vmem:[%s298 + $0x6c] sm:$0xe]
        %v1359 = vld [vmem:[%s298 + $0x78] sm:$0xe]
        %v1360 = vld [vmem:[%s298 + $0x84] sm:$0xe]
        %v1361 = vld [vmem:[%s298 + $0x90] sm:$0xe]
        %v1362 = vld [vmem:[%s298 + $0x9c] sm:$0xe]
        %v1363 = vld [vmem:[%s298 + $0xa8] sm:$0xe]
        %v1364 = vld [vmem:[%s298 + $0xb4] sm:$0xe]
        %vm1397 = vcmask 1042432
        %vm1398 = vcmask 1046532
        %vm1399 = vmor %vm1397, %vm1398
        %v1400 = vrot.slane %v1349, 5
        %v1401 = vrot.slane %v1400, 4
        %v1402 = vrot.slane %v304, 5
        %v1403 = vsel %vm1399, %v1401, %v1402
        %v1404 = vrot.slane %v1402, 4
        %v1405 = vrot.slane %v351, 5
        %v1406 = vsel %vm1399, %v1404, %v1405
        %v1407 = vrot.slane %v1350, 5
        %v1408 = vrot.slane %v1407, 4
        %v1409 = vrot.slane %v306, 5
        %v1410 = vsel %vm1399, %v1408, %v1409
        %v1411 = vrot.slane %v1409, 4
        %v1412 = vrot.slane %v352, 5
        %v1413 = vsel %vm1399, %v1411, %v1412
        %v1414 = vrot.slane %v1351, 5
        %v1415 = vrot.slane %v1414, 4
        %v1416 = vrot.slane %v308, 5
        %v1417 = vsel %vm1399, %v1415, %v1416
        %v1418 = vrot.slane %v1416, 4
        %v1419 = vrot.slane %v353, 5
        %v1420 = vsel %vm1399, %v1418, %v1419
        %v1421 = vrot.slane %v1352, 5
        %v1422 = vrot.slane %v1421, 4
        %v1423 = vrot.slane %v310, 5
        %v1424 = vsel %vm1399, %v1422, %v1423
        %v1425 = vrot.slane %v1423, 4
        %v1426 = vrot.slane %v354, 5
        %v1427 = vsel %vm1399, %v1425, %v1426
        %v1428 = vrot.slane %v1353, 5
        %v1429 = vrot.slane %v1428, 4
        %v1430 = vrot.slane %v312, 5
        %v1431 = vsel %vm1399, %v1429, %v1430
        %v1432 = vrot.slane %v1430, 4
        %v1433 = vrot.slane %v355, 5
        %v1434 = vsel %vm1399, %v1432, %v1433
        %v1435 = vrot.slane %v1354, 5
        %v1436 = vrot.slane %v1435, 4
        %v1437 = vrot.slane %v314, 5
        %v1438 = vsel %vm1399, %v1436, %v1437
        %v1439 = vrot.slane %v1437, 4
        %v1440 = vrot.slane %v356, 5
        %v1441 = vsel %vm1399, %v1439, %v1440
        %v1442 = vrot.slane %v1355, 5
        %v1443 = vrot.slane %v1442, 4
        %v1444 = vrot.slane %v316, 5
        %v1445 = vsel %vm1399, %v1443, %v1444
        %v1446 = vrot.slane %v1444, 4
        %v1447 = vrot.slane %v357, 5
        %v1448 = vsel %vm1399, %v1446, %v1447
        %v1449 = vrot.slane %v1356, 5
        %v1450 = vrot.slane %v1449, 4
        %v1451 = vrot.slane %v318, 5
        %v1452 = vsel %vm1399, %v1450, %v1451
        %v1453 = vrot.slane %v1451, 4
        %v1454 = vrot.slane %v358, 5
        %v1455 = vsel %vm1399, %v1453, %v1454
        %v1456 = vrot.slane %v1357, 5
        %v1457 = vrot.slane %v1456, 4
        %v1458 = vrot.slane %v320, 5
        %v1459 = vsel %vm1399, %v1457, %v1458
        %v1460 = vrot.slane %v1458, 4
        %v1461 = vrot.slane %v359, 5
        %v1462 = vsel %vm1399, %v1460, %v1461
        %v1463 = vrot.slane %v1358, 5
        %v1464 = vrot.slane %v1463, 4
        %v1465 = vrot.slane %v322, 5
        %v1466 = vsel %vm1399, %v1464, %v1465
        %v1467 = vrot.slane %v1465, 4
        %v1468 = vrot.slane %v360, 5
        %v1469 = vsel %vm1399, %v1467, %v1468
        %v1470 = vrot.slane %v1359, 5
        %v1471 = vrot.slane %v1470, 4
        %v1472 = vrot.slane %v324, 5
        %v1473 = vsel %vm1399, %v1471, %v1472
        %v1474 = vrot.slane %v1472, 4
        %v1475 = vrot.slane %v361, 5
        %v1476 = vsel %vm1399, %v1474, %v1475
        %v1477 = vrot.slane %v1360, 5
        %v1478 = vrot.slane %v1477, 4
        %v1479 = vrot.slane %v326, 5
        %v1480 = vsel %vm1399, %v1478, %v1479
        %v1481 = vrot.slane %v1479, 4
        %v1482 = vrot.slane %v362, 5
        %v1483 = vsel %vm1399, %v1481, %v1482
        %v1484 = vrot.slane %v1361, 5
        %v1485 = vrot.slane %v1484, 4
        %v1486 = vrot.slane %v328, 5
        %v1487 = vsel %vm1399, %v1485, %v1486
        %v1488 = vrot.slane %v1486, 4
        %v1489 = vrot.slane %v363, 5
        %v1490 = vsel %vm1399, %v1488, %v1489
        %v1491 = vrot.slane %v1362, 5
        %v1492 = vrot.slane %v1491, 4
        %v1493 = vrot.slane %v330, 5
        %v1494 = vsel %vm1399, %v1492, %v1493
        %v1495 = vrot.slane %v1493, 4
        %v1496 = vrot.slane %v364, 5
        %v1497 = vsel %vm1399, %v1495, %v1496
        %v1498 = vrot.slane %v1363, 5
        %v1499 = vrot.slane %v1498, 4
        %v1500 = vrot.slane %v332, 5
        %v1501 = vsel %vm1399, %v1499, %v1500
        %v1502 = vrot.slane %v1500, 4
        %v1503 = vrot.slane %v365, 5
        %v1504 = vsel %vm1399, %v1502, %v1503
        %v1505 = vrot.slane %v1364, 5
        %v1506 = vrot.slane %v1505, 4
        %v1507 = vrot.slane %v334, 5
        %v1508 = vsel %vm1399, %v1506, %v1507
        %v1509 = vrot.slane %v1507, 4
        %v1510 = vrot.slane %v366, 5
        %v1511 = vsel %vm1399, %v1509, %v1510
        %s1512 = scalar_lea.vmem %s2, 128
        %v1513 = vld [vmem:[%s1512] sm:$0xf]
        %v1514 = vld [vmem:[%s1512 + $0x4] sm:$0xf]
        %v1515 = vld [vmem:[%s1512 + $0x8] sm:$0xf]
        %v1516 = vld [vmem:[%s1512 + $0xc] sm:$0xf]
        %v1517 = vld [vmem:[%s1512 + $0x10] sm:$0xf]
        %v1518 = vld [vmem:[%s1512 + $0x14] sm:$0xf]
        %v1519 = vld [vmem:[%s1512 + $0x18] sm:$0xf]
        %v1520 = vld [vmem:[%s1512 + $0x1c] sm:$0xf]
        %v1521 = vld [vmem:[%s1512 + $0x20] sm:$0xf]
        %v1522 = vld [vmem:[%s1512 + $0x24] sm:$0xf]
        %v1523 = vld [vmem:[%s1512 + $0x28] sm:$0xf]
        %v1524 = vld [vmem:[%s1512 + $0x2c] sm:$0xf]
        %v1525 = vld [vmem:[%s1512 + $0x30] sm:$0xf]
        %v1526 = vld [vmem:[%s1512 + $0x34] sm:$0xf]
        %v1527 = vld [vmem:[%s1512 + $0x38] sm:$0xf]
        %v1528 = vld [vmem:[%s1512 + $0x3c] sm:$0xf]
        %v1529 = vunpack.c.l.b16 %v1403
        %v1530 = vunpack.c.l.b16 %v1406
        %v1531 = vunpack.c.l.b16 %v1410
        %v1532 = vunpack.c.l.b16 %v1413
        %v1533 = vunpack.c.l.b16 %v1417
        %v1534 = vunpack.c.l.b16 %v1420
        %v1535 = vunpack.c.l.b16 %v1424
        %v1536 = vunpack.c.l.b16 %v1427
        %v1537 = vunpack.c.l.b16 %v1431
        %v1538 = vunpack.c.l.b16 %v1434
        %v1539 = vunpack.c.l.b16 %v1438
        %v1540 = vunpack.c.l.b16 %v1441
        %v1541 = vunpack.c.l.b16 %v1445
        %v1542 = vunpack.c.l.b16 %v1448
        %v1543 = vunpack.c.l.b16 %v1452
        %v1544 = vunpack.c.l.b16 %v1455
        %v1545 = vunpack.c.l.b16 %v1459
        %v1546 = vunpack.c.l.b16 %v1462
        %v1547 = vunpack.c.l.b16 %v1466
        %v1548 = vunpack.c.l.b16 %v1469
        %v1549 = vunpack.c.l.b16 %v1473
        %v1550 = vunpack.c.l.b16 %v1476
        %v1551 = vunpack.c.l.b16 %v1480
        %v1552 = vunpack.c.l.b16 %v1483
        %v1553 = vunpack.c.l.b16 %v1487
        %v1554 = vunpack.c.l.b16 %v1490
        %v1555 = vunpack.c.l.b16 %v1494
        %v1556 = vunpack.c.l.b16 %v1497
        %v1557 = vunpack.c.l.b16 %v1501
        %v1558 = vunpack.c.l.b16 %v1504
        %v1559 = vunpack.c.l.b16 %v1508
        %v1560 = vunpack.c.l.b16 %v1511
        %v1561 = vpack.c.b16 %v1530, %v1529
        %v1562 = vpack.c.b16 %v1532, %v1531
        %v1563 = vpack.c.b16 %v1534, %v1533
        %v1564 = vpack.c.b16 %v1536, %v1535
        %v1565 = vpack.c.b16 %v1538, %v1537
        %v1566 = vpack.c.b16 %v1540, %v1539
        %v1567 = vpack.c.b16 %v1542, %v1541
        %v1568 = vpack.c.b16 %v1544, %v1543
        %v1569 = vpack.c.b16 %v1546, %v1545
        %v1570 = vpack.c.b16 %v1548, %v1547
        %v1571 = vpack.c.b16 %v1550, %v1549
        %v1572 = vpack.c.b16 %v1552, %v1551
        %v1573 = vpack.c.b16 %v1554, %v1553
        %v1574 = vpack.c.b16 %v1556, %v1555
        %v1575 = vpack.c.b16 %v1558, %v1557
        %v1576 = vpack.c.b16 %v1560, %v1559
        %v1609 = vunpack.c.l.b16 %v1513
        %v1610 = vunpack.c.l.b16 %v1514
        %v1611 = vunpack.c.l.b16 %v1515
        %v1612 = vunpack.c.l.b16 %v1516
        %v1613 = vunpack.c.l.b16 %v1517
        %v1614 = vunpack.c.l.b16 %v1518
        %v1615 = vunpack.c.l.b16 %v1519
        %v1616 = vunpack.c.l.b16 %v1520
        %v1617 = vunpack.c.l.b16 %v1521
        %v1618 = vunpack.c.l.b16 %v1522
        %v1619 = vunpack.c.l.b16 %v1523
        %v1620 = vunpack.c.l.b16 %v1524
        %v1621 = vunpack.c.l.b16 %v1525
        %v1622 = vunpack.c.l.b16 %v1526
        %v1623 = vunpack.c.l.b16 %v1527
        %v1624 = vunpack.c.l.b16 %v1528
        %v1625 = vpack.c.b16 %v1610, %v1609
        %v1626 = vpack.c.b16 %v1612, %v1611
        %v1627 = vpack.c.b16 %v1614, %v1613
        %v1628 = vpack.c.b16 %v1616, %v1615
        %v1629 = vpack.c.b16 %v1618, %v1617
        %v1630 = vpack.c.b16 %v1620, %v1619
        %v1631 = vpack.c.b16 %v1622, %v1621
        %v1632 = vpack.c.b16 %v1624, %v1623
        %1641 = vmatprep.subr.bf16.mxu0 0
        %1642 = vmatpush1.bf16.msra.mxu0 %v1632
        %1643 = vmatprep.subr.bf16.mxu0 0
        %1644 = vmatpush1.bf16.msra.mxu0 %v1631
        %1645 = vmatprep.subr.bf16.mxu0 0
        %1646 = vmatpush1.bf16.msra.mxu0 %v1630
        %1647 = vmatprep.subr.bf16.mxu0 0
        %1648 = vmatpush1.bf16.msra.mxu0 %v1629
        %1649 = vmatprep.subr.bf16.mxu0 0
        %1650 = vmatpush1.bf16.msra.mxu0 %v1628
        %1651 = vmatprep.subr.bf16.mxu0 0
        %1652 = vmatpush1.bf16.msra.mxu0 %v1627
        %1653 = vmatprep.subr.bf16.mxu0 0
        %1654 = vmatpush1.bf16.msra.mxu0 %v1626
        %1655 = vmatprep.subr.bf16.mxu0 0
        %1656 = vmatpush1.bf16.msra.mxu0 %v1625
        %1657 = vmatprep.subr.bf16.mxu0 0
        %1658 = vmatpush2.bf16.msra.mxu0 0
        %1659 = vmatprep.subr.bf16.mxu0 0
        %1660 = vmatpush2.bf16.msra.mxu0 0
        %1661 = vmatprep.subr.bf16.mxu0 0
        %1662 = vmatpush2.bf16.msra.mxu0 0
        %1663 = vmatprep.subr.bf16.mxu0 0
        %1664 = vmatpush2.bf16.msra.mxu0 0
        %1665 = vmatprep.subr.bf16.mxu0 0
        %1666 = vmatpush2.bf16.msra.mxu0 0
        %1667 = vmatprep.subr.bf16.mxu0 0
        %1668 = vmatpush2.bf16.msra.mxu0 0
        %1669 = vmatprep.subr.bf16.mxu0 0
        %1670 = vmatpush2.bf16.msra.mxu0 0
        %1671 = vmatprep.subr.bf16.mxu0 0
        %1672 = vmatpush2.bf16.msra.mxu0 0
        %1673 = vmatprep.mubr.bf16.mxu0 0
        %1674 = vmatmul.mubr.bf16.gmra.mxu0 %v1561
        %v1675 = vpop.f32.mrf.mxu0
        %v1676 = vadd.f32 0.0, %v1675
        %v1677 = vpop.f32.mrf.mxu0
        %v1678 = vpop.f32.mrf.mxu0
        %v1679 = vadd.f32 0.0, %v1678
        %v1680 = vpop.f32.mrf.mxu0
        %1681 = vmatprep.mubr.bf16.mxu0 0
        %1682 = vmatmul.mubr.bf16.gmra.mxu0 %v1562
        %v1683 = vpop.f32.mrf.mxu0
        %v1684 = vadd.f32 0.0, %v1683
        %v1685 = vpop.f32.mrf.mxu0
        %v1686 = vpop.f32.mrf.mxu0
        %v1687 = vadd.f32 0.0, %v1686
        %v1688 = vpop.f32.mrf.mxu0
        %1689 = vmatprep.mubr.bf16.mxu0 0
        %1690 = vmatmul.mubr.bf16.gmra.mxu0 %v1563
        %v1691 = vpop.f32.mrf.mxu0
        %v1692 = vadd.f32 0.0, %v1691
        %v1693 = vpop.f32.mrf.mxu0
        %v1694 = vpop.f32.mrf.mxu0
        %v1695 = vadd.f32 0.0, %v1694
        %v1696 = vpop.f32.mrf.mxu0
        %1697 = vmatprep.mubr.bf16.mxu0 0
        %1698 = vmatmul.mubr.bf16.gmra.mxu0 %v1564
        %v1699 = vpop.f32.mrf.mxu0
        %v1700 = vadd.f32 0.0, %v1699
        %v1701 = vpop.f32.mrf.mxu0
        %v1702 = vpop.f32.mrf.mxu0
        %v1703 = vadd.f32 0.0, %v1702
        %v1704 = vpop.f32.mrf.mxu0
        %1705 = vmatprep.mubr.bf16.mxu0 0
        %1706 = vmatmul.mubr.bf16.gmra.mxu0 %v1565
        %v1707 = vpop.f32.mrf.mxu0
        %v1708 = vadd.f32 0.0, %v1707
        %v1709 = vpop.f32.mrf.mxu0
        %v1710 = vpop.f32.mrf.mxu0
        %v1711 = vadd.f32 0.0, %v1710
        %v1712 = vpop.f32.mrf.mxu0
        %1713 = vmatprep.mubr.bf16.mxu0 0
        %1714 = vmatmul.mubr.bf16.gmra.mxu0 %v1566
        %v1715 = vpop.f32.mrf.mxu0
        %v1716 = vadd.f32 0.0, %v1715
        %v1717 = vpop.f32.mrf.mxu0
        %v1718 = vpop.f32.mrf.mxu0
        %v1719 = vadd.f32 0.0, %v1718
        %v1720 = vpop.f32.mrf.mxu0
        %1721 = vmatprep.mubr.bf16.mxu0 0
        %1722 = vmatmul.mubr.bf16.gmra.mxu0 %v1567
        %v1723 = vpop.f32.mrf.mxu0
        %v1724 = vadd.f32 0.0, %v1723
        %v1725 = vpop.f32.mrf.mxu0
        %v1726 = vpop.f32.mrf.mxu0
        %v1727 = vadd.f32 0.0, %v1726
        %v1728 = vpop.f32.mrf.mxu0
        %1729 = vmatprep.mubr.bf16.mxu0 0
        %1730 = vmatmul.mubr.bf16.gmra.mxu0 %v1568
        %v1731 = vpop.f32.mrf.mxu0
        %v1732 = vadd.f32 0.0, %v1731
        %v1733 = vpop.f32.mrf.mxu0
        %v1734 = vpop.f32.mrf.mxu0
        %v1735 = vadd.f32 0.0, %v1734
        %v1736 = vpop.f32.mrf.mxu0
        %1737 = vmatprep.mubr.bf16.mxu0 0
        %1738 = vmatmul.mubr.bf16.gmra.mxu0 %v1569
        %v1739 = vpop.f32.mrf.mxu0
        %v1740 = vadd.f32 0.0, %v1739
        %v1741 = vpop.f32.mrf.mxu0
        %v1742 = vpop.f32.mrf.mxu0
        %v1743 = vadd.f32 0.0, %v1742
        %v1744 = vpop.f32.mrf.mxu0
        %1745 = vmatprep.mubr.bf16.mxu0 0
        %1746 = vmatmul.mubr.bf16.gmra.mxu0 %v1570
        %v1747 = vpop.f32.mrf.mxu0
        %v1748 = vadd.f32 0.0, %v1747
        %v1749 = vpop.f32.mrf.mxu0
        %v1750 = vpop.f32.mrf.mxu0
        %v1751 = vadd.f32 0.0, %v1750
        %v1752 = vpop.f32.mrf.mxu0
        %1753 = vmatprep.mubr.bf16.mxu0 0
        %1754 = vmatmul.mubr.bf16.gmra.mxu0 %v1571
        %v1755 = vpop.f32.mrf.mxu0
        %v1756 = vadd.f32 0.0, %v1755
        %v1757 = vpop.f32.mrf.mxu0
        %v1758 = vpop.f32.mrf.mxu0
        %v1759 = vadd.f32 0.0, %v1758
        %v1760 = vpop.f32.mrf.mxu0
        %1761 = vmatprep.mubr.bf16.mxu0 0
        %1762 = vmatmul.mubr.bf16.gmra.mxu0 %v1572
        %v1763 = vpop.f32.mrf.mxu0
        %v1764 = vadd.f32 0.0, %v1763
        %v1765 = vpop.f32.mrf.mxu0
        %v1766 = vpop.f32.mrf.mxu0
        %v1767 = vadd.f32 0.0, %v1766
        %v1768 = vpop.f32.mrf.mxu0
        %1769 = vmatprep.mubr.bf16.mxu0 0
        %1770 = vmatmul.mubr.bf16.gmra.mxu0 %v1573
        %v1771 = vpop.f32.mrf.mxu0
        %v1772 = vadd.f32 0.0, %v1771
        %v1773 = vpop.f32.mrf.mxu0
        %v1774 = vpop.f32.mrf.mxu0
        %v1775 = vadd.f32 0.0, %v1774
        %v1776 = vpop.f32.mrf.mxu0
        %1777 = vmatprep.mubr.bf16.mxu0 0
        %1778 = vmatmul.mubr.bf16.gmra.mxu0 %v1574
        %v1779 = vpop.f32.mrf.mxu0
        %v1780 = vadd.f32 0.0, %v1779
        %v1781 = vpop.f32.mrf.mxu0
        %v1782 = vpop.f32.mrf.mxu0
        %v1783 = vadd.f32 0.0, %v1782
        %v1784 = vpop.f32.mrf.mxu0
        %1785 = vmatprep.mubr.bf16.mxu0 0
        %1786 = vmatmul.mubr.bf16.gmra.mxu0 %v1575
        %v1787 = vpop.f32.mrf.mxu0
        %v1788 = vadd.f32 0.0, %v1787
        %v1789 = vpop.f32.mrf.mxu0
        %v1790 = vpop.f32.mrf.mxu0
        %v1791 = vadd.f32 0.0, %v1790
        %v1792 = vpop.f32.mrf.mxu0
        %1793 = vmatprep.mubr.bf16.mxu0 0
        %1794 = vmatmul.mubr.bf16.gmra.mxu0 %v1576
        %v1795 = vpop.f32.mrf.mxu0
        %v1796 = vadd.f32 0.0, %v1795
        %v1797 = vpop.f32.mrf.mxu0
        %v1798 = vpop.f32.mrf.mxu0
        %v1799 = vadd.f32 0.0, %v1798
        %v1800 = vpop.f32.mrf.mxu0
        %1801 = vdwg.mxu0
        %v1802 = vadd.f32 %v1223, %v1676
        %v1803 = vadd.f32 %v1226, %v1679
        %v1804 = vadd.f32 %v1231, %v1684
        %v1805 = vadd.f32 %v1234, %v1687
        %v1806 = vadd.f32 %v1239, %v1692
        %v1807 = vadd.f32 %v1242, %v1695
        %v1808 = vadd.f32 %v1247, %v1700
        %v1809 = vadd.f32 %v1250, %v1703
        %v1810 = vadd.f32 %v1255, %v1708
        %v1811 = vadd.f32 %v1258, %v1711
        %v1812 = vadd.f32 %v1263, %v1716
        %v1813 = vadd.f32 %v1266, %v1719
        %v1814 = vadd.f32 %v1271, %v1724
        %v1815 = vadd.f32 %v1274, %v1727
        %v1816 = vadd.f32 %v1279, %v1732
        %v1817 = vadd.f32 %v1282, %v1735
        %v1818 = vadd.f32 %v1287, %v1740
        %v1819 = vadd.f32 %v1290, %v1743
        %v1820 = vadd.f32 %v1295, %v1748
        %v1821 = vadd.f32 %v1298, %v1751
        %v1822 = vadd.f32 %v1303, %v1756
        %v1823 = vadd.f32 %v1306, %v1759
        %v1824 = vadd.f32 %v1311, %v1764
        %v1825 = vadd.f32 %v1314, %v1767
        %v1826 = vadd.f32 %v1319, %v1772
        %v1827 = vadd.f32 %v1322, %v1775
        %v1828 = vadd.f32 %v1327, %v1780
        %v1829 = vadd.f32 %v1330, %v1783
        %v1830 = vadd.f32 %v1335, %v1788
        %v1831 = vadd.f32 %v1338, %v1791
        %v1832 = vadd.f32 %v1343, %v1796
        %v1833 = vadd.f32 %v1346, %v1799
        %s1834 = scalar_lea.vmem %s298, 12
        %v1835 = vld [vmem:[%s1834] sm:$0xf]
        %v1836 = vld [vmem:[%s1834 + $0x4] sm:$0xf]
        %v1837 = vld [vmem:[%s1834 + $0xc] sm:$0xf]
        %v1838 = vld [vmem:[%s1834 + $0x10] sm:$0xf]
        %v1839 = vld [vmem:[%s1834 + $0x18] sm:$0xf]
        %v1840 = vld [vmem:[%s1834 + $0x1c] sm:$0xf]
        %v1841 = vld [vmem:[%s1834 + $0x24] sm:$0xf]
        %v1842 = vld [vmem:[%s1834 + $0x28] sm:$0xf]
        %v1843 = vld [vmem:[%s1834 + $0x30] sm:$0xf]
        %v1844 = vld [vmem:[%s1834 + $0x34] sm:$0xf]
        %v1845 = vld [vmem:[%s1834 + $0x3c] sm:$0xf]
        %v1846 = vld [vmem:[%s1834 + $0x40] sm:$0xf]
        %v1847 = vld [vmem:[%s1834 + $0x48] sm:$0xf]
        %v1848 = vld [vmem:[%s1834 + $0x4c] sm:$0xf]
        %v1849 = vld [vmem:[%s1834 + $0x54] sm:$0xf]
        %v1850 = vld [vmem:[%s1834 + $0x58] sm:$0xf]
        %v1851 = vld [vmem:[%s1834 + $0x60] sm:$0xf]
        %v1852 = vld [vmem:[%s1834 + $0x64] sm:$0xf]
        %v1853 = vld [vmem:[%s1834 + $0x6c] sm:$0xf]
        %v1854 = vld [vmem:[%s1834 + $0x70] sm:$0xf]
        %v1855 = vld [vmem:[%s1834 + $0x78] sm:$0xf]
        %v1856 = vld [vmem:[%s1834 + $0x7c] sm:$0xf]
        %v1857 = vld [vmem:[%s1834 + $0x84] sm:$0xf]
        %v1858 = vld [vmem:[%s1834 + $0x88] sm:$0xf]
        %v1859 = vld [vmem:[%s1834 + $0x90] sm:$0xf]
        %v1860 = vld [vmem:[%s1834 + $0x94] sm:$0xf]
        %v1861 = vld [vmem:[%s1834 + $0x9c] sm:$0xf]
        %v1862 = vld [vmem:[%s1834 + $0xa0] sm:$0xf]
        %v1863 = vld [vmem:[%s1834 + $0xa8] sm:$0xf]
        %v1864 = vld [vmem:[%s1834 + $0xac] sm:$0xf]
        %v1865 = vld [vmem:[%s1834 + $0xb4] sm:$0xf]
        %v1866 = vld [vmem:[%s1834 + $0xb8] sm:$0xf]
        %s1867 = scalar_lea.vmem %s2, 192
        %v1868 = vld [vmem:[%s1867] sm:$0xf]
        %v1869 = vld [vmem:[%s1867 + $0x4] sm:$0xf]
        %v1870 = vld [vmem:[%s1867 + $0x8] sm:$0xf]
        %v1871 = vld [vmem:[%s1867 + $0xc] sm:$0xf]
        %v1872 = vld [vmem:[%s1867 + $0x10] sm:$0xf]
        %v1873 = vld [vmem:[%s1867 + $0x14] sm:$0xf]
        %v1874 = vld [vmem:[%s1867 + $0x18] sm:$0xf]
        %v1875 = vld [vmem:[%s1867 + $0x1c] sm:$0xf]
        %v1876 = vld [vmem:[%s1867 + $0x20] sm:$0xf]
        %v1877 = vld [vmem:[%s1867 + $0x24] sm:$0xf]
        %v1878 = vld [vmem:[%s1867 + $0x28] sm:$0xf]
        %v1879 = vld [vmem:[%s1867 + $0x2c] sm:$0xf]
        %v1880 = vld [vmem:[%s1867 + $0x30] sm:$0xf]
        %v1881 = vld [vmem:[%s1867 + $0x34] sm:$0xf]
        %v1882 = vld [vmem:[%s1867 + $0x38] sm:$0xf]
        %v1883 = vld [vmem:[%s1867 + $0x3c] sm:$0xf]
        %v1916 = vunpack.c.l.b16 %v1835
        %v1917 = vunpack.c.l.b16 %v1836
        %v1918 = vunpack.c.l.b16 %v1837
        %v1919 = vunpack.c.l.b16 %v1838
        %v1920 = vunpack.c.l.b16 %v1839
        %v1921 = vunpack.c.l.b16 %v1840
        %v1922 = vunpack.c.l.b16 %v1841
        %v1923 = vunpack.c.l.b16 %v1842
        %v1924 = vunpack.c.l.b16 %v1843
        %v1925 = vunpack.c.l.b16 %v1844
        %v1926 = vunpack.c.l.b16 %v1845
        %v1927 = vunpack.c.l.b16 %v1846
        %v1928 = vunpack.c.l.b16 %v1847
        %v1929 = vunpack.c.l.b16 %v1848
        %v1930 = vunpack.c.l.b16 %v1849
        %v1931 = vunpack.c.l.b16 %v1850
        %v1932 = vunpack.c.l.b16 %v1851
        %v1933 = vunpack.c.l.b16 %v1852
        %v1934 = vunpack.c.l.b16 %v1853
        %v1935 = vunpack.c.l.b16 %v1854
        %v1936 = vunpack.c.l.b16 %v1855
        %v1937 = vunpack.c.l.b16 %v1856
        %v1938 = vunpack.c.l.b16 %v1857
        %v1939 = vunpack.c.l.b16 %v1858
        %v1940 = vunpack.c.l.b16 %v1859
        %v1941 = vunpack.c.l.b16 %v1860
        %v1942 = vunpack.c.l.b16 %v1861
        %v1943 = vunpack.c.l.b16 %v1862
        %v1944 = vunpack.c.l.b16 %v1863
        %v1945 = vunpack.c.l.b16 %v1864
        %v1946 = vunpack.c.l.b16 %v1865
        %v1947 = vunpack.c.l.b16 %v1866
        %v1948 = vpack.c.b16 %v1917, %v1916
        %v1949 = vpack.c.b16 %v1919, %v1918
        %v1950 = vpack.c.b16 %v1921, %v1920
        %v1951 = vpack.c.b16 %v1923, %v1922
        %v1952 = vpack.c.b16 %v1925, %v1924
        %v1953 = vpack.c.b16 %v1927, %v1926
        %v1954 = vpack.c.b16 %v1929, %v1928
        %v1955 = vpack.c.b16 %v1931, %v1930
        %v1956 = vpack.c.b16 %v1933, %v1932
        %v1957 = vpack.c.b16 %v1935, %v1934
        %v1958 = vpack.c.b16 %v1937, %v1936
        %v1959 = vpack.c.b16 %v1939, %v1938
        %v1960 = vpack.c.b16 %v1941, %v1940
        %v1961 = vpack.c.b16 %v1943, %v1942
        %v1962 = vpack.c.b16 %v1945, %v1944
        %v1963 = vpack.c.b16 %v1947, %v1946
        %v1996 = vunpack.c.l.b16 %v1868
        %v1997 = vunpack.c.l.b16 %v1869
        %v1998 = vunpack.c.l.b16 %v1870
        %v1999 = vunpack.c.l.b16 %v1871
        %v2000 = vunpack.c.l.b16 %v1872
        %v2001 = vunpack.c.l.b16 %v1873
        %v2002 = vunpack.c.l.b16 %v1874
        %v2003 = vunpack.c.l.b16 %v1875
        %v2004 = vunpack.c.l.b16 %v1876
        %v2005 = vunpack.c.l.b16 %v1877
        %v2006 = vunpack.c.l.b16 %v1878
        %v2007 = vunpack.c.l.b16 %v1879
        %v2008 = vunpack.c.l.b16 %v1880
        %v2009 = vunpack.c.l.b16 %v1881
        %v2010 = vunpack.c.l.b16 %v1882
        %v2011 = vunpack.c.l.b16 %v1883
        %v2012 = vpack.c.b16 %v1997, %v1996
        %v2013 = vpack.c.b16 %v1999, %v1998
        %v2014 = vpack.c.b16 %v2001, %v2000
        %v2015 = vpack.c.b16 %v2003, %v2002
        %v2016 = vpack.c.b16 %v2005, %v2004
        %v2017 = vpack.c.b16 %v2007, %v2006
        %v2018 = vpack.c.b16 %v2009, %v2008
        %v2019 = vpack.c.b16 %v2011, %v2010
        %2028 = vmatprep.subr.bf16.mxu0 0
        %2029 = vmatpush1.bf16.msra.mxu0 %v2019
        %2030 = vmatprep.subr.bf16.mxu0 0
        %2031 = vmatpush1.bf16.msra.mxu0 %v2018
        %2032 = vmatprep.subr.bf16.mxu0 0
        %2033 = vmatpush1.bf16.msra.mxu0 %v2017
        %2034 = vmatprep.subr.bf16.mxu0 0
        %2035 = vmatpush1.bf16.msra.mxu0 %v2016
        %2036 = vmatprep.subr.bf16.mxu0 0
        %2037 = vmatpush1.bf16.msra.mxu0 %v2015
        %2038 = vmatprep.subr.bf16.mxu0 0
        %2039 = vmatpush1.bf16.msra.mxu0 %v2014
        %2040 = vmatprep.subr.bf16.mxu0 0
        %2041 = vmatpush1.bf16.msra.mxu0 %v2013
        %2042 = vmatprep.subr.bf16.mxu0 0
        %2043 = vmatpush1.bf16.msra.mxu0 %v2012
        %2044 = vmatprep.subr.bf16.mxu0 0
        %2045 = vmatpush2.bf16.msra.mxu0 0
        %2046 = vmatprep.subr.bf16.mxu0 0
        %2047 = vmatpush2.bf16.msra.mxu0 0
        %2048 = vmatprep.subr.bf16.mxu0 0
        %2049 = vmatpush2.bf16.msra.mxu0 0
        %2050 = vmatprep.subr.bf16.mxu0 0
        %2051 = vmatpush2.bf16.msra.mxu0 0
        %2052 = vmatprep.subr.bf16.mxu0 0
        %2053 = vmatpush2.bf16.msra.mxu0 0
        %2054 = vmatprep.subr.bf16.mxu0 0
        %2055 = vmatpush2.bf16.msra.mxu0 0
        %2056 = vmatprep.subr.bf16.mxu0 0
        %2057 = vmatpush2.bf16.msra.mxu0 0
        %2058 = vmatprep.subr.bf16.mxu0 0
        %2059 = vmatpush2.bf16.msra.mxu0 0
        %2060 = vmatprep.mubr.bf16.mxu0 0
        %2061 = vmatmul.mubr.bf16.gmra.mxu0 %v1948
        %v2062 = vpop.f32.mrf.mxu0
        %v2063 = vadd.f32 0.0, %v2062
        %v2064 = vpop.f32.mrf.mxu0
        %v2065 = vpop.f32.mrf.mxu0
        %v2066 = vadd.f32 0.0, %v2065
        %v2067 = vpop.f32.mrf.mxu0
        %2068 = vmatprep.mubr.bf16.mxu0 0
        %2069 = vmatmul.mubr.bf16.gmra.mxu0 %v1949
        %v2070 = vpop.f32.mrf.mxu0
        %v2071 = vadd.f32 0.0, %v2070
        %v2072 = vpop.f32.mrf.mxu0
        %v2073 = vpop.f32.mrf.mxu0
        %v2074 = vadd.f32 0.0, %v2073
        %v2075 = vpop.f32.mrf.mxu0
        %2076 = vmatprep.mubr.bf16.mxu0 0
        %2077 = vmatmul.mubr.bf16.gmra.mxu0 %v1950
        %v2078 = vpop.f32.mrf.mxu0
        %v2079 = vadd.f32 0.0, %v2078
        %v2080 = vpop.f32.mrf.mxu0
        %v2081 = vpop.f32.mrf.mxu0
        %v2082 = vadd.f32 0.0, %v2081
        %v2083 = vpop.f32.mrf.mxu0
        %2084 = vmatprep.mubr.bf16.mxu0 0
        %2085 = vmatmul.mubr.bf16.gmra.mxu0 %v1951
        %v2086 = vpop.f32.mrf.mxu0
        %v2087 = vadd.f32 0.0, %v2086
        %v2088 = vpop.f32.mrf.mxu0
        %v2089 = vpop.f32.mrf.mxu0
        %v2090 = vadd.f32 0.0, %v2089
        %v2091 = vpop.f32.mrf.mxu0
        %2092 = vmatprep.mubr.bf16.mxu0 0
        %2093 = vmatmul.mubr.bf16.gmra.mxu0 %v1952
        %v2094 = vpop.f32.mrf.mxu0
        %v2095 = vadd.f32 0.0, %v2094
        %v2096 = vpop.f32.mrf.mxu0
        %v2097 = vpop.f32.mrf.mxu0
        %v2098 = vadd.f32 0.0, %v2097
        %v2099 = vpop.f32.mrf.mxu0
        %2100 = vmatprep.mubr.bf16.mxu0 0
        %2101 = vmatmul.mubr.bf16.gmra.mxu0 %v1953
        %v2102 = vpop.f32.mrf.mxu0
        %v2103 = vadd.f32 0.0, %v2102
        %v2104 = vpop.f32.mrf.mxu0
        %v2105 = vpop.f32.mrf.mxu0
        %v2106 = vadd.f32 0.0, %v2105
        %v2107 = vpop.f32.mrf.mxu0
        %2108 = vmatprep.mubr.bf16.mxu0 0
        %2109 = vmatmul.mubr.bf16.gmra.mxu0 %v1954
        %v2110 = vpop.f32.mrf.mxu0
        %v2111 = vadd.f32 0.0, %v2110
        %v2112 = vpop.f32.mrf.mxu0
        %v2113 = vpop.f32.mrf.mxu0
        %v2114 = vadd.f32 0.0, %v2113
        %v2115 = vpop.f32.mrf.mxu0
        %2116 = vmatprep.mubr.bf16.mxu0 0
        %2117 = vmatmul.mubr.bf16.gmra.mxu0 %v1955
        %v2118 = vpop.f32.mrf.mxu0
        %v2119 = vadd.f32 0.0, %v2118
        %v2120 = vpop.f32.mrf.mxu0
        %v2121 = vpop.f32.mrf.mxu0
        %v2122 = vadd.f32 0.0, %v2121
        %v2123 = vpop.f32.mrf.mxu0
        %2124 = vmatprep.mubr.bf16.mxu0 0
        %2125 = vmatmul.mubr.bf16.gmra.mxu0 %v1956
        %v2126 = vpop.f32.mrf.mxu0
        %v2127 = vadd.f32 0.0, %v2126
        %v2128 = vpop.f32.mrf.mxu0
        %v2129 = vpop.f32.mrf.mxu0
        %v2130 = vadd.f32 0.0, %v2129
        %v2131 = vpop.f32.mrf.mxu0
        %2132 = vmatprep.mubr.bf16.mxu0 0
        %2133 = vmatmul.mubr.bf16.gmra.mxu0 %v1957
        %v2134 = vpop.f32.mrf.mxu0
        %v2135 = vadd.f32 0.0, %v2134
        %v2136 = vpop.f32.mrf.mxu0
        %v2137 = vpop.f32.mrf.mxu0
        %v2138 = vadd.f32 0.0, %v2137
        %v2139 = vpop.f32.mrf.mxu0
        %2140 = vmatprep.mubr.bf16.mxu0 0
        %2141 = vmatmul.mubr.bf16.gmra.mxu0 %v1958
        %v2142 = vpop.f32.mrf.mxu0
        %v2143 = vadd.f32 0.0, %v2142
        %v2144 = vpop.f32.mrf.mxu0
        %v2145 = vpop.f32.mrf.mxu0
        %v2146 = vadd.f32 0.0, %v2145
        %v2147 = vpop.f32.mrf.mxu0
        %2148 = vmatprep.mubr.bf16.mxu0 0
        %2149 = vmatmul.mubr.bf16.gmra.mxu0 %v1959
        %v2150 = vpop.f32.mrf.mxu0
        %v2151 = vadd.f32 0.0, %v2150
        %v2152 = vpop.f32.mrf.mxu0
        %v2153 = vpop.f32.mrf.mxu0
        %v2154 = vadd.f32 0.0, %v2153
        %v2155 = vpop.f32.mrf.mxu0
        %2156 = vmatprep.mubr.bf16.mxu0 0
        %2157 = vmatmul.mubr.bf16.gmra.mxu0 %v1960
        %v2158 = vpop.f32.mrf.mxu0
        %v2159 = vadd.f32 0.0, %v2158
        %v2160 = vpop.f32.mrf.mxu0
        %v2161 = vpop.f32.mrf.mxu0
        %v2162 = vadd.f32 0.0, %v2161
        %v2163 = vpop.f32.mrf.mxu0
        %2164 = vmatprep.mubr.bf16.mxu0 0
        %2165 = vmatmul.mubr.bf16.gmra.mxu0 %v1961
        %v2166 = vpop.f32.mrf.mxu0
        %v2167 = vadd.f32 0.0, %v2166
        %v2168 = vpop.f32.mrf.mxu0
        %v2169 = vpop.f32.mrf.mxu0
        %v2170 = vadd.f32 0.0, %v2169
        %v2171 = vpop.f32.mrf.mxu0
        %2172 = vmatprep.mubr.bf16.mxu0 0
        %2173 = vmatmul.mubr.bf16.gmra.mxu0 %v1962
        %v2174 = vpop.f32.mrf.mxu0
        %v2175 = vadd.f32 0.0, %v2174
        %v2176 = vpop.f32.mrf.mxu0
        %v2177 = vpop.f32.mrf.mxu0
        %v2178 = vadd.f32 0.0, %v2177
        %v2179 = vpop.f32.mrf.mxu0
        %2180 = vmatprep.mubr.bf16.mxu0 0
        %2181 = vmatmul.mubr.bf16.gmra.mxu0 %v1963
        %v2182 = vpop.f32.mrf.mxu0
        %v2183 = vadd.f32 0.0, %v2182
        %v2184 = vpop.f32.mrf.mxu0
        %v2185 = vpop.f32.mrf.mxu0
        %v2186 = vadd.f32 0.0, %v2185
        %v2187 = vpop.f32.mrf.mxu0
        %2188 = vdwg.mxu0
        %v2189 = vadd.f32 %v1802, %v2063
        %v2190 = vadd.f32 %v1803, %v2066
        %v2191 = vadd.f32 %v1804, %v2071
        %v2192 = vadd.f32 %v1805, %v2074
        %v2193 = vadd.f32 %v1806, %v2079
        %v2194 = vadd.f32 %v1807, %v2082
        %v2195 = vadd.f32 %v1808, %v2087
        %v2196 = vadd.f32 %v1809, %v2090
        %v2197 = vadd.f32 %v1810, %v2095
        %v2198 = vadd.f32 %v1811, %v2098
        %v2199 = vadd.f32 %v1812, %v2103
        %v2200 = vadd.f32 %v1813, %v2106
        %v2201 = vadd.f32 %v1814, %v2111
        %v2202 = vadd.f32 %v1815, %v2114
        %v2203 = vadd.f32 %v1816, %v2119
        %v2204 = vadd.f32 %v1817, %v2122
        %v2205 = vadd.f32 %v1818, %v2127
        %v2206 = vadd.f32 %v1819, %v2130
        %v2207 = vadd.f32 %v1820, %v2135
        %v2208 = vadd.f32 %v1821, %v2138
        %v2209 = vadd.f32 %v1822, %v2143
        %v2210 = vadd.f32 %v1823, %v2146
        %v2211 = vadd.f32 %v1824, %v2151
        %v2212 = vadd.f32 %v1825, %v2154
        %v2213 = vadd.f32 %v1826, %v2159
        %v2214 = vadd.f32 %v1827, %v2162
        %v2215 = vadd.f32 %v1828, %v2167
        %v2216 = vadd.f32 %v1829, %v2170
        %v2217 = vadd.f32 %v1830, %v2175
        %v2218 = vadd.f32 %v1831, %v2178
        %v2219 = vadd.f32 %v1832, %v2183
        %v2220 = vadd.f32 %v1833, %v2186
        %v2221 = vld [vmem:[%s1834] sm:$0xf]
        %v2222 = vld [vmem:[%s1834 + $0x4] sm:$0xf]
        %v2223 = vld [vmem:[%s1834 + $0x8] sm:$0x1]
        %v2224 = vld [vmem:[%s1834 + $0xc] sm:$0xf]
        %v2225 = vld [vmem:[%s1834 + $0x10] sm:$0xf]
        %v2226 = vld [vmem:[%s1834 + $0x14] sm:$0x1]
        %v2227 = vld [vmem:[%s1834 + $0x18] sm:$0xf]
        %v2228 = vld [vmem:[%s1834 + $0x1c] sm:$0xf]
        %v2229 = vld [vmem:[%s1834 + $0x20] sm:$0x1]
        %v2230 = vld [vmem:[%s1834 + $0x24] sm:$0xf]
        %v2231 = vld [vmem:[%s1834 + $0x28] sm:$0xf]
        %v2232 = vld [vmem:[%s1834 + $0x2c] sm:$0x1]
        %v2233 = vld [vmem:[%s1834 + $0x30] sm:$0xf]
        %v2234 = vld [vmem:[%s1834 + $0x34] sm:$0xf]
        %v2235 = vld [vmem:[%s1834 + $0x38] sm:$0x1]
        %v2236 = vld [vmem:[%s1834 + $0x3c] sm:$0xf]
        %v2237 = vld [vmem:[%s1834 + $0x40] sm:$0xf]
        %v2238 = vld [vmem:[%s1834 + $0x44] sm:$0x1]
        %v2239 = vld [vmem:[%s1834 + $0x48] sm:$0xf]
        %v2240 = vld [vmem:[%s1834 + $0x4c] sm:$0xf]
        %v2241 = vld [vmem:[%s1834 + $0x50] sm:$0x1]
        %v2242 = vld [vmem:[%s1834 + $0x54] sm:$0xf]
        %v2243 = vld [vmem:[%s1834 + $0x58] sm:$0xf]
        %v2244 = vld [vmem:[%s1834 + $0x5c] sm:$0x1]
        %v2245 = vld [vmem:[%s1834 + $0x60] sm:$0xf]
        %v2246 = vld [vmem:[%s1834 + $0x64] sm:$0xf]
        %v2247 = vld [vmem:[%s1834 + $0x68] sm:$0x1]
        %v2248 = vld [vmem:[%s1834 + $0x6c] sm:$0xf]
        %v2249 = vld [vmem:[%s1834 + $0x70] sm:$0xf]
        %v2250 = vld [vmem:[%s1834 + $0x74] sm:$0x1]
        %v2251 = vld [vmem:[%s1834 + $0x78] sm:$0xf]
        %v2252 = vld [vmem:[%s1834 + $0x7c] sm:$0xf]
        %v2253 = vld [vmem:[%s1834 + $0x80] sm:$0x1]
        %v2254 = vld [vmem:[%s1834 + $0x84] sm:$0xf]
        %v2255 = vld [vmem:[%s1834 + $0x88] sm:$0xf]
        %v2256 = vld [vmem:[%s1834 + $0x8c] sm:$0x1]
        %v2257 = vld [vmem:[%s1834 + $0x90] sm:$0xf]
        %v2258 = vld [vmem:[%s1834 + $0x94] sm:$0xf]
        %v2259 = vld [vmem:[%s1834 + $0x98] sm:$0x1]
        %v2260 = vld [vmem:[%s1834 + $0x9c] sm:$0xf]
        %v2261 = vld [vmem:[%s1834 + $0xa0] sm:$0xf]
        %v2262 = vld [vmem:[%s1834 + $0xa4] sm:$0x1]
        %v2263 = vld [vmem:[%s1834 + $0xa8] sm:$0xf]
        %v2264 = vld [vmem:[%s1834 + $0xac] sm:$0xf]
        %v2265 = vld [vmem:[%s1834 + $0xb0] sm:$0x1]
        %v2266 = vld [vmem:[%s1834 + $0xb4] sm:$0xf]
        %v2267 = vld [vmem:[%s1834 + $0xb8] sm:$0xf]
        %v2268 = vld [vmem:[%s1834 + $0xbc] sm:$0x1]
        %v2270 = vshrl.u32 %v2221, 16
        %v2272 = vrot.slane %v2270, 4
        %v2273 = vshll.u32 %v2221, 16
        %v2275 = vrot.slane %v2273, 5
        %v2276 = vor.u32 %v2272, %v2275
        %v2277 = vrot.slane %v2276, 4
        %v2279 = vshll.u32 %v2222, 16
        %v2281 = vrot.slane %v2279, 5
        %v2282 = vsel %vm369, %v2277, %v2281
        %v2283 = vshrl.u32 %v2222, 16
        %v2285 = vrot.slane %v2283, 4
        %v2286 = vor.u32 %v2285, %v2281
        %v2287 = vrot.slane %v2286, 4
        %v2289 = vshll.u32 %v2223, 16
        %v2291 = vrot.slane %v2289, 5
        %v2292 = vsel %vm369, %v2287, %v2291
        %v2294 = vshrl.u32 %v2224, 16
        %v2296 = vrot.slane %v2294, 4
        %v2297 = vshll.u32 %v2224, 16
        %v2299 = vrot.slane %v2297, 5
        %v2300 = vor.u32 %v2296, %v2299
        %v2301 = vrot.slane %v2300, 4
        %v2303 = vshll.u32 %v2225, 16
        %v2305 = vrot.slane %v2303, 5
        %v2306 = vsel %vm369, %v2301, %v2305
        %v2307 = vshrl.u32 %v2225, 16
        %v2309 = vrot.slane %v2307, 4
        %v2310 = vor.u32 %v2309, %v2305
        %v2311 = vrot.slane %v2310, 4
        %v2313 = vshll.u32 %v2226, 16
        %v2315 = vrot.slane %v2313, 5
        %v2316 = vsel %vm369, %v2311, %v2315
        %v2318 = vshrl.u32 %v2227, 16
        %v2320 = vrot.slane %v2318, 4
        %v2321 = vshll.u32 %v2227, 16
        %v2323 = vrot.slane %v2321, 5
        %v2324 = vor.u32 %v2320, %v2323
        %v2325 = vrot.slane %v2324, 4
        %v2327 = vshll.u32 %v2228, 16
        %v2329 = vrot.slane %v2327, 5
        %v2330 = vsel %vm369, %v2325, %v2329
        %v2331 = vshrl.u32 %v2228, 16
        %v2333 = vrot.slane %v2331, 4
        %v2334 = vor.u32 %v2333, %v2329
        %v2335 = vrot.slane %v2334, 4
        %v2337 = vshll.u32 %v2229, 16
        %v2339 = vrot.slane %v2337, 5
        %v2340 = vsel %vm369, %v2335, %v2339
        %v2342 = vshrl.u32 %v2230, 16
        %v2344 = vrot.slane %v2342, 4
        %v2345 = vshll.u32 %v2230, 16
        %v2347 = vrot.slane %v2345, 5
        %v2348 = vor.u32 %v2344, %v2347
        %v2349 = vrot.slane %v2348, 4
        %v2351 = vshll.u32 %v2231, 16
        %v2353 = vrot.slane %v2351, 5
        %v2354 = vsel %vm369, %v2349, %v2353
        %v2355 = vshrl.u32 %v2231, 16
        %v2357 = vrot.slane %v2355, 4
        %v2358 = vor.u32 %v2357, %v2353
        %v2359 = vrot.slane %v2358, 4
        %v2361 = vshll.u32 %v2232, 16
        %v2363 = vrot.slane %v2361, 5
        %v2364 = vsel %vm369, %v2359, %v2363
        %v2366 = vshrl.u32 %v2233, 16
        %v2368 = vrot.slane %v2366, 4
        %v2369 = vshll.u32 %v2233, 16
        %v2371 = vrot.slane %v2369, 5
        %v2372 = vor.u32 %v2368, %v2371
        %v2373 = vrot.slane %v2372, 4
        %v2375 = vshll.u32 %v2234, 16
        %v2377 = vrot.slane %v2375, 5
        %v2378 = vsel %vm369, %v2373, %v2377
        %v2379 = vshrl.u32 %v2234, 16
        %v2381 = vrot.slane %v2379, 4
        %v2382 = vor.u32 %v2381, %v2377
        %v2383 = vrot.slane %v2382, 4
        %v2385 = vshll.u32 %v2235, 16
        %v2387 = vrot.slane %v2385, 5
        %v2388 = vsel %vm369, %v2383, %v2387
        %v2390 = vshrl.u32 %v2236, 16
        %v2392 = vrot.slane %v2390, 4
        %v2393 = vshll.u32 %v2236, 16
        %v2395 = vrot.slane %v2393, 5
        %v2396 = vor.u32 %v2392, %v2395
        %v2397 = vrot.slane %v2396, 4
        %v2399 = vshll.u32 %v2237, 16
        %v2401 = vrot.slane %v2399, 5
        %v2402 = vsel %vm369, %v2397, %v2401
        %v2403 = vshrl.u32 %v2237, 16
        %v2405 = vrot.slane %v2403, 4
        %v2406 = vor.u32 %v2405, %v2401
        %v2407 = vrot.slane %v2406, 4
        %v2409 = vshll.u32 %v2238, 16
        %v2411 = vrot.slane %v2409, 5
        %v2412 = vsel %vm369, %v2407, %v2411
        %v2414 = vshrl.u32 %v2239, 16
        %v2416 = vrot.slane %v2414, 4
        %v2417 = vshll.u32 %v2239, 16
        %v2419 = vrot.slane %v2417, 5
        %v2420 = vor.u32 %v2416, %v2419
        %v2421 = vrot.slane %v2420, 4
        %v2423 = vshll.u32 %v2240, 16
        %v2425 = vrot.slane %v2423, 5
        %v2426 = vsel %vm369, %v2421, %v2425
        %v2427 = vshrl.u32 %v2240, 16
        %v2429 = vrot.slane %v2427, 4
        %v2430 = vor.u32 %v2429, %v2425
        %v2431 = vrot.slane %v2430, 4
        %v2433 = vshll.u32 %v2241, 16
        %v2435 = vrot.slane %v2433, 5
        %v2436 = vsel %vm369, %v2431, %v2435
        %v2438 = vshrl.u32 %v2242, 16
        %v2440 = vrot.slane %v2438, 4
        %v2441 = vshll.u32 %v2242, 16
        %v2443 = vrot.slane %v2441, 5
        %v2444 = vor.u32 %v2440, %v2443
        %v2445 = vrot.slane %v2444, 4
        %v2447 = vshll.u32 %v2243, 16
        %v2449 = vrot.slane %v2447, 5
        %v2450 = vsel %vm369, %v2445, %v2449
        %v2451 = vshrl.u32 %v2243, 16
        %v2453 = vrot.slane %v2451, 4
        %v2454 = vor.u32 %v2453, %v2449
        %v2455 = vrot.slane %v2454, 4
        %v2457 = vshll.u32 %v2244, 16
        %v2459 = vrot.slane %v2457, 5
        %v2460 = vsel %vm369, %v2455, %v2459
        %v2462 = vshrl.u32 %v2245, 16
        %v2464 = vrot.slane %v2462, 4
        %v2465 = vshll.u32 %v2245, 16
        %v2467 = vrot.slane %v2465, 5
        %v2468 = vor.u32 %v2464, %v2467
        %v2469 = vrot.slane %v2468, 4
        %v2471 = vshll.u32 %v2246, 16
        %v2473 = vrot.slane %v2471, 5
        %v2474 = vsel %vm369, %v2469, %v2473
        %v2475 = vshrl.u32 %v2246, 16
        %v2477 = vrot.slane %v2475, 4
        %v2478 = vor.u32 %v2477, %v2473
        %v2479 = vrot.slane %v2478, 4
        %v2481 = vshll.u32 %v2247, 16
        %v2483 = vrot.slane %v2481, 5
        %v2484 = vsel %vm369, %v2479, %v2483
        %v2486 = vshrl.u32 %v2248, 16
        %v2488 = vrot.slane %v2486, 4
        %v2489 = vshll.u32 %v2248, 16
        %v2491 = vrot.slane %v2489, 5
        %v2492 = vor.u32 %v2488, %v2491
        %v2493 = vrot.slane %v2492, 4
        %v2495 = vshll.u32 %v2249, 16
        %v2497 = vrot.slane %v2495, 5
        %v2498 = vsel %vm369, %v2493, %v2497
        %v2499 = vshrl.u32 %v2249, 16
        %v2501 = vrot.slane %v2499, 4
        %v2502 = vor.u32 %v2501, %v2497
        %v2503 = vrot.slane %v2502, 4
        %v2505 = vshll.u32 %v2250, 16
        %v2507 = vrot.slane %v2505, 5
        %v2508 = vsel %vm369, %v2503, %v2507
        %v2510 = vshrl.u32 %v2251, 16
        %v2512 = vrot.slane %v2510, 4
        %v2513 = vshll.u32 %v2251, 16
        %v2515 = vrot.slane %v2513, 5
        %v2516 = vor.u32 %v2512, %v2515
        %v2517 = vrot.slane %v2516, 4
        %v2519 = vshll.u32 %v2252, 16
        %v2521 = vrot.slane %v2519, 5
        %v2522 = vsel %vm369, %v2517, %v2521
        %v2523 = vshrl.u32 %v2252, 16
        %v2525 = vrot.slane %v2523, 4
        %v2526 = vor.u32 %v2525, %v2521
        %v2527 = vrot.slane %v2526, 4
        %v2529 = vshll.u32 %v2253, 16
        %v2531 = vrot.slane %v2529, 5
        %v2532 = vsel %vm369, %v2527, %v2531
        %v2534 = vshrl.u32 %v2254, 16
        %v2536 = vrot.slane %v2534, 4
        %v2537 = vshll.u32 %v2254, 16
        %v2539 = vrot.slane %v2537, 5
        %v2540 = vor.u32 %v2536, %v2539
        %v2541 = vrot.slane %v2540, 4
        %v2543 = vshll.u32 %v2255, 16
        %v2545 = vrot.slane %v2543, 5
        %v2546 = vsel %vm369, %v2541, %v2545
        %v2547 = vshrl.u32 %v2255, 16
        %v2549 = vrot.slane %v2547, 4
        %v2550 = vor.u32 %v2549, %v2545
        %v2551 = vrot.slane %v2550, 4
        %v2553 = vshll.u32 %v2256, 16
        %v2555 = vrot.slane %v2553, 5
        %v2556 = vsel %vm369, %v2551, %v2555
        %v2558 = vshrl.u32 %v2257, 16
        %v2560 = vrot.slane %v2558, 4
        %v2561 = vshll.u32 %v2257, 16
        %v2563 = vrot.slane %v2561, 5
        %v2564 = vor.u32 %v2560, %v2563
        %v2565 = vrot.slane %v2564, 4
        %v2567 = vshll.u32 %v2258, 16
        %v2569 = vrot.slane %v2567, 5
        %v2570 = vsel %vm369, %v2565, %v2569
        %v2571 = vshrl.u32 %v2258, 16
        %v2573 = vrot.slane %v2571, 4
        %v2574 = vor.u32 %v2573, %v2569
        %v2575 = vrot.slane %v2574, 4
        %v2577 = vshll.u32 %v2259, 16
        %v2579 = vrot.slane %v2577, 5
        %v2580 = vsel %vm369, %v2575, %v2579
        %v2582 = vshrl.u32 %v2260, 16
        %v2584 = vrot.slane %v2582, 4
        %v2585 = vshll.u32 %v2260, 16
        %v2587 = vrot.slane %v2585, 5
        %v2588 = vor.u32 %v2584, %v2587
        %v2589 = vrot.slane %v2588, 4
        %v2591 = vshll.u32 %v2261, 16
        %v2593 = vrot.slane %v2591, 5
        %v2594 = vsel %vm369, %v2589, %v2593
        %v2595 = vshrl.u32 %v2261, 16
        %v2597 = vrot.slane %v2595, 4
        %v2598 = vor.u32 %v2597, %v2593
        %v2599 = vrot.slane %v2598, 4
        %v2601 = vshll.u32 %v2262, 16
        %v2603 = vrot.slane %v2601, 5
        %v2604 = vsel %vm369, %v2599, %v2603
        %v2606 = vshrl.u32 %v2263, 16
        %v2608 = vrot.slane %v2606, 4
        %v2609 = vshll.u32 %v2263, 16
        %v2611 = vrot.slane %v2609, 5
        %v2612 = vor.u32 %v2608, %v2611
        %v2613 = vrot.slane %v2612, 4
        %v2615 = vshll.u32 %v2264, 16
        %v2617 = vrot.slane %v2615, 5
        %v2618 = vsel %vm369, %v2613, %v2617
        %v2619 = vshrl.u32 %v2264, 16
        %v2621 = vrot.slane %v2619, 4
        %v2622 = vor.u32 %v2621, %v2617
        %v2623 = vrot.slane %v2622, 4
        %v2625 = vshll.u32 %v2265, 16
        %v2627 = vrot.slane %v2625, 5
        %v2628 = vsel %vm369, %v2623, %v2627
        %v2630 = vshrl.u32 %v2266, 16
        %v2632 = vrot.slane %v2630, 4
        %v2633 = vshll.u32 %v2266, 16
        %v2635 = vrot.slane %v2633, 5
        %v2636 = vor.u32 %v2632, %v2635
        %v2637 = vrot.slane %v2636, 4
        %v2639 = vshll.u32 %v2267, 16
        %v2641 = vrot.slane %v2639, 5
        %v2642 = vsel %vm369, %v2637, %v2641
        %v2643 = vshrl.u32 %v2267, 16
        %v2645 = vrot.slane %v2643, 4
        %v2646 = vor.u32 %v2645, %v2641
        %v2647 = vrot.slane %v2646, 4
        %v2649 = vshll.u32 %v2268, 16
        %v2651 = vrot.slane %v2649, 5
        %v2652 = vsel %vm369, %v2647, %v2651
        %s2653 = scalar_lea.vmem %s2, 256
        %v2654 = vld [vmem:[%s2653] sm:$0xf]
        %v2655 = vld [vmem:[%s2653 + $0x4] sm:$0xf]
        %v2656 = vld [vmem:[%s2653 + $0x8] sm:$0xf]
        %v2657 = vld [vmem:[%s2653 + $0xc] sm:$0xf]
        %v2658 = vld [vmem:[%s2653 + $0x10] sm:$0xf]
        %v2659 = vld [vmem:[%s2653 + $0x14] sm:$0xf]
        %v2660 = vld [vmem:[%s2653 + $0x18] sm:$0xf]
        %v2661 = vld [vmem:[%s2653 + $0x1c] sm:$0xf]
        %v2662 = vld [vmem:[%s2653 + $0x20] sm:$0xf]
        %v2663 = vld [vmem:[%s2653 + $0x24] sm:$0xf]
        %v2664 = vld [vmem:[%s2653 + $0x28] sm:$0xf]
        %v2665 = vld [vmem:[%s2653 + $0x2c] sm:$0xf]
        %v2666 = vld [vmem:[%s2653 + $0x30] sm:$0xf]
        %v2667 = vld [vmem:[%s2653 + $0x34] sm:$0xf]
        %v2668 = vld [vmem:[%s2653 + $0x38] sm:$0xf]
        %v2669 = vld [vmem:[%s2653 + $0x3c] sm:$0xf]
        %v2670 = vunpack.c.l.b16 %v2282
        %v2671 = vunpack.c.l.b16 %v2292
        %v2672 = vunpack.c.l.b16 %v2306
        %v2673 = vunpack.c.l.b16 %v2316
        %v2674 = vunpack.c.l.b16 %v2330
        %v2675 = vunpack.c.l.b16 %v2340
        %v2676 = vunpack.c.l.b16 %v2354
        %v2677 = vunpack.c.l.b16 %v2364
        %v2678 = vunpack.c.l.b16 %v2378
        %v2679 = vunpack.c.l.b16 %v2388
        %v2680 = vunpack.c.l.b16 %v2402
        %v2681 = vunpack.c.l.b16 %v2412
        %v2682 = vunpack.c.l.b16 %v2426
        %v2683 = vunpack.c.l.b16 %v2436
        %v2684 = vunpack.c.l.b16 %v2450
        %v2685 = vunpack.c.l.b16 %v2460
        %v2686 = vunpack.c.l.b16 %v2474
        %v2687 = vunpack.c.l.b16 %v2484
        %v2688 = vunpack.c.l.b16 %v2498
        %v2689 = vunpack.c.l.b16 %v2508
        %v2690 = vunpack.c.l.b16 %v2522
        %v2691 = vunpack.c.l.b16 %v2532
        %v2692 = vunpack.c.l.b16 %v2546
        %v2693 = vunpack.c.l.b16 %v2556
        %v2694 = vunpack.c.l.b16 %v2570
        %v2695 = vunpack.c.l.b16 %v2580
        %v2696 = vunpack.c.l.b16 %v2594
        %v2697 = vunpack.c.l.b16 %v2604
        %v2698 = vunpack.c.l.b16 %v2618
        %v2699 = vunpack.c.l.b16 %v2628
        %v2700 = vunpack.c.l.b16 %v2642
        %v2701 = vunpack.c.l.b16 %v2652
        %v2702 = vpack.c.b16 %v2671, %v2670
        %v2703 = vpack.c.b16 %v2673, %v2672
        %v2704 = vpack.c.b16 %v2675, %v2674
        %v2705 = vpack.c.b16 %v2677, %v2676
        %v2706 = vpack.c.b16 %v2679, %v2678
        %v2707 = vpack.c.b16 %v2681, %v2680
        %v2708 = vpack.c.b16 %v2683, %v2682
        %v2709 = vpack.c.b16 %v2685, %v2684
        %v2710 = vpack.c.b16 %v2687, %v2686
        %v2711 = vpack.c.b16 %v2689, %v2688
        %v2712 = vpack.c.b16 %v2691, %v2690
        %v2713 = vpack.c.b16 %v2693, %v2692
        %v2714 = vpack.c.b16 %v2695, %v2694
        %v2715 = vpack.c.b16 %v2697, %v2696
        %v2716 = vpack.c.b16 %v2699, %v2698
        %v2717 = vpack.c.b16 %v2701, %v2700
        %v2750 = vunpack.c.l.b16 %v2654
        %v2751 = vunpack.c.l.b16 %v2655
        %v2752 = vunpack.c.l.b16 %v2656
        %v2753 = vunpack.c.l.b16 %v2657
        %v2754 = vunpack.c.l.b16 %v2658
        %v2755 = vunpack.c.l.b16 %v2659
        %v2756 = vunpack.c.l.b16 %v2660
        %v2757 = vunpack.c.l.b16 %v2661
        %v2758 = vunpack.c.l.b16 %v2662
        %v2759 = vunpack.c.l.b16 %v2663
        %v2760 = vunpack.c.l.b16 %v2664
        %v2761 = vunpack.c.l.b16 %v2665
        %v2762 = vunpack.c.l.b16 %v2666
        %v2763 = vunpack.c.l.b16 %v2667
        %v2764 = vunpack.c.l.b16 %v2668
        %v2765 = vunpack.c.l.b16 %v2669
        %v2766 = vpack.c.b16 %v2751, %v2750
        %v2767 = vpack.c.b16 %v2753, %v2752
        %v2768 = vpack.c.b16 %v2755, %v2754
        %v2769 = vpack.c.b16 %v2757, %v2756
        %v2770 = vpack.c.b16 %v2759, %v2758
        %v2771 = vpack.c.b16 %v2761, %v2760
        %v2772 = vpack.c.b16 %v2763, %v2762
        %v2773 = vpack.c.b16 %v2765, %v2764
        %2782 = vmatprep.subr.bf16.mxu0 0
        %2783 = vmatpush1.bf16.msra.mxu0 %v2773
        %2784 = vmatprep.subr.bf16.mxu0 0
        %2785 = vmatpush1.bf16.msra.mxu0 %v2772
        %2786 = vmatprep.subr.bf16.mxu0 0
        %2787 = vmatpush1.bf16.msra.mxu0 %v2771
        %2788 = vmatprep.subr.bf16.mxu0 0
        %2789 = vmatpush1.bf16.msra.mxu0 %v2770
        %2790 = vmatprep.subr.bf16.mxu0 0
        %2791 = vmatpush1.bf16.msra.mxu0 %v2769
        %2792 = vmatprep.subr.bf16.mxu0 0
        %2793 = vmatpush1.bf16.msra.mxu0 %v2768
        %2794 = vmatprep.subr.bf16.mxu0 0
        %2795 = vmatpush1.bf16.msra.mxu0 %v2767
        %2796 = vmatprep.subr.bf16.mxu0 0
        %2797 = vmatpush1.bf16.msra.mxu0 %v2766
        %2798 = vmatprep.subr.bf16.mxu0 0
        %2799 = vmatpush2.bf16.msra.mxu0 0
        %2800 = vmatprep.subr.bf16.mxu0 0
        %2801 = vmatpush2.bf16.msra.mxu0 0
        %2802 = vmatprep.subr.bf16.mxu0 0
        %2803 = vmatpush2.bf16.msra.mxu0 0
        %2804 = vmatprep.subr.bf16.mxu0 0
        %2805 = vmatpush2.bf16.msra.mxu0 0
        %2806 = vmatprep.subr.bf16.mxu0 0
        %2807 = vmatpush2.bf16.msra.mxu0 0
        %2808 = vmatprep.subr.bf16.mxu0 0
        %2809 = vmatpush2.bf16.msra.mxu0 0
        %2810 = vmatprep.subr.bf16.mxu0 0
        %2811 = vmatpush2.bf16.msra.mxu0 0
        %2812 = vmatprep.subr.bf16.mxu0 0
        %2813 = vmatpush2.bf16.msra.mxu0 0
        %2814 = vmatprep.mubr.bf16.mxu0 0
        %2815 = vmatmul.mubr.bf16.gmra.mxu0 %v2702
        %v2816 = vpop.f32.mrf.mxu0
        %v2817 = vadd.f32 0.0, %v2816
        %v2818 = vpop.f32.mrf.mxu0
        %v2819 = vpop.f32.mrf.mxu0
        %v2820 = vadd.f32 0.0, %v2819
        %v2821 = vpop.f32.mrf.mxu0
        %2822 = vmatprep.mubr.bf16.mxu0 0
        %2823 = vmatmul.mubr.bf16.gmra.mxu0 %v2703
        %v2824 = vpop.f32.mrf.mxu0
        %v2825 = vadd.f32 0.0, %v2824
        %v2826 = vpop.f32.mrf.mxu0
        %v2827 = vpop.f32.mrf.mxu0
        %v2828 = vadd.f32 0.0, %v2827
        %v2829 = vpop.f32.mrf.mxu0
        %2830 = vmatprep.mubr.bf16.mxu0 0
        %2831 = vmatmul.mubr.bf16.gmra.mxu0 %v2704
        %v2832 = vpop.f32.mrf.mxu0
        %v2833 = vadd.f32 0.0, %v2832
        %v2834 = vpop.f32.mrf.mxu0
        %v2835 = vpop.f32.mrf.mxu0
        %v2836 = vadd.f32 0.0, %v2835
        %v2837 = vpop.f32.mrf.mxu0
        %2838 = vmatprep.mubr.bf16.mxu0 0
        %2839 = vmatmul.mubr.bf16.gmra.mxu0 %v2705
        %v2840 = vpop.f32.mrf.mxu0
        %v2841 = vadd.f32 0.0, %v2840
        %v2842 = vpop.f32.mrf.mxu0
        %v2843 = vpop.f32.mrf.mxu0
        %v2844 = vadd.f32 0.0, %v2843
        %v2845 = vpop.f32.mrf.mxu0
        %2846 = vmatprep.mubr.bf16.mxu0 0
        %2847 = vmatmul.mubr.bf16.gmra.mxu0 %v2706
        %v2848 = vpop.f32.mrf.mxu0
        %v2849 = vadd.f32 0.0, %v2848
        %v2850 = vpop.f32.mrf.mxu0
        %v2851 = vpop.f32.mrf.mxu0
        %v2852 = vadd.f32 0.0, %v2851
        %v2853 = vpop.f32.mrf.mxu0
        %2854 = vmatprep.mubr.bf16.mxu0 0
        %2855 = vmatmul.mubr.bf16.gmra.mxu0 %v2707
        %v2856 = vpop.f32.mrf.mxu0
        %v2857 = vadd.f32 0.0, %v2856
        %v2858 = vpop.f32.mrf.mxu0
        %v2859 = vpop.f32.mrf.mxu0
        %v2860 = vadd.f32 0.0, %v2859
        %v2861 = vpop.f32.mrf.mxu0
        %2862 = vmatprep.mubr.bf16.mxu0 0
        %2863 = vmatmul.mubr.bf16.gmra.mxu0 %v2708
        %v2864 = vpop.f32.mrf.mxu0
        %v2865 = vadd.f32 0.0, %v2864
        %v2866 = vpop.f32.mrf.mxu0
        %v2867 = vpop.f32.mrf.mxu0
        %v2868 = vadd.f32 0.0, %v2867
        %v2869 = vpop.f32.mrf.mxu0
        %2870 = vmatprep.mubr.bf16.mxu0 0
        %2871 = vmatmul.mubr.bf16.gmra.mxu0 %v2709
        %v2872 = vpop.f32.mrf.mxu0
        %v2873 = vadd.f32 0.0, %v2872
        %v2874 = vpop.f32.mrf.mxu0
        %v2875 = vpop.f32.mrf.mxu0
        %v2876 = vadd.f32 0.0, %v2875
        %v2877 = vpop.f32.mrf.mxu0
        %2878 = vmatprep.mubr.bf16.mxu0 0
        %2879 = vmatmul.mubr.bf16.gmra.mxu0 %v2710
        %v2880 = vpop.f32.mrf.mxu0
        %v2881 = vadd.f32 0.0, %v2880
        %v2882 = vpop.f32.mrf.mxu0
        %v2883 = vpop.f32.mrf.mxu0
        %v2884 = vadd.f32 0.0, %v2883
        %v2885 = vpop.f32.mrf.mxu0
        %2886 = vmatprep.mubr.bf16.mxu0 0
        %2887 = vmatmul.mubr.bf16.gmra.mxu0 %v2711
        %v2888 = vpop.f32.mrf.mxu0
        %v2889 = vadd.f32 0.0, %v2888
        %v2890 = vpop.f32.mrf.mxu0
        %v2891 = vpop.f32.mrf.mxu0
        %v2892 = vadd.f32 0.0, %v2891
        %v2893 = vpop.f32.mrf.mxu0
        %2894 = vmatprep.mubr.bf16.mxu0 0
        %2895 = vmatmul.mubr.bf16.gmra.mxu0 %v2712
        %v2896 = vpop.f32.mrf.mxu0
        %v2897 = vadd.f32 0.0, %v2896
        %v2898 = vpop.f32.mrf.mxu0
        %v2899 = vpop.f32.mrf.mxu0
        %v2900 = vadd.f32 0.0, %v2899
        %v2901 = vpop.f32.mrf.mxu0
        %2902 = vmatprep.mubr.bf16.mxu0 0
        %2903 = vmatmul.mubr.bf16.gmra.mxu0 %v2713
        %v2904 = vpop.f32.mrf.mxu0
        %v2905 = vadd.f32 0.0, %v2904
        %v2906 = vpop.f32.mrf.mxu0
        %v2907 = vpop.f32.mrf.mxu0
        %v2908 = vadd.f32 0.0, %v2907
        %v2909 = vpop.f32.mrf.mxu0
        %2910 = vmatprep.mubr.bf16.mxu0 0
        %2911 = vmatmul.mubr.bf16.gmra.mxu0 %v2714
        %v2912 = vpop.f32.mrf.mxu0
        %v2913 = vadd.f32 0.0, %v2912
        %v2914 = vpop.f32.mrf.mxu0
        %v2915 = vpop.f32.mrf.mxu0
        %v2916 = vadd.f32 0.0, %v2915
        %v2917 = vpop.f32.mrf.mxu0
        %2918 = vmatprep.mubr.bf16.mxu0 0
        %2919 = vmatmul.mubr.bf16.gmra.mxu0 %v2715
        %v2920 = vpop.f32.mrf.mxu0
        %v2921 = vadd.f32 0.0, %v2920
        %v2922 = vpop.f32.mrf.mxu0
        %v2923 = vpop.f32.mrf.mxu0
        %v2924 = vadd.f32 0.0, %v2923
        %v2925 = vpop.f32.mrf.mxu0
        %2926 = vmatprep.mubr.bf16.mxu0 0
        %2927 = vmatmul.mubr.bf16.gmra.mxu0 %v2716
        %v2928 = vpop.f32.mrf.mxu0
        %v2929 = vadd.f32 0.0, %v2928
        %v2930 = vpop.f32.mrf.mxu0
        %v2931 = vpop.f32.mrf.mxu0
        %v2932 = vadd.f32 0.0, %v2931
        %v2933 = vpop.f32.mrf.mxu0
        %2934 = vmatprep.mubr.bf16.mxu0 0
        %2935 = vmatmul.mubr.bf16.gmra.mxu0 %v2717
        %v2936 = vpop.f32.mrf.mxu0
        %v2937 = vadd.f32 0.0, %v2936
        %v2938 = vpop.f32.mrf.mxu0
        %v2939 = vpop.f32.mrf.mxu0
        %v2940 = vadd.f32 0.0, %v2939
        %v2941 = vpop.f32.mrf.mxu0
        %2942 = vdwg.mxu0
        %v2943 = vadd.f32 %v2189, %v2817
        %v2944 = vadd.f32 %v2190, %v2820
        %v2945 = vadd.f32 %v2191, %v2825
        %v2946 = vadd.f32 %v2192, %v2828
        %v2947 = vadd.f32 %v2193, %v2833
        %v2948 = vadd.f32 %v2194, %v2836
        %v2949 = vadd.f32 %v2195, %v2841
        %v2950 = vadd.f32 %v2196, %v2844
        %v2951 = vadd.f32 %v2197, %v2849
        %v2952 = vadd.f32 %v2198, %v2852
        %v2953 = vadd.f32 %v2199, %v2857
        %v2954 = vadd.f32 %v2200, %v2860
        %v2955 = vadd.f32 %v2201, %v2865
        %v2956 = vadd.f32 %v2202, %v2868
        %v2957 = vadd.f32 %v2203, %v2873
        %v2958 = vadd.f32 %v2204, %v2876
        %v2959 = vadd.f32 %v2205, %v2881
        %v2960 = vadd.f32 %v2206, %v2884
        %v2961 = vadd.f32 %v2207, %v2889
        %v2962 = vadd.f32 %v2208, %v2892
        %v2963 = vadd.f32 %v2209, %v2897
        %v2964 = vadd.f32 %v2210, %v2900
        %v2965 = vadd.f32 %v2211, %v2905
        %v2966 = vadd.f32 %v2212, %v2908
        %v2967 = vadd.f32 %v2213, %v2913
        %v2968 = vadd.f32 %v2214, %v2916
        %v2969 = vadd.f32 %v2215, %v2921
        %v2970 = vadd.f32 %v2216, %v2924
        %v2971 = vadd.f32 %v2217, %v2929
        %v2972 = vadd.f32 %v2218, %v2932
        %v2973 = vadd.f32 %v2219, %v2937
        %v2974 = vadd.f32 %v2220, %v2940
        %v2975 = vld [vmem:[%s1834] sm:$0xe]
        %v2976 = vld [vmem:[%s1834 + $0xc] sm:$0xe]
        %v2977 = vld [vmem:[%s1834 + $0x18] sm:$0xe]
        %v2978 = vld [vmem:[%s1834 + $0x24] sm:$0xe]
        %v2979 = vld [vmem:[%s1834 + $0x30] sm:$0xe]
        %v2980 = vld [vmem:[%s1834 + $0x3c] sm:$0xe]
        %v2981 = vld [vmem:[%s1834 + $0x48] sm:$0xe]
        %v2982 = vld [vmem:[%s1834 + $0x54] sm:$0xe]
        %v2983 = vld [vmem:[%s1834 + $0x60] sm:$0xe]
        %v2984 = vld [vmem:[%s1834 + $0x6c] sm:$0xe]
        %v2985 = vld [vmem:[%s1834 + $0x78] sm:$0xe]
        %v2986 = vld [vmem:[%s1834 + $0x84] sm:$0xe]
        %v2987 = vld [vmem:[%s1834 + $0x90] sm:$0xe]
        %v2988 = vld [vmem:[%s1834 + $0x9c] sm:$0xe]
        %v2989 = vld [vmem:[%s1834 + $0xa8] sm:$0xe]
        %v2990 = vld [vmem:[%s1834 + $0xb4] sm:$0xe]
        %v3039 = vrot.slane %v2975, 5
        %v3040 = vrot.slane %v3039, 4
        %v3041 = vrot.slane %v2222, 5
        %v3042 = vsel %vm1399, %v3040, %v3041
        %v3043 = vrot.slane %v3041, 4
        %v3044 = vrot.slane %v2223, 5
        %v3045 = vsel %vm1399, %v3043, %v3044
        %v3046 = vrot.slane %v2976, 5
        %v3047 = vrot.slane %v3046, 4
        %v3048 = vrot.slane %v2225, 5
        %v3049 = vsel %vm1399, %v3047, %v3048
        %v3050 = vrot.slane %v3048, 4
        %v3051 = vrot.slane %v2226, 5
        %v3052 = vsel %vm1399, %v3050, %v3051
        %v3053 = vrot.slane %v2977, 5
        %v3054 = vrot.slane %v3053, 4
        %v3055 = vrot.slane %v2228, 5
        %v3056 = vsel %vm1399, %v3054, %v3055
        %v3057 = vrot.slane %v3055, 4
        %v3058 = vrot.slane %v2229, 5
        %v3059 = vsel %vm1399, %v3057, %v3058
        %v3060 = vrot.slane %v2978, 5
        %v3061 = vrot.slane %v3060, 4
        %v3062 = vrot.slane %v2231, 5
        %v3063 = vsel %vm1399, %v3061, %v3062
        %v3064 = vrot.slane %v3062, 4
        %v3065 = vrot.slane %v2232, 5
        %v3066 = vsel %vm1399, %v3064, %v3065
        %v3067 = vrot.slane %v2979, 5
        %v3068 = vrot.slane %v3067, 4
        %v3069 = vrot.slane %v2234, 5
        %v3070 = vsel %vm1399, %v3068, %v3069
        %v3071 = vrot.slane %v3069, 4
        %v3072 = vrot.slane %v2235, 5
        %v3073 = vsel %vm1399, %v3071, %v3072
        %v3074 = vrot.slane %v2980, 5
        %v3075 = vrot.slane %v3074, 4
        %v3076 = vrot.slane %v2237, 5
        %v3077 = vsel %vm1399, %v3075, %v3076
        %v3078 = vrot.slane %v3076, 4
        %v3079 = vrot.slane %v2238, 5
        %v3080 = vsel %vm1399, %v3078, %v3079
        %v3081 = vrot.slane %v2981, 5
        %v3082 = vrot.slane %v3081, 4
        %v3083 = vrot.slane %v2240, 5
        %v3084 = vsel %vm1399, %v3082, %v3083
        %v3085 = vrot.slane %v3083, 4
        %v3086 = vrot.slane %v2241, 5
        %v3087 = vsel %vm1399, %v3085, %v3086
        %v3088 = vrot.slane %v2982, 5
        %v3089 = vrot.slane %v3088, 4
        %v3090 = vrot.slane %v2243, 5
        %v3091 = vsel %vm1399, %v3089, %v3090
        %v3092 = vrot.slane %v3090, 4
        %v3093 = vrot.slane %v2244, 5
        %v3094 = vsel %vm1399, %v3092, %v3093
        %v3095 = vrot.slane %v2983, 5
        %v3096 = vrot.slane %v3095, 4
        %v3097 = vrot.slane %v2246, 5
        %v3098 = vsel %vm1399, %v3096, %v3097
        %v3099 = vrot.slane %v3097, 4
        %v3100 = vrot.slane %v2247, 5
        %v3101 = vsel %vm1399, %v3099, %v3100
        %v3102 = vrot.slane %v2984, 5
        %v3103 = vrot.slane %v3102, 4
        %v3104 = vrot.slane %v2249, 5
        %v3105 = vsel %vm1399, %v3103, %v3104
        %v3106 = vrot.slane %v3104, 4
        %v3107 = vrot.slane %v2250, 5
        %v3108 = vsel %vm1399, %v3106, %v3107
        %v3109 = vrot.slane %v2985, 5
        %v3110 = vrot.slane %v3109, 4
        %v3111 = vrot.slane %v2252, 5
        %v3112 = vsel %vm1399, %v3110, %v3111
        %v3113 = vrot.slane %v3111, 4
        %v3114 = vrot.slane %v2253, 5
        %v3115 = vsel %vm1399, %v3113, %v3114
        %v3116 = vrot.slane %v2986, 5
        %v3117 = vrot.slane %v3116, 4
        %v3118 = vrot.slane %v2255, 5
        %v3119 = vsel %vm1399, %v3117, %v3118
        %v3120 = vrot.slane %v3118, 4
        %v3121 = vrot.slane %v2256, 5
        %v3122 = vsel %vm1399, %v3120, %v3121
        %v3123 = vrot.slane %v2987, 5
        %v3124 = vrot.slane %v3123, 4
        %v3125 = vrot.slane %v2258, 5
        %v3126 = vsel %vm1399, %v3124, %v3125
        %v3127 = vrot.slane %v3125, 4
        %v3128 = vrot.slane %v2259, 5
        %v3129 = vsel %vm1399, %v3127, %v3128
        %v3130 = vrot.slane %v2988, 5
        %v3131 = vrot.slane %v3130, 4
        %v3132 = vrot.slane %v2261, 5
        %v3133 = vsel %vm1399, %v3131, %v3132
        %v3134 = vrot.slane %v3132, 4
        %v3135 = vrot.slane %v2262, 5
        %v3136 = vsel %vm1399, %v3134, %v3135
        %v3137 = vrot.slane %v2989, 5
        %v3138 = vrot.slane %v3137, 4
        %v3139 = vrot.slane %v2264, 5
        %v3140 = vsel %vm1399, %v3138, %v3139
        %v3141 = vrot.slane %v3139, 4
        %v3142 = vrot.slane %v2265, 5
        %v3143 = vsel %vm1399, %v3141, %v3142
        %v3144 = vrot.slane %v2990, 5
        %v3145 = vrot.slane %v3144, 4
        %v3146 = vrot.slane %v2267, 5
        %v3147 = vsel %vm1399, %v3145, %v3146
        %v3148 = vrot.slane %v3146, 4
        %v3149 = vrot.slane %v2268, 5
        %v3150 = vsel %vm1399, %v3148, %v3149
        %s3151 = scalar_lea.vmem %s2, 320
        %v3152 = vld [vmem:[%s3151] sm:$0xf]
        %v3153 = vld [vmem:[%s3151 + $0x4] sm:$0xf]
        %v3154 = vld [vmem:[%s3151 + $0x8] sm:$0xf]
        %v3155 = vld [vmem:[%s3151 + $0xc] sm:$0xf]
        %v3156 = vld [vmem:[%s3151 + $0x10] sm:$0xf]
        %v3157 = vld [vmem:[%s3151 + $0x14] sm:$0xf]
        %v3158 = vld [vmem:[%s3151 + $0x18] sm:$0xf]
        %v3159 = vld [vmem:[%s3151 + $0x1c] sm:$0xf]
        %v3160 = vld [vmem:[%s3151 + $0x20] sm:$0xf]
        %v3161 = vld [vmem:[%s3151 + $0x24] sm:$0xf]
        %v3162 = vld [vmem:[%s3151 + $0x28] sm:$0xf]
        %v3163 = vld [vmem:[%s3151 + $0x2c] sm:$0xf]
        %v3164 = vld [vmem:[%s3151 + $0x30] sm:$0xf]
        %v3165 = vld [vmem:[%s3151 + $0x34] sm:$0xf]
        %v3166 = vld [vmem:[%s3151 + $0x38] sm:$0xf]
        %v3167 = vld [vmem:[%s3151 + $0x3c] sm:$0xf]
        %v3168 = vunpack.c.l.b16 %v3042
        %v3169 = vunpack.c.l.b16 %v3045
        %v3170 = vunpack.c.l.b16 %v3049
        %v3171 = vunpack.c.l.b16 %v3052
        %v3172 = vunpack.c.l.b16 %v3056
        %v3173 = vunpack.c.l.b16 %v3059
        %v3174 = vunpack.c.l.b16 %v3063
        %v3175 = vunpack.c.l.b16 %v3066
        %v3176 = vunpack.c.l.b16 %v3070
        %v3177 = vunpack.c.l.b16 %v3073
        %v3178 = vunpack.c.l.b16 %v3077
        %v3179 = vunpack.c.l.b16 %v3080
        %v3180 = vunpack.c.l.b16 %v3084
        %v3181 = vunpack.c.l.b16 %v3087
        %v3182 = vunpack.c.l.b16 %v3091
        %v3183 = vunpack.c.l.b16 %v3094
        %v3184 = vunpack.c.l.b16 %v3098
        %v3185 = vunpack.c.l.b16 %v3101
        %v3186 = vunpack.c.l.b16 %v3105
        %v3187 = vunpack.c.l.b16 %v3108
        %v3188 = vunpack.c.l.b16 %v3112
        %v3189 = vunpack.c.l.b16 %v3115
        %v3190 = vunpack.c.l.b16 %v3119
        %v3191 = vunpack.c.l.b16 %v3122
        %v3192 = vunpack.c.l.b16 %v3126
        %v3193 = vunpack.c.l.b16 %v3129
        %v3194 = vunpack.c.l.b16 %v3133
        %v3195 = vunpack.c.l.b16 %v3136
        %v3196 = vunpack.c.l.b16 %v3140
        %v3197 = vunpack.c.l.b16 %v3143
        %v3198 = vunpack.c.l.b16 %v3147
        %v3199 = vunpack.c.l.b16 %v3150
        %v3200 = vpack.c.b16 %v3169, %v3168
        %v3201 = vpack.c.b16 %v3171, %v3170
        %v3202 = vpack.c.b16 %v3173, %v3172
        %v3203 = vpack.c.b16 %v3175, %v3174
        %v3204 = vpack.c.b16 %v3177, %v3176
        %v3205 = vpack.c.b16 %v3179, %v3178
        %v3206 = vpack.c.b16 %v3181, %v3180
        %v3207 = vpack.c.b16 %v3183, %v3182
        %v3208 = vpack.c.b16 %v3185, %v3184
        %v3209 = vpack.c.b16 %v3187, %v3186
        %v3210 = vpack.c.b16 %v3189, %v3188
        %v3211 = vpack.c.b16 %v3191, %v3190
        %v3212 = vpack.c.b16 %v3193, %v3192
        %v3213 = vpack.c.b16 %v3195, %v3194
        %v3214 = vpack.c.b16 %v3197, %v3196
        %v3215 = vpack.c.b16 %v3199, %v3198
        %v3248 = vunpack.c.l.b16 %v3152
        %v3249 = vunpack.c.l.b16 %v3153
        %v3250 = vunpack.c.l.b16 %v3154
        %v3251 = vunpack.c.l.b16 %v3155
        %v3252 = vunpack.c.l.b16 %v3156
        %v3253 = vunpack.c.l.b16 %v3157
        %v3254 = vunpack.c.l.b16 %v3158
        %v3255 = vunpack.c.l.b16 %v3159
        %v3256 = vunpack.c.l.b16 %v3160
        %v3257 = vunpack.c.l.b16 %v3161
        %v3258 = vunpack.c.l.b16 %v3162
        %v3259 = vunpack.c.l.b16 %v3163
        %v3260 = vunpack.c.l.b16 %v3164
        %v3261 = vunpack.c.l.b16 %v3165
        %v3262 = vunpack.c.l.b16 %v3166
        %v3263 = vunpack.c.l.b16 %v3167
        %v3264 = vpack.c.b16 %v3249, %v3248
        %v3265 = vpack.c.b16 %v3251, %v3250
        %v3266 = vpack.c.b16 %v3253, %v3252
        %v3267 = vpack.c.b16 %v3255, %v3254
        %v3268 = vpack.c.b16 %v3257, %v3256
        %v3269 = vpack.c.b16 %v3259, %v3258
        %v3270 = vpack.c.b16 %v3261, %v3260
        %v3271 = vpack.c.b16 %v3263, %v3262
        %3280 = vmatprep.subr.bf16.mxu0 0
        %3281 = vmatpush1.bf16.msra.mxu0 %v3271
        %3282 = vmatprep.subr.bf16.mxu0 0
        %3283 = vmatpush1.bf16.msra.mxu0 %v3270
        %3284 = vmatprep.subr.bf16.mxu0 0
        %3285 = vmatpush1.bf16.msra.mxu0 %v3269
        %3286 = vmatprep.subr.bf16.mxu0 0
        %3287 = vmatpush1.bf16.msra.mxu0 %v3268
        %3288 = vmatprep.subr.bf16.mxu0 0
        %3289 = vmatpush1.bf16.msra.mxu0 %v3267
        %3290 = vmatprep.subr.bf16.mxu0 0
        %3291 = vmatpush1.bf16.msra.mxu0 %v3266
        %3292 = vmatprep.subr.bf16.mxu0 0
        %3293 = vmatpush1.bf16.msra.mxu0 %v3265
        %3294 = vmatprep.subr.bf16.mxu0 0
        %3295 = vmatpush1.bf16.msra.mxu0 %v3264
        %3296 = vmatprep.subr.bf16.mxu0 0
        %3297 = vmatpush2.bf16.msra.mxu0 0
        %3298 = vmatprep.subr.bf16.mxu0 0
        %3299 = vmatpush2.bf16.msra.mxu0 0
        %3300 = vmatprep.subr.bf16.mxu0 0
        %3301 = vmatpush2.bf16.msra.mxu0 0
        %3302 = vmatprep.subr.bf16.mxu0 0
        %3303 = vmatpush2.bf16.msra.mxu0 0
        %3304 = vmatprep.subr.bf16.mxu0 0
        %3305 = vmatpush2.bf16.msra.mxu0 0
        %3306 = vmatprep.subr.bf16.mxu0 0
        %3307 = vmatpush2.bf16.msra.mxu0 0
        %3308 = vmatprep.subr.bf16.mxu0 0
        %3309 = vmatpush2.bf16.msra.mxu0 0
        %3310 = vmatprep.subr.bf16.mxu0 0
        %3311 = vmatpush2.bf16.msra.mxu0 0
        %3312 = vmatprep.mubr.bf16.mxu0 0
        %3313 = vmatmul.mubr.bf16.gmra.mxu0 %v3200
        %v3314 = vpop.f32.mrf.mxu0
        %v3315 = vadd.f32 0.0, %v3314
        %v3316 = vpop.f32.mrf.mxu0
        %v3317 = vpop.f32.mrf.mxu0
        %v3318 = vadd.f32 0.0, %v3317
        %v3319 = vpop.f32.mrf.mxu0
        %3320 = vmatprep.mubr.bf16.mxu0 0
        %3321 = vmatmul.mubr.bf16.gmra.mxu0 %v3201
        %v3322 = vpop.f32.mrf.mxu0
        %v3323 = vadd.f32 0.0, %v3322
        %v3324 = vpop.f32.mrf.mxu0
        %v3325 = vpop.f32.mrf.mxu0
        %v3326 = vadd.f32 0.0, %v3325
        %v3327 = vpop.f32.mrf.mxu0
        %3328 = vmatprep.mubr.bf16.mxu0 0
        %3329 = vmatmul.mubr.bf16.gmra.mxu0 %v3202
        %v3330 = vpop.f32.mrf.mxu0
        %v3331 = vadd.f32 0.0, %v3330
        %v3332 = vpop.f32.mrf.mxu0
        %v3333 = vpop.f32.mrf.mxu0
        %v3334 = vadd.f32 0.0, %v3333
        %v3335 = vpop.f32.mrf.mxu0
        %3336 = vmatprep.mubr.bf16.mxu0 0
        %3337 = vmatmul.mubr.bf16.gmra.mxu0 %v3203
        %v3338 = vpop.f32.mrf.mxu0
        %v3339 = vadd.f32 0.0, %v3338
        %v3340 = vpop.f32.mrf.mxu0
        %v3341 = vpop.f32.mrf.mxu0
        %v3342 = vadd.f32 0.0, %v3341
        %v3343 = vpop.f32.mrf.mxu0
        %3344 = vmatprep.mubr.bf16.mxu0 0
        %3345 = vmatmul.mubr.bf16.gmra.mxu0 %v3204
        %v3346 = vpop.f32.mrf.mxu0
        %v3347 = vadd.f32 0.0, %v3346
        %v3348 = vpop.f32.mrf.mxu0
        %v3349 = vpop.f32.mrf.mxu0
        %v3350 = vadd.f32 0.0, %v3349
        %v3351 = vpop.f32.mrf.mxu0
        %3352 = vmatprep.mubr.bf16.mxu0 0
        %3353 = vmatmul.mubr.bf16.gmra.mxu0 %v3205
        %v3354 = vpop.f32.mrf.mxu0
        %v3355 = vadd.f32 0.0, %v3354
        %v3356 = vpop.f32.mrf.mxu0
        %v3357 = vpop.f32.mrf.mxu0
        %v3358 = vadd.f32 0.0, %v3357
        %v3359 = vpop.f32.mrf.mxu0
        %3360 = vmatprep.mubr.bf16.mxu0 0
        %3361 = vmatmul.mubr.bf16.gmra.mxu0 %v3206
        %v3362 = vpop.f32.mrf.mxu0
        %v3363 = vadd.f32 0.0, %v3362
        %v3364 = vpop.f32.mrf.mxu0
        %v3365 = vpop.f32.mrf.mxu0
        %v3366 = vadd.f32 0.0, %v3365
        %v3367 = vpop.f32.mrf.mxu0
        %3368 = vmatprep.mubr.bf16.mxu0 0
        %3369 = vmatmul.mubr.bf16.gmra.mxu0 %v3207
        %v3370 = vpop.f32.mrf.mxu0
        %v3371 = vadd.f32 0.0, %v3370
        %v3372 = vpop.f32.mrf.mxu0
        %v3373 = vpop.f32.mrf.mxu0
        %v3374 = vadd.f32 0.0, %v3373
        %v3375 = vpop.f32.mrf.mxu0
        %3376 = vmatprep.mubr.bf16.mxu0 0
        %3377 = vmatmul.mubr.bf16.gmra.mxu0 %v3208
        %v3378 = vpop.f32.mrf.mxu0
        %v3379 = vadd.f32 0.0, %v3378
        %v3380 = vpop.f32.mrf.mxu0
        %v3381 = vpop.f32.mrf.mxu0
        %v3382 = vadd.f32 0.0, %v3381
        %v3383 = vpop.f32.mrf.mxu0
        %3384 = vmatprep.mubr.bf16.mxu0 0
        %3385 = vmatmul.mubr.bf16.gmra.mxu0 %v3209
        %v3386 = vpop.f32.mrf.mxu0
        %v3387 = vadd.f32 0.0, %v3386
        %v3388 = vpop.f32.mrf.mxu0
        %v3389 = vpop.f32.mrf.mxu0
        %v3390 = vadd.f32 0.0, %v3389
        %v3391 = vpop.f32.mrf.mxu0
        %3392 = vmatprep.mubr.bf16.mxu0 0
        %3393 = vmatmul.mubr.bf16.gmra.mxu0 %v3210
        %v3394 = vpop.f32.mrf.mxu0
        %v3395 = vadd.f32 0.0, %v3394
        %v3396 = vpop.f32.mrf.mxu0
        %v3397 = vpop.f32.mrf.mxu0
        %v3398 = vadd.f32 0.0, %v3397
        %v3399 = vpop.f32.mrf.mxu0
        %3400 = vmatprep.mubr.bf16.mxu0 0
        %3401 = vmatmul.mubr.bf16.gmra.mxu0 %v3211
        %v3402 = vpop.f32.mrf.mxu0
        %v3403 = vadd.f32 0.0, %v3402
        %v3404 = vpop.f32.mrf.mxu0
        %v3405 = vpop.f32.mrf.mxu0
        %v3406 = vadd.f32 0.0, %v3405
        %v3407 = vpop.f32.mrf.mxu0
        %3408 = vmatprep.mubr.bf16.mxu0 0
        %3409 = vmatmul.mubr.bf16.gmra.mxu0 %v3212
        %v3410 = vpop.f32.mrf.mxu0
        %v3411 = vadd.f32 0.0, %v3410
        %v3412 = vpop.f32.mrf.mxu0
        %v3413 = vpop.f32.mrf.mxu0
        %v3414 = vadd.f32 0.0, %v3413
        %v3415 = vpop.f32.mrf.mxu0
        %3416 = vmatprep.mubr.bf16.mxu0 0
        %3417 = vmatmul.mubr.bf16.gmra.mxu0 %v3213
        %v3418 = vpop.f32.mrf.mxu0
        %v3419 = vadd.f32 0.0, %v3418
        %v3420 = vpop.f32.mrf.mxu0
        %v3421 = vpop.f32.mrf.mxu0
        %v3422 = vadd.f32 0.0, %v3421
        %v3423 = vpop.f32.mrf.mxu0
        %3424 = vmatprep.mubr.bf16.mxu0 0
        %3425 = vmatmul.mubr.bf16.gmra.mxu0 %v3214
        %v3426 = vpop.f32.mrf.mxu0
        %v3427 = vadd.f32 0.0, %v3426
        %v3428 = vpop.f32.mrf.mxu0
        %v3429 = vpop.f32.mrf.mxu0
        %v3430 = vadd.f32 0.0, %v3429
        %v3431 = vpop.f32.mrf.mxu0
        %3432 = vmatprep.mubr.bf16.mxu0 0
        %3433 = vmatmul.mubr.bf16.gmra.mxu0 %v3215
        %v3434 = vpop.f32.mrf.mxu0
        %v3435 = vadd.f32 0.0, %v3434
        %v3436 = vpop.f32.mrf.mxu0
        %v3437 = vpop.f32.mrf.mxu0
        %v3438 = vadd.f32 0.0, %v3437
        %v3439 = vpop.f32.mrf.mxu0
        %3440 = vdwg.mxu0
        %v3441 = vadd.f32 %v2943, %v3315
        %v3442 = vadd.f32 %v2944, %v3318
        %v3443 = vadd.f32 %v2945, %v3323
        %v3444 = vadd.f32 %v2946, %v3326
        %v3445 = vadd.f32 %v2947, %v3331
        %v3446 = vadd.f32 %v2948, %v3334
        %v3447 = vadd.f32 %v2949, %v3339
        %v3448 = vadd.f32 %v2950, %v3342
        %v3449 = vadd.f32 %v2951, %v3347
        %v3450 = vadd.f32 %v2952, %v3350
        %v3451 = vadd.f32 %v2953, %v3355
        %v3452 = vadd.f32 %v2954, %v3358
        %v3453 = vadd.f32 %v2955, %v3363
        %v3454 = vadd.f32 %v2956, %v3366
        %v3455 = vadd.f32 %v2957, %v3371
        %v3456 = vadd.f32 %v2958, %v3374
        %v3457 = vadd.f32 %v2959, %v3379
        %v3458 = vadd.f32 %v2960, %v3382
        %v3459 = vadd.f32 %v2961, %v3387
        %v3460 = vadd.f32 %v2962, %v3390
        %v3461 = vadd.f32 %v2963, %v3395
        %v3462 = vadd.f32 %v2964, %v3398
        %v3463 = vadd.f32 %v2965, %v3403
        %v3464 = vadd.f32 %v2966, %v3406
        %v3465 = vadd.f32 %v2967, %v3411
        %v3466 = vadd.f32 %v2968, %v3414
        %v3467 = vadd.f32 %v2969, %v3419
        %v3468 = vadd.f32 %v2970, %v3422
        %v3469 = vadd.f32 %v2971, %v3427
        %v3470 = vadd.f32 %v2972, %v3430
        %v3471 = vadd.f32 %v2973, %v3435
        %v3472 = vadd.f32 %v2974, %v3438
        %s3473 = scalar_lea.vmem %s298, 24
        %v3474 = vld [vmem:[%s3473] sm:$0xf]
        %v3475 = vld [vmem:[%s3473 + $0x4] sm:$0xf]
        %v3476 = vld [vmem:[%s3473 + $0xc] sm:$0xf]
        %v3477 = vld [vmem:[%s3473 + $0x10] sm:$0xf]
        %v3478 = vld [vmem:[%s3473 + $0x18] sm:$0xf]
        %v3479 = vld [vmem:[%s3473 + $0x1c] sm:$0xf]
        %v3480 = vld [vmem:[%s3473 + $0x24] sm:$0xf]
        %v3481 = vld [vmem:[%s3473 + $0x28] sm:$0xf]
        %v3482 = vld [vmem:[%s3473 + $0x30] sm:$0xf]
        %v3483 = vld [vmem:[%s3473 + $0x34] sm:$0xf]
        %v3484 = vld [vmem:[%s3473 + $0x3c] sm:$0xf]
        %v3485 = vld [vmem:[%s3473 + $0x40] sm:$0xf]
        %v3486 = vld [vmem:[%s3473 + $0x48] sm:$0xf]
        %v3487 = vld [vmem:[%s3473 + $0x4c] sm:$0xf]
        %v3488 = vld [vmem:[%s3473 + $0x54] sm:$0xf]
        %v3489 = vld [vmem:[%s3473 + $0x58] sm:$0xf]
        %v3490 = vld [vmem:[%s3473 + $0x60] sm:$0xf]
        %v3491 = vld [vmem:[%s3473 + $0x64] sm:$0xf]
        %v3492 = vld [vmem:[%s3473 + $0x6c] sm:$0xf]
        %v3493 = vld [vmem:[%s3473 + $0x70] sm:$0xf]
        %v3494 = vld [vmem:[%s3473 + $0x78] sm:$0xf]
        %v3495 = vld [vmem:[%s3473 + $0x7c] sm:$0xf]
        %v3496 = vld [vmem:[%s3473 + $0x84] sm:$0xf]
        %v3497 = vld [vmem:[%s3473 + $0x88] sm:$0xf]
        %v3498 = vld [vmem:[%s3473 + $0x90] sm:$0xf]
        %v3499 = vld [vmem:[%s3473 + $0x94] sm:$0xf]
        %v3500 = vld [vmem:[%s3473 + $0x9c] sm:$0xf]
        %v3501 = vld [vmem:[%s3473 + $0xa0] sm:$0xf]
        %v3502 = vld [vmem:[%s3473 + $0xa8] sm:$0xf]
        %v3503 = vld [vmem:[%s3473 + $0xac] sm:$0xf]
        %v3504 = vld [vmem:[%s3473 + $0xb4] sm:$0xf]
        %v3505 = vld [vmem:[%s3473 + $0xb8] sm:$0xf]
        %s3506 = scalar_lea.vmem %s2, 384
        %v3507 = vld [vmem:[%s3506] sm:$0xf]
        %v3508 = vld [vmem:[%s3506 + $0x4] sm:$0xf]
        %v3509 = vld [vmem:[%s3506 + $0x8] sm:$0xf]
        %v3510 = vld [vmem:[%s3506 + $0xc] sm:$0xf]
        %v3511 = vld [vmem:[%s3506 + $0x10] sm:$0xf]
        %v3512 = vld [vmem:[%s3506 + $0x14] sm:$0xf]
        %v3513 = vld [vmem:[%s3506 + $0x18] sm:$0xf]
        %v3514 = vld [vmem:[%s3506 + $0x1c] sm:$0xf]
        %v3515 = vld [vmem:[%s3506 + $0x20] sm:$0xf]
        %v3516 = vld [vmem:[%s3506 + $0x24] sm:$0xf]
        %v3517 = vld [vmem:[%s3506 + $0x28] sm:$0xf]
        %v3518 = vld [vmem:[%s3506 + $0x2c] sm:$0xf]
        %v3519 = vld [vmem:[%s3506 + $0x30] sm:$0xf]
        %v3520 = vld [vmem:[%s3506 + $0x34] sm:$0xf]
        %v3521 = vld [vmem:[%s3506 + $0x38] sm:$0xf]
        %v3522 = vld [vmem:[%s3506 + $0x3c] sm:$0xf]
        %v3555 = vunpack.c.l.b16 %v3474
        %v3556 = vunpack.c.l.b16 %v3475
        %v3557 = vunpack.c.l.b16 %v3476
        %v3558 = vunpack.c.l.b16 %v3477
        %v3559 = vunpack.c.l.b16 %v3478
        %v3560 = vunpack.c.l.b16 %v3479
        %v3561 = vunpack.c.l.b16 %v3480
        %v3562 = vunpack.c.l.b16 %v3481
        %v3563 = vunpack.c.l.b16 %v3482
        %v3564 = vunpack.c.l.b16 %v3483
        %v3565 = vunpack.c.l.b16 %v3484
        %v3566 = vunpack.c.l.b16 %v3485
        %v3567 = vunpack.c.l.b16 %v3486
        %v3568 = vunpack.c.l.b16 %v3487
        %v3569 = vunpack.c.l.b16 %v3488
        %v3570 = vunpack.c.l.b16 %v3489
        %v3571 = vunpack.c.l.b16 %v3490
        %v3572 = vunpack.c.l.b16 %v3491
        %v3573 = vunpack.c.l.b16 %v3492
        %v3574 = vunpack.c.l.b16 %v3493
        %v3575 = vunpack.c.l.b16 %v3494
        %v3576 = vunpack.c.l.b16 %v3495
        %v3577 = vunpack.c.l.b16 %v3496
        %v3578 = vunpack.c.l.b16 %v3497
        %v3579 = vunpack.c.l.b16 %v3498
        %v3580 = vunpack.c.l.b16 %v3499
        %v3581 = vunpack.c.l.b16 %v3500
        %v3582 = vunpack.c.l.b16 %v3501
        %v3583 = vunpack.c.l.b16 %v3502
        %v3584 = vunpack.c.l.b16 %v3503
        %v3585 = vunpack.c.l.b16 %v3504
        %v3586 = vunpack.c.l.b16 %v3505
        %v3587 = vpack.c.b16 %v3556, %v3555
        %v3588 = vpack.c.b16 %v3558, %v3557
        %v3589 = vpack.c.b16 %v3560, %v3559
        %v3590 = vpack.c.b16 %v3562, %v3561
        %v3591 = vpack.c.b16 %v3564, %v3563
        %v3592 = vpack.c.b16 %v3566, %v3565
        %v3593 = vpack.c.b16 %v3568, %v3567
        %v3594 = vpack.c.b16 %v3570, %v3569
        %v3595 = vpack.c.b16 %v3572, %v3571
        %v3596 = vpack.c.b16 %v3574, %v3573
        %v3597 = vpack.c.b16 %v3576, %v3575
        %v3598 = vpack.c.b16 %v3578, %v3577
        %v3599 = vpack.c.b16 %v3580, %v3579
        %v3600 = vpack.c.b16 %v3582, %v3581
        %v3601 = vpack.c.b16 %v3584, %v3583
        %v3602 = vpack.c.b16 %v3586, %v3585
        %v3635 = vunpack.c.l.b16 %v3507
        %v3636 = vunpack.c.l.b16 %v3508
        %v3637 = vunpack.c.l.b16 %v3509
        %v3638 = vunpack.c.l.b16 %v3510
        %v3639 = vunpack.c.l.b16 %v3511
        %v3640 = vunpack.c.l.b16 %v3512
        %v3641 = vunpack.c.l.b16 %v3513
        %v3642 = vunpack.c.l.b16 %v3514
        %v3643 = vunpack.c.l.b16 %v3515
        %v3644 = vunpack.c.l.b16 %v3516
        %v3645 = vunpack.c.l.b16 %v3517
        %v3646 = vunpack.c.l.b16 %v3518
        %v3647 = vunpack.c.l.b16 %v3519
        %v3648 = vunpack.c.l.b16 %v3520
        %v3649 = vunpack.c.l.b16 %v3521
        %v3650 = vunpack.c.l.b16 %v3522
        %v3651 = vpack.c.b16 %v3636, %v3635
        %v3652 = vpack.c.b16 %v3638, %v3637
        %v3653 = vpack.c.b16 %v3640, %v3639
        %v3654 = vpack.c.b16 %v3642, %v3641
        %v3655 = vpack.c.b16 %v3644, %v3643
        %v3656 = vpack.c.b16 %v3646, %v3645
        %v3657 = vpack.c.b16 %v3648, %v3647
        %v3658 = vpack.c.b16 %v3650, %v3649
        %3667 = vmatprep.subr.bf16.mxu0 0
        %3668 = vmatpush1.bf16.msra.mxu0 %v3658
        %3669 = vmatprep.subr.bf16.mxu0 0
        %3670 = vmatpush1.bf16.msra.mxu0 %v3657
        %3671 = vmatprep.subr.bf16.mxu0 0
        %3672 = vmatpush1.bf16.msra.mxu0 %v3656
        %3673 = vmatprep.subr.bf16.mxu0 0
        %3674 = vmatpush1.bf16.msra.mxu0 %v3655
        %3675 = vmatprep.subr.bf16.mxu0 0
        %3676 = vmatpush1.bf16.msra.mxu0 %v3654
        %3677 = vmatprep.subr.bf16.mxu0 0
        %3678 = vmatpush1.bf16.msra.mxu0 %v3653
        %3679 = vmatprep.subr.bf16.mxu0 0
        %3680 = vmatpush1.bf16.msra.mxu0 %v3652
        %3681 = vmatprep.subr.bf16.mxu0 0
        %3682 = vmatpush1.bf16.msra.mxu0 %v3651
        %3683 = vmatprep.subr.bf16.mxu0 0
        %3684 = vmatpush2.bf16.msra.mxu0 0
        %3685 = vmatprep.subr.bf16.mxu0 0
        %3686 = vmatpush2.bf16.msra.mxu0 0
        %3687 = vmatprep.subr.bf16.mxu0 0
        %3688 = vmatpush2.bf16.msra.mxu0 0
        %3689 = vmatprep.subr.bf16.mxu0 0
        %3690 = vmatpush2.bf16.msra.mxu0 0
        %3691 = vmatprep.subr.bf16.mxu0 0
        %3692 = vmatpush2.bf16.msra.mxu0 0
        %3693 = vmatprep.subr.bf16.mxu0 0
        %3694 = vmatpush2.bf16.msra.mxu0 0
        %3695 = vmatprep.subr.bf16.mxu0 0
        %3696 = vmatpush2.bf16.msra.mxu0 0
        %3697 = vmatprep.subr.bf16.mxu0 0
        %3698 = vmatpush2.bf16.msra.mxu0 0
        %3699 = vmatprep.mubr.bf16.mxu0 0
        %3700 = vmatmul.mubr.bf16.gmra.mxu0 %v3587
        %v3701 = vpop.f32.mrf.mxu0
        %v3702 = vadd.f32 0.0, %v3701
        %v3703 = vpop.f32.mrf.mxu0
        %v3704 = vpop.f32.mrf.mxu0
        %v3705 = vadd.f32 0.0, %v3704
        %v3706 = vpop.f32.mrf.mxu0
        %3707 = vmatprep.mubr.bf16.mxu0 0
        %3708 = vmatmul.mubr.bf16.gmra.mxu0 %v3588
        %v3709 = vpop.f32.mrf.mxu0
        %v3710 = vadd.f32 0.0, %v3709
        %v3711 = vpop.f32.mrf.mxu0
        %v3712 = vpop.f32.mrf.mxu0
        %v3713 = vadd.f32 0.0, %v3712
        %v3714 = vpop.f32.mrf.mxu0
        %3715 = vmatprep.mubr.bf16.mxu0 0
        %3716 = vmatmul.mubr.bf16.gmra.mxu0 %v3589
        %v3717 = vpop.f32.mrf.mxu0
        %v3718 = vadd.f32 0.0, %v3717
        %v3719 = vpop.f32.mrf.mxu0
        %v3720 = vpop.f32.mrf.mxu0
        %v3721 = vadd.f32 0.0, %v3720
        %v3722 = vpop.f32.mrf.mxu0
        %3723 = vmatprep.mubr.bf16.mxu0 0
        %3724 = vmatmul.mubr.bf16.gmra.mxu0 %v3590
        %v3725 = vpop.f32.mrf.mxu0
        %v3726 = vadd.f32 0.0, %v3725
        %v3727 = vpop.f32.mrf.mxu0
        %v3728 = vpop.f32.mrf.mxu0
        %v3729 = vadd.f32 0.0, %v3728
        %v3730 = vpop.f32.mrf.mxu0
        %3731 = vmatprep.mubr.bf16.mxu0 0
        %3732 = vmatmul.mubr.bf16.gmra.mxu0 %v3591
        %v3733 = vpop.f32.mrf.mxu0
        %v3734 = vadd.f32 0.0, %v3733
        %v3735 = vpop.f32.mrf.mxu0
        %v3736 = vpop.f32.mrf.mxu0
        %v3737 = vadd.f32 0.0, %v3736
        %v3738 = vpop.f32.mrf.mxu0
        %3739 = vmatprep.mubr.bf16.mxu0 0
        %3740 = vmatmul.mubr.bf16.gmra.mxu0 %v3592
        %v3741 = vpop.f32.mrf.mxu0
        %v3742 = vadd.f32 0.0, %v3741
        %v3743 = vpop.f32.mrf.mxu0
        %v3744 = vpop.f32.mrf.mxu0
        %v3745 = vadd.f32 0.0, %v3744
        %v3746 = vpop.f32.mrf.mxu0
        %3747 = vmatprep.mubr.bf16.mxu0 0
        %3748 = vmatmul.mubr.bf16.gmra.mxu0 %v3593
        %v3749 = vpop.f32.mrf.mxu0
        %v3750 = vadd.f32 0.0, %v3749
        %v3751 = vpop.f32.mrf.mxu0
        %v3752 = vpop.f32.mrf.mxu0
        %v3753 = vadd.f32 0.0, %v3752
        %v3754 = vpop.f32.mrf.mxu0
        %3755 = vmatprep.mubr.bf16.mxu0 0
        %3756 = vmatmul.mubr.bf16.gmra.mxu0 %v3594
        %v3757 = vpop.f32.mrf.mxu0
        %v3758 = vadd.f32 0.0, %v3757
        %v3759 = vpop.f32.mrf.mxu0
        %v3760 = vpop.f32.mrf.mxu0
        %v3761 = vadd.f32 0.0, %v3760
        %v3762 = vpop.f32.mrf.mxu0
        %3763 = vmatprep.mubr.bf16.mxu0 0
        %3764 = vmatmul.mubr.bf16.gmra.mxu0 %v3595
        %v3765 = vpop.f32.mrf.mxu0
        %v3766 = vadd.f32 0.0, %v3765
        %v3767 = vpop.f32.mrf.mxu0
        %v3768 = vpop.f32.mrf.mxu0
        %v3769 = vadd.f32 0.0, %v3768
        %v3770 = vpop.f32.mrf.mxu0
        %3771 = vmatprep.mubr.bf16.mxu0 0
        %3772 = vmatmul.mubr.bf16.gmra.mxu0 %v3596
        %v3773 = vpop.f32.mrf.mxu0
        %v3774 = vadd.f32 0.0, %v3773
        %v3775 = vpop.f32.mrf.mxu0
        %v3776 = vpop.f32.mrf.mxu0
        %v3777 = vadd.f32 0.0, %v3776
        %v3778 = vpop.f32.mrf.mxu0
        %3779 = vmatprep.mubr.bf16.mxu0 0
        %3780 = vmatmul.mubr.bf16.gmra.mxu0 %v3597
        %v3781 = vpop.f32.mrf.mxu0
        %v3782 = vadd.f32 0.0, %v3781
        %v3783 = vpop.f32.mrf.mxu0
        %v3784 = vpop.f32.mrf.mxu0
        %v3785 = vadd.f32 0.0, %v3784
        %v3786 = vpop.f32.mrf.mxu0
        %3787 = vmatprep.mubr.bf16.mxu0 0
        %3788 = vmatmul.mubr.bf16.gmra.mxu0 %v3598
        %v3789 = vpop.f32.mrf.mxu0
        %v3790 = vadd.f32 0.0, %v3789
        %v3791 = vpop.f32.mrf.mxu0
        %v3792 = vpop.f32.mrf.mxu0
        %v3793 = vadd.f32 0.0, %v3792
        %v3794 = vpop.f32.mrf.mxu0
        %3795 = vmatprep.mubr.bf16.mxu0 0
        %3796 = vmatmul.mubr.bf16.gmra.mxu0 %v3599
        %v3797 = vpop.f32.mrf.mxu0
        %v3798 = vadd.f32 0.0, %v3797
        %v3799 = vpop.f32.mrf.mxu0
        %v3800 = vpop.f32.mrf.mxu0
        %v3801 = vadd.f32 0.0, %v3800
        %v3802 = vpop.f32.mrf.mxu0
        %3803 = vmatprep.mubr.bf16.mxu0 0
        %3804 = vmatmul.mubr.bf16.gmra.mxu0 %v3600
        %v3805 = vpop.f32.mrf.mxu0
        %v3806 = vadd.f32 0.0, %v3805
        %v3807 = vpop.f32.mrf.mxu0
        %v3808 = vpop.f32.mrf.mxu0
        %v3809 = vadd.f32 0.0, %v3808
        %v3810 = vpop.f32.mrf.mxu0
        %3811 = vmatprep.mubr.bf16.mxu0 0
        %3812 = vmatmul.mubr.bf16.gmra.mxu0 %v3601
        %v3813 = vpop.f32.mrf.mxu0
        %v3814 = vadd.f32 0.0, %v3813
        %v3815 = vpop.f32.mrf.mxu0
        %v3816 = vpop.f32.mrf.mxu0
        %v3817 = vadd.f32 0.0, %v3816
        %v3818 = vpop.f32.mrf.mxu0
        %3819 = vmatprep.mubr.bf16.mxu0 0
        %3820 = vmatmul.mubr.bf16.gmra.mxu0 %v3602
        %v3821 = vpop.f32.mrf.mxu0
        %v3822 = vadd.f32 0.0, %v3821
        %v3823 = vpop.f32.mrf.mxu0
        %v3824 = vpop.f32.mrf.mxu0
        %v3825 = vadd.f32 0.0, %v3824
        %v3826 = vpop.f32.mrf.mxu0
        %3827 = vdwg.mxu0
        %v3828 = vadd.f32 %v3441, %v3702
        %v3829 = vadd.f32 %v3442, %v3705
        %v3830 = vadd.f32 %v3443, %v3710
        %v3831 = vadd.f32 %v3444, %v3713
        %v3832 = vadd.f32 %v3445, %v3718
        %v3833 = vadd.f32 %v3446, %v3721
        %v3834 = vadd.f32 %v3447, %v3726
        %v3835 = vadd.f32 %v3448, %v3729
        %v3836 = vadd.f32 %v3449, %v3734
        %v3837 = vadd.f32 %v3450, %v3737
        %v3838 = vadd.f32 %v3451, %v3742
        %v3839 = vadd.f32 %v3452, %v3745
        %v3840 = vadd.f32 %v3453, %v3750
        %v3841 = vadd.f32 %v3454, %v3753
        %v3842 = vadd.f32 %v3455, %v3758
        %v3843 = vadd.f32 %v3456, %v3761
        %v3844 = vadd.f32 %v3457, %v3766
        %v3845 = vadd.f32 %v3458, %v3769
        %v3846 = vadd.f32 %v3459, %v3774
        %v3847 = vadd.f32 %v3460, %v3777
        %v3848 = vadd.f32 %v3461, %v3782
        %v3849 = vadd.f32 %v3462, %v3785
        %v3850 = vadd.f32 %v3463, %v3790
        %v3851 = vadd.f32 %v3464, %v3793
        %v3852 = vadd.f32 %v3465, %v3798
        %v3853 = vadd.f32 %v3466, %v3801
        %v3854 = vadd.f32 %v3467, %v3806
        %v3855 = vadd.f32 %v3468, %v3809
        %v3856 = vadd.f32 %v3469, %v3814
        %v3857 = vadd.f32 %v3470, %v3817
        %v3858 = vadd.f32 %v3471, %v3822
        %v3859 = vadd.f32 %v3472, %v3825
        %v3860 = vld [vmem:[%s3473] sm:$0xf]
        %v3861 = vld [vmem:[%s3473 + $0x4] sm:$0xf]
        %v3862 = vld [vmem:[%s3473 + $0x8] sm:$0x1]
        %v3863 = vld [vmem:[%s3473 + $0xc] sm:$0xf]
        %v3864 = vld [vmem:[%s3473 + $0x10] sm:$0xf]
        %v3865 = vld [vmem:[%s3473 + $0x14] sm:$0x1]
        %v3866 = vld [vmem:[%s3473 + $0x18] sm:$0xf]
        %v3867 = vld [vmem:[%s3473 + $0x1c] sm:$0xf]
        %v3868 = vld [vmem:[%s3473 + $0x20] sm:$0x1]
        %v3869 = vld [vmem:[%s3473 + $0x24] sm:$0xf]
        %v3870 = vld [vmem:[%s3473 + $0x28] sm:$0xf]
        %v3871 = vld [vmem:[%s3473 + $0x2c] sm:$0x1]
        %v3872 = vld [vmem:[%s3473 + $0x30] sm:$0xf]
        %v3873 = vld [vmem:[%s3473 + $0x34] sm:$0xf]
        %v3874 = vld [vmem:[%s3473 + $0x38] sm:$0x1]
        %v3875 = vld [vmem:[%s3473 + $0x3c] sm:$0xf]
        %v3876 = vld [vmem:[%s3473 + $0x40] sm:$0xf]
        %v3877 = vld [vmem:[%s3473 + $0x44] sm:$0x1]
        %v3878 = vld [vmem:[%s3473 + $0x48] sm:$0xf]
        %v3879 = vld [vmem:[%s3473 + $0x4c] sm:$0xf]
        %v3880 = vld [vmem:[%s3473 + $0x50] sm:$0x1]
        %v3881 = vld [vmem:[%s3473 + $0x54] sm:$0xf]
        %v3882 = vld [vmem:[%s3473 + $0x58] sm:$0xf]
        %v3883 = vld [vmem:[%s3473 + $0x5c] sm:$0x1]
        %v3884 = vld [vmem:[%s3473 + $0x60] sm:$0xf]
        %v3885 = vld [vmem:[%s3473 + $0x64] sm:$0xf]
        %v3886 = vld [vmem:[%s3473 + $0x68] sm:$0x1]
        %v3887 = vld [vmem:[%s3473 + $0x6c] sm:$0xf]
        %v3888 = vld [vmem:[%s3473 + $0x70] sm:$0xf]
        %v3889 = vld [vmem:[%s3473 + $0x74] sm:$0x1]
        %v3890 = vld [vmem:[%s3473 + $0x78] sm:$0xf]
        %v3891 = vld [vmem:[%s3473 + $0x7c] sm:$0xf]
        %v3892 = vld [vmem:[%s3473 + $0x80] sm:$0x1]
        %v3893 = vld [vmem:[%s3473 + $0x84] sm:$0xf]
        %v3894 = vld [vmem:[%s3473 + $0x88] sm:$0xf]
        %v3895 = vld [vmem:[%s3473 + $0x8c] sm:$0x1]
        %v3896 = vld [vmem:[%s3473 + $0x90] sm:$0xf]
        %v3897 = vld [vmem:[%s3473 + $0x94] sm:$0xf]
        %v3898 = vld [vmem:[%s3473 + $0x98] sm:$0x1]
        %v3899 = vld [vmem:[%s3473 + $0x9c] sm:$0xf]
        %v3900 = vld [vmem:[%s3473 + $0xa0] sm:$0xf]
        %v3901 = vld [vmem:[%s3473 + $0xa4] sm:$0x1]
        %v3902 = vld [vmem:[%s3473 + $0xa8] sm:$0xf]
        %v3903 = vld [vmem:[%s3473 + $0xac] sm:$0xf]
        %v3904 = vld [vmem:[%s3473 + $0xb0] sm:$0x1]
        %v3905 = vld [vmem:[%s3473 + $0xb4] sm:$0xf]
        %v3906 = vld [vmem:[%s3473 + $0xb8] sm:$0xf]
        %v3907 = vld [vmem:[%s3473 + $0xbc] sm:$0x1]
        %v3909 = vshrl.u32 %v3860, 16
        %v3911 = vrot.slane %v3909, 4
        %v3912 = vshll.u32 %v3860, 16
        %v3914 = vrot.slane %v3912, 5
        %v3915 = vor.u32 %v3911, %v3914
        %v3916 = vrot.slane %v3915, 4
        %v3918 = vshll.u32 %v3861, 16
        %v3920 = vrot.slane %v3918, 5
        %v3921 = vsel %vm369, %v3916, %v3920
        %v3922 = vshrl.u32 %v3861, 16
        %v3924 = vrot.slane %v3922, 4
        %v3925 = vor.u32 %v3924, %v3920
        %v3926 = vrot.slane %v3925, 4
        %v3928 = vshll.u32 %v3862, 16
        %v3930 = vrot.slane %v3928, 5
        %v3931 = vsel %vm369, %v3926, %v3930
        %v3933 = vshrl.u32 %v3863, 16
        %v3935 = vrot.slane %v3933, 4
        %v3936 = vshll.u32 %v3863, 16
        %v3938 = vrot.slane %v3936, 5
        %v3939 = vor.u32 %v3935, %v3938
        %v3940 = vrot.slane %v3939, 4
        %v3942 = vshll.u32 %v3864, 16
        %v3944 = vrot.slane %v3942, 5
        %v3945 = vsel %vm369, %v3940, %v3944
        %v3946 = vshrl.u32 %v3864, 16
        %v3948 = vrot.slane %v3946, 4
        %v3949 = vor.u32 %v3948, %v3944
        %v3950 = vrot.slane %v3949, 4
        %v3952 = vshll.u32 %v3865, 16
        %v3954 = vrot.slane %v3952, 5
        %v3955 = vsel %vm369, %v3950, %v3954
        %v3957 = vshrl.u32 %v3866, 16
        %v3959 = vrot.slane %v3957, 4
        %v3960 = vshll.u32 %v3866, 16
        %v3962 = vrot.slane %v3960, 5
        %v3963 = vor.u32 %v3959, %v3962
        %v3964 = vrot.slane %v3963, 4
        %v3966 = vshll.u32 %v3867, 16
        %v3968 = vrot.slane %v3966, 5
        %v3969 = vsel %vm369, %v3964, %v3968
        %v3970 = vshrl.u32 %v3867, 16
        %v3972 = vrot.slane %v3970, 4
        %v3973 = vor.u32 %v3972, %v3968
        %v3974 = vrot.slane %v3973, 4
        %v3976 = vshll.u32 %v3868, 16
        %v3978 = vrot.slane %v3976, 5
        %v3979 = vsel %vm369, %v3974, %v3978
        %v3981 = vshrl.u32 %v3869, 16
        %v3983 = vrot.slane %v3981, 4
        %v3984 = vshll.u32 %v3869, 16
        %v3986 = vrot.slane %v3984, 5
        %v3987 = vor.u32 %v3983, %v3986
        %v3988 = vrot.slane %v3987, 4
        %v3990 = vshll.u32 %v3870, 16
        %v3992 = vrot.slane %v3990, 5
        %v3993 = vsel %vm369, %v3988, %v3992
        %v3994 = vshrl.u32 %v3870, 16
        %v3996 = vrot.slane %v3994, 4
        %v3997 = vor.u32 %v3996, %v3992
        %v3998 = vrot.slane %v3997, 4
        %v4000 = vshll.u32 %v3871, 16
        %v4002 = vrot.slane %v4000, 5
        %v4003 = vsel %vm369, %v3998, %v4002
        %v4005 = vshrl.u32 %v3872, 16
        %v4007 = vrot.slane %v4005, 4
        %v4008 = vshll.u32 %v3872, 16
        %v4010 = vrot.slane %v4008, 5
        %v4011 = vor.u32 %v4007, %v4010
        %v4012 = vrot.slane %v4011, 4
        %v4014 = vshll.u32 %v3873, 16
        %v4016 = vrot.slane %v4014, 5
        %v4017 = vsel %vm369, %v4012, %v4016
        %v4018 = vshrl.u32 %v3873, 16
        %v4020 = vrot.slane %v4018, 4
        %v4021 = vor.u32 %v4020, %v4016
        %v4022 = vrot.slane %v4021, 4
        %v4024 = vshll.u32 %v3874, 16
        %v4026 = vrot.slane %v4024, 5
        %v4027 = vsel %vm369, %v4022, %v4026
        %v4029 = vshrl.u32 %v3875, 16
        %v4031 = vrot.slane %v4029, 4
        %v4032 = vshll.u32 %v3875, 16
        %v4034 = vrot.slane %v4032, 5
        %v4035 = vor.u32 %v4031, %v4034
        %v4036 = vrot.slane %v4035, 4
        %v4038 = vshll.u32 %v3876, 16
        %v4040 = vrot.slane %v4038, 5
        %v4041 = vsel %vm369, %v4036, %v4040
        %v4042 = vshrl.u32 %v3876, 16
        %v4044 = vrot.slane %v4042, 4
        %v4045 = vor.u32 %v4044, %v4040
        %v4046 = vrot.slane %v4045, 4
        %v4048 = vshll.u32 %v3877, 16
        %v4050 = vrot.slane %v4048, 5
        %v4051 = vsel %vm369, %v4046, %v4050
        %v4053 = vshrl.u32 %v3878, 16
        %v4055 = vrot.slane %v4053, 4
        %v4056 = vshll.u32 %v3878, 16
        %v4058 = vrot.slane %v4056, 5
        %v4059 = vor.u32 %v4055, %v4058
        %v4060 = vrot.slane %v4059, 4
        %v4062 = vshll.u32 %v3879, 16
        %v4064 = vrot.slane %v4062, 5
        %v4065 = vsel %vm369, %v4060, %v4064
        %v4066 = vshrl.u32 %v3879, 16
        %v4068 = vrot.slane %v4066, 4
        %v4069 = vor.u32 %v4068, %v4064
        %v4070 = vrot.slane %v4069, 4
        %v4072 = vshll.u32 %v3880, 16
        %v4074 = vrot.slane %v4072, 5
        %v4075 = vsel %vm369, %v4070, %v4074
        %v4077 = vshrl.u32 %v3881, 16
        %v4079 = vrot.slane %v4077, 4
        %v4080 = vshll.u32 %v3881, 16
        %v4082 = vrot.slane %v4080, 5
        %v4083 = vor.u32 %v4079, %v4082
        %v4084 = vrot.slane %v4083, 4
        %v4086 = vshll.u32 %v3882, 16
        %v4088 = vrot.slane %v4086, 5
        %v4089 = vsel %vm369, %v4084, %v4088
        %v4090 = vshrl.u32 %v3882, 16
        %v4092 = vrot.slane %v4090, 4
        %v4093 = vor.u32 %v4092, %v4088
        %v4094 = vrot.slane %v4093, 4
        %v4096 = vshll.u32 %v3883, 16
        %v4098 = vrot.slane %v4096, 5
        %v4099 = vsel %vm369, %v4094, %v4098
        %v4101 = vshrl.u32 %v3884, 16
        %v4103 = vrot.slane %v4101, 4
        %v4104 = vshll.u32 %v3884, 16
        %v4106 = vrot.slane %v4104, 5
        %v4107 = vor.u32 %v4103, %v4106
        %v4108 = vrot.slane %v4107, 4
        %v4110 = vshll.u32 %v3885, 16
        %v4112 = vrot.slane %v4110, 5
        %v4113 = vsel %vm369, %v4108, %v4112
        %v4114 = vshrl.u32 %v3885, 16
        %v4116 = vrot.slane %v4114, 4
        %v4117 = vor.u32 %v4116, %v4112
        %v4118 = vrot.slane %v4117, 4
        %v4120 = vshll.u32 %v3886, 16
        %v4122 = vrot.slane %v4120, 5
        %v4123 = vsel %vm369, %v4118, %v4122
        %v4125 = vshrl.u32 %v3887, 16
        %v4127 = vrot.slane %v4125, 4
        %v4128 = vshll.u32 %v3887, 16
        %v4130 = vrot.slane %v4128, 5
        %v4131 = vor.u32 %v4127, %v4130
        %v4132 = vrot.slane %v4131, 4
        %v4134 = vshll.u32 %v3888, 16
        %v4136 = vrot.slane %v4134, 5
        %v4137 = vsel %vm369, %v4132, %v4136
        %v4138 = vshrl.u32 %v3888, 16
        %v4140 = vrot.slane %v4138, 4
        %v4141 = vor.u32 %v4140, %v4136
        %v4142 = vrot.slane %v4141, 4
        %v4144 = vshll.u32 %v3889, 16
        %v4146 = vrot.slane %v4144, 5
        %v4147 = vsel %vm369, %v4142, %v4146
        %v4149 = vshrl.u32 %v3890, 16
        %v4151 = vrot.slane %v4149, 4
        %v4152 = vshll.u32 %v3890, 16
        %v4154 = vrot.slane %v4152, 5
        %v4155 = vor.u32 %v4151, %v4154
        %v4156 = vrot.slane %v4155, 4
        %v4158 = vshll.u32 %v3891, 16
        %v4160 = vrot.slane %v4158, 5
        %v4161 = vsel %vm369, %v4156, %v4160
        %v4162 = vshrl.u32 %v3891, 16
        %v4164 = vrot.slane %v4162, 4
        %v4165 = vor.u32 %v4164, %v4160
        %v4166 = vrot.slane %v4165, 4
        %v4168 = vshll.u32 %v3892, 16
        %v4170 = vrot.slane %v4168, 5
        %v4171 = vsel %vm369, %v4166, %v4170
        %v4173 = vshrl.u32 %v3893, 16
        %v4175 = vrot.slane %v4173, 4
        %v4176 = vshll.u32 %v3893, 16
        %v4178 = vrot.slane %v4176, 5
        %v4179 = vor.u32 %v4175, %v4178
        %v4180 = vrot.slane %v4179, 4
        %v4182 = vshll.u32 %v3894, 16
        %v4184 = vrot.slane %v4182, 5
        %v4185 = vsel %vm369, %v4180, %v4184
        %v4186 = vshrl.u32 %v3894, 16
        %v4188 = vrot.slane %v4186, 4
        %v4189 = vor.u32 %v4188, %v4184
        %v4190 = vrot.slane %v4189, 4
        %v4192 = vshll.u32 %v3895, 16
        %v4194 = vrot.slane %v4192, 5
        %v4195 = vsel %vm369, %v4190, %v4194
        %v4197 = vshrl.u32 %v3896, 16
        %v4199 = vrot.slane %v4197, 4
        %v4200 = vshll.u32 %v3896, 16
        %v4202 = vrot.slane %v4200, 5
        %v4203 = vor.u32 %v4199, %v4202
        %v4204 = vrot.slane %v4203, 4
        %v4206 = vshll.u32 %v3897, 16
        %v4208 = vrot.slane %v4206, 5
        %v4209 = vsel %vm369, %v4204, %v4208
        %v4210 = vshrl.u32 %v3897, 16
        %v4212 = vrot.slane %v4210, 4
        %v4213 = vor.u32 %v4212, %v4208
        %v4214 = vrot.slane %v4213, 4
        %v4216 = vshll.u32 %v3898, 16
        %v4218 = vrot.slane %v4216, 5
        %v4219 = vsel %vm369, %v4214, %v4218
        %v4221 = vshrl.u32 %v3899, 16
        %v4223 = vrot.slane %v4221, 4
        %v4224 = vshll.u32 %v3899, 16
        %v4226 = vrot.slane %v4224, 5
        %v4227 = vor.u32 %v4223, %v4226
        %v4228 = vrot.slane %v4227, 4
        %v4230 = vshll.u32 %v3900, 16
        %v4232 = vrot.slane %v4230, 5
        %v4233 = vsel %vm369, %v4228, %v4232
        %v4234 = vshrl.u32 %v3900, 16
        %v4236 = vrot.slane %v4234, 4
        %v4237 = vor.u32 %v4236, %v4232
        %v4238 = vrot.slane %v4237, 4
        %v4240 = vshll.u32 %v3901, 16
        %v4242 = vrot.slane %v4240, 5
        %v4243 = vsel %vm369, %v4238, %v4242
        %v4245 = vshrl.u32 %v3902, 16
        %v4247 = vrot.slane %v4245, 4
        %v4248 = vshll.u32 %v3902, 16
        %v4250 = vrot.slane %v4248, 5
        %v4251 = vor.u32 %v4247, %v4250
        %v4252 = vrot.slane %v4251, 4
        %v4254 = vshll.u32 %v3903, 16
        %v4256 = vrot.slane %v4254, 5
        %v4257 = vsel %vm369, %v4252, %v4256
        %v4258 = vshrl.u32 %v3903, 16
        %v4260 = vrot.slane %v4258, 4
        %v4261 = vor.u32 %v4260, %v4256
        %v4262 = vrot.slane %v4261, 4
        %v4264 = vshll.u32 %v3904, 16
        %v4266 = vrot.slane %v4264, 5
        %v4267 = vsel %vm369, %v4262, %v4266
        %v4269 = vshrl.u32 %v3905, 16
        %v4271 = vrot.slane %v4269, 4
        %v4272 = vshll.u32 %v3905, 16
        %v4274 = vrot.slane %v4272, 5
        %v4275 = vor.u32 %v4271, %v4274
        %v4276 = vrot.slane %v4275, 4
        %v4278 = vshll.u32 %v3906, 16
        %v4280 = vrot.slane %v4278, 5
        %v4281 = vsel %vm369, %v4276, %v4280
        %v4282 = vshrl.u32 %v3906, 16
        %v4284 = vrot.slane %v4282, 4
        %v4285 = vor.u32 %v4284, %v4280
        %v4286 = vrot.slane %v4285, 4
        %v4288 = vshll.u32 %v3907, 16
        %v4290 = vrot.slane %v4288, 5
        %v4291 = vsel %vm369, %v4286, %v4290
        %s4292 = scalar_lea.vmem %s2, 448
        %v4293 = vld [vmem:[%s4292] sm:$0xf]
        %v4294 = vld [vmem:[%s4292 + $0x4] sm:$0xf]
        %v4295 = vld [vmem:[%s4292 + $0x8] sm:$0xf]
        %v4296 = vld [vmem:[%s4292 + $0xc] sm:$0xf]
        %v4297 = vld [vmem:[%s4292 + $0x10] sm:$0xf]
        %v4298 = vld [vmem:[%s4292 + $0x14] sm:$0xf]
        %v4299 = vld [vmem:[%s4292 + $0x18] sm:$0xf]
        %v4300 = vld [vmem:[%s4292 + $0x1c] sm:$0xf]
        %v4301 = vld [vmem:[%s4292 + $0x20] sm:$0xf]
        %v4302 = vld [vmem:[%s4292 + $0x24] sm:$0xf]
        %v4303 = vld [vmem:[%s4292 + $0x28] sm:$0xf]
        %v4304 = vld [vmem:[%s4292 + $0x2c] sm:$0xf]
        %v4305 = vld [vmem:[%s4292 + $0x30] sm:$0xf]
        %v4306 = vld [vmem:[%s4292 + $0x34] sm:$0xf]
        %v4307 = vld [vmem:[%s4292 + $0x38] sm:$0xf]
        %v4308 = vld [vmem:[%s4292 + $0x3c] sm:$0xf]
        %v4309 = vunpack.c.l.b16 %v3921
        %v4310 = vunpack.c.l.b16 %v3931
        %v4311 = vunpack.c.l.b16 %v3945
        %v4312 = vunpack.c.l.b16 %v3955
        %v4313 = vunpack.c.l.b16 %v3969
        %v4314 = vunpack.c.l.b16 %v3979
        %v4315 = vunpack.c.l.b16 %v3993
        %v4316 = vunpack.c.l.b16 %v4003
        %v4317 = vunpack.c.l.b16 %v4017
        %v4318 = vunpack.c.l.b16 %v4027
        %v4319 = vunpack.c.l.b16 %v4041
        %v4320 = vunpack.c.l.b16 %v4051
        %v4321 = vunpack.c.l.b16 %v4065
        %v4322 = vunpack.c.l.b16 %v4075
        %v4323 = vunpack.c.l.b16 %v4089
        %v4324 = vunpack.c.l.b16 %v4099
        %v4325 = vunpack.c.l.b16 %v4113
        %v4326 = vunpack.c.l.b16 %v4123
        %v4327 = vunpack.c.l.b16 %v4137
        %v4328 = vunpack.c.l.b16 %v4147
        %v4329 = vunpack.c.l.b16 %v4161
        %v4330 = vunpack.c.l.b16 %v4171
        %v4331 = vunpack.c.l.b16 %v4185
        %v4332 = vunpack.c.l.b16 %v4195
        %v4333 = vunpack.c.l.b16 %v4209
        %v4334 = vunpack.c.l.b16 %v4219
        %v4335 = vunpack.c.l.b16 %v4233
        %v4336 = vunpack.c.l.b16 %v4243
        %v4337 = vunpack.c.l.b16 %v4257
        %v4338 = vunpack.c.l.b16 %v4267
        %v4339 = vunpack.c.l.b16 %v4281
        %v4340 = vunpack.c.l.b16 %v4291
        %v4341 = vpack.c.b16 %v4310, %v4309
        %v4342 = vpack.c.b16 %v4312, %v4311
        %v4343 = vpack.c.b16 %v4314, %v4313
        %v4344 = vpack.c.b16 %v4316, %v4315
        %v4345 = vpack.c.b16 %v4318, %v4317
        %v4346 = vpack.c.b16 %v4320, %v4319
        %v4347 = vpack.c.b16 %v4322, %v4321
        %v4348 = vpack.c.b16 %v4324, %v4323
        %v4349 = vpack.c.b16 %v4326, %v4325
        %v4350 = vpack.c.b16 %v4328, %v4327
        %v4351 = vpack.c.b16 %v4330, %v4329
        %v4352 = vpack.c.b16 %v4332, %v4331
        %v4353 = vpack.c.b16 %v4334, %v4333
        %v4354 = vpack.c.b16 %v4336, %v4335
        %v4355 = vpack.c.b16 %v4338, %v4337
        %v4356 = vpack.c.b16 %v4340, %v4339
        %v4389 = vunpack.c.l.b16 %v4293
        %v4390 = vunpack.c.l.b16 %v4294
        %v4391 = vunpack.c.l.b16 %v4295
        %v4392 = vunpack.c.l.b16 %v4296
        %v4393 = vunpack.c.l.b16 %v4297
        %v4394 = vunpack.c.l.b16 %v4298
        %v4395 = vunpack.c.l.b16 %v4299
        %v4396 = vunpack.c.l.b16 %v4300
        %v4397 = vunpack.c.l.b16 %v4301
        %v4398 = vunpack.c.l.b16 %v4302
        %v4399 = vunpack.c.l.b16 %v4303
        %v4400 = vunpack.c.l.b16 %v4304
        %v4401 = vunpack.c.l.b16 %v4305
        %v4402 = vunpack.c.l.b16 %v4306
        %v4403 = vunpack.c.l.b16 %v4307
        %v4404 = vunpack.c.l.b16 %v4308
        %v4405 = vpack.c.b16 %v4390, %v4389
        %v4406 = vpack.c.b16 %v4392, %v4391
        %v4407 = vpack.c.b16 %v4394, %v4393
        %v4408 = vpack.c.b16 %v4396, %v4395
        %v4409 = vpack.c.b16 %v4398, %v4397
        %v4410 = vpack.c.b16 %v4400, %v4399
        %v4411 = vpack.c.b16 %v4402, %v4401
        %v4412 = vpack.c.b16 %v4404, %v4403
        %4421 = vmatprep.subr.bf16.mxu0 0
        %4422 = vmatpush1.bf16.msra.mxu0 %v4412
        %4423 = vmatprep.subr.bf16.mxu0 0
        %4424 = vmatpush1.bf16.msra.mxu0 %v4411
        %4425 = vmatprep.subr.bf16.mxu0 0
        %4426 = vmatpush1.bf16.msra.mxu0 %v4410
        %4427 = vmatprep.subr.bf16.mxu0 0
        %4428 = vmatpush1.bf16.msra.mxu0 %v4409
        %4429 = vmatprep.subr.bf16.mxu0 0
        %4430 = vmatpush1.bf16.msra.mxu0 %v4408
        %4431 = vmatprep.subr.bf16.mxu0 0
        %4432 = vmatpush1.bf16.msra.mxu0 %v4407
        %4433 = vmatprep.subr.bf16.mxu0 0
        %4434 = vmatpush1.bf16.msra.mxu0 %v4406
        %4435 = vmatprep.subr.bf16.mxu0 0
        %4436 = vmatpush1.bf16.msra.mxu0 %v4405
        %4437 = vmatprep.subr.bf16.mxu0 0
        %4438 = vmatpush2.bf16.msra.mxu0 0
        %4439 = vmatprep.subr.bf16.mxu0 0
        %4440 = vmatpush2.bf16.msra.mxu0 0
        %4441 = vmatprep.subr.bf16.mxu0 0
        %4442 = vmatpush2.bf16.msra.mxu0 0
        %4443 = vmatprep.subr.bf16.mxu0 0
        %4444 = vmatpush2.bf16.msra.mxu0 0
        %4445 = vmatprep.subr.bf16.mxu0 0
        %4446 = vmatpush2.bf16.msra.mxu0 0
        %4447 = vmatprep.subr.bf16.mxu0 0
        %4448 = vmatpush2.bf16.msra.mxu0 0
        %4449 = vmatprep.subr.bf16.mxu0 0
        %4450 = vmatpush2.bf16.msra.mxu0 0
        %4451 = vmatprep.subr.bf16.mxu0 0
        %4452 = vmatpush2.bf16.msra.mxu0 0
        %4453 = vmatprep.mubr.bf16.mxu0 0
        %4454 = vmatmul.mubr.bf16.gmra.mxu0 %v4341
        %v4455 = vpop.f32.mrf.mxu0
        %v4456 = vadd.f32 0.0, %v4455
        %v4457 = vpop.f32.mrf.mxu0
        %v4458 = vpop.f32.mrf.mxu0
        %v4459 = vadd.f32 0.0, %v4458
        %v4460 = vpop.f32.mrf.mxu0
        %4461 = vmatprep.mubr.bf16.mxu0 0
        %4462 = vmatmul.mubr.bf16.gmra.mxu0 %v4342
        %v4463 = vpop.f32.mrf.mxu0
        %v4464 = vadd.f32 0.0, %v4463
        %v4465 = vpop.f32.mrf.mxu0
        %v4466 = vpop.f32.mrf.mxu0
        %v4467 = vadd.f32 0.0, %v4466
        %v4468 = vpop.f32.mrf.mxu0
        %4469 = vmatprep.mubr.bf16.mxu0 0
        %4470 = vmatmul.mubr.bf16.gmra.mxu0 %v4343
        %v4471 = vpop.f32.mrf.mxu0
        %v4472 = vadd.f32 0.0, %v4471
        %v4473 = vpop.f32.mrf.mxu0
        %v4474 = vpop.f32.mrf.mxu0
        %v4475 = vadd.f32 0.0, %v4474
        %v4476 = vpop.f32.mrf.mxu0
        %4477 = vmatprep.mubr.bf16.mxu0 0
        %4478 = vmatmul.mubr.bf16.gmra.mxu0 %v4344
        %v4479 = vpop.f32.mrf.mxu0
        %v4480 = vadd.f32 0.0, %v4479
        %v4481 = vpop.f32.mrf.mxu0
        %v4482 = vpop.f32.mrf.mxu0
        %v4483 = vadd.f32 0.0, %v4482
        %v4484 = vpop.f32.mrf.mxu0
        %4485 = vmatprep.mubr.bf16.mxu0 0
        %4486 = vmatmul.mubr.bf16.gmra.mxu0 %v4345
        %v4487 = vpop.f32.mrf.mxu0
        %v4488 = vadd.f32 0.0, %v4487
        %v4489 = vpop.f32.mrf.mxu0
        %v4490 = vpop.f32.mrf.mxu0
        %v4491 = vadd.f32 0.0, %v4490
        %v4492 = vpop.f32.mrf.mxu0
        %4493 = vmatprep.mubr.bf16.mxu0 0
        %4494 = vmatmul.mubr.bf16.gmra.mxu0 %v4346
        %v4495 = vpop.f32.mrf.mxu0
        %v4496 = vadd.f32 0.0, %v4495
        %v4497 = vpop.f32.mrf.mxu0
        %v4498 = vpop.f32.mrf.mxu0
        %v4499 = vadd.f32 0.0, %v4498
        %v4500 = vpop.f32.mrf.mxu0
        %4501 = vmatprep.mubr.bf16.mxu0 0
        %4502 = vmatmul.mubr.bf16.gmra.mxu0 %v4347
        %v4503 = vpop.f32.mrf.mxu0
        %v4504 = vadd.f32 0.0, %v4503
        %v4505 = vpop.f32.mrf.mxu0
        %v4506 = vpop.f32.mrf.mxu0
        %v4507 = vadd.f32 0.0, %v4506
        %v4508 = vpop.f32.mrf.mxu0
        %4509 = vmatprep.mubr.bf16.mxu0 0
        %4510 = vmatmul.mubr.bf16.gmra.mxu0 %v4348
        %v4511 = vpop.f32.mrf.mxu0
        %v4512 = vadd.f32 0.0, %v4511
        %v4513 = vpop.f32.mrf.mxu0
        %v4514 = vpop.f32.mrf.mxu0
        %v4515 = vadd.f32 0.0, %v4514
        %v4516 = vpop.f32.mrf.mxu0
        %4517 = vmatprep.mubr.bf16.mxu0 0
        %4518 = vmatmul.mubr.bf16.gmra.mxu0 %v4349
        %v4519 = vpop.f32.mrf.mxu0
        %v4520 = vadd.f32 0.0, %v4519
        %v4521 = vpop.f32.mrf.mxu0
        %v4522 = vpop.f32.mrf.mxu0
        %v4523 = vadd.f32 0.0, %v4522
        %v4524 = vpop.f32.mrf.mxu0
        %4525 = vmatprep.mubr.bf16.mxu0 0
        %4526 = vmatmul.mubr.bf16.gmra.mxu0 %v4350
        %v4527 = vpop.f32.mrf.mxu0
        %v4528 = vadd.f32 0.0, %v4527
        %v4529 = vpop.f32.mrf.mxu0
        %v4530 = vpop.f32.mrf.mxu0
        %v4531 = vadd.f32 0.0, %v4530
        %v4532 = vpop.f32.mrf.mxu0
        %4533 = vmatprep.mubr.bf16.mxu0 0
        %4534 = vmatmul.mubr.bf16.gmra.mxu0 %v4351
        %v4535 = vpop.f32.mrf.mxu0
        %v4536 = vadd.f32 0.0, %v4535
        %v4537 = vpop.f32.mrf.mxu0
        %v4538 = vpop.f32.mrf.mxu0
        %v4539 = vadd.f32 0.0, %v4538
        %v4540 = vpop.f32.mrf.mxu0
        %4541 = vmatprep.mubr.bf16.mxu0 0
        %4542 = vmatmul.mubr.bf16.gmra.mxu0 %v4352
        %v4543 = vpop.f32.mrf.mxu0
        %v4544 = vadd.f32 0.0, %v4543
        %v4545 = vpop.f32.mrf.mxu0
        %v4546 = vpop.f32.mrf.mxu0
        %v4547 = vadd.f32 0.0, %v4546
        %v4548 = vpop.f32.mrf.mxu0
        %4549 = vmatprep.mubr.bf16.mxu0 0
        %4550 = vmatmul.mubr.bf16.gmra.mxu0 %v4353
        %v4551 = vpop.f32.mrf.mxu0
        %v4552 = vadd.f32 0.0, %v4551
        %v4553 = vpop.f32.mrf.mxu0
        %v4554 = vpop.f32.mrf.mxu0
        %v4555 = vadd.f32 0.0, %v4554
        %v4556 = vpop.f32.mrf.mxu0
        %4557 = vmatprep.mubr.bf16.mxu0 0
        %4558 = vmatmul.mubr.bf16.gmra.mxu0 %v4354
        %v4559 = vpop.f32.mrf.mxu0
        %v4560 = vadd.f32 0.0, %v4559
        %v4561 = vpop.f32.mrf.mxu0
        %v4562 = vpop.f32.mrf.mxu0
        %v4563 = vadd.f32 0.0, %v4562
        %v4564 = vpop.f32.mrf.mxu0
        %4565 = vmatprep.mubr.bf16.mxu0 0
        %4566 = vmatmul.mubr.bf16.gmra.mxu0 %v4355
        %v4567 = vpop.f32.mrf.mxu0
        %v4568 = vadd.f32 0.0, %v4567
        %v4569 = vpop.f32.mrf.mxu0
        %v4570 = vpop.f32.mrf.mxu0
        %v4571 = vadd.f32 0.0, %v4570
        %v4572 = vpop.f32.mrf.mxu0
        %4573 = vmatprep.mubr.bf16.mxu0 0
        %4574 = vmatmul.mubr.bf16.gmra.mxu0 %v4356
        %v4575 = vpop.f32.mrf.mxu0
        %v4576 = vadd.f32 0.0, %v4575
        %v4577 = vpop.f32.mrf.mxu0
        %v4578 = vpop.f32.mrf.mxu0
        %v4579 = vadd.f32 0.0, %v4578
        %v4580 = vpop.f32.mrf.mxu0
        %4581 = vdwg.mxu0
        %v4582 = vadd.f32 %v3828, %v4456
        %v4583 = vadd.f32 %v3829, %v4459
        %v4584 = vadd.f32 %v3830, %v4464
        %v4585 = vadd.f32 %v3831, %v4467
        %v4586 = vadd.f32 %v3832, %v4472
        %v4587 = vadd.f32 %v3833, %v4475
        %v4588 = vadd.f32 %v3834, %v4480
        %v4589 = vadd.f32 %v3835, %v4483
        %v4590 = vadd.f32 %v3836, %v4488
        %v4591 = vadd.f32 %v3837, %v4491
        %v4592 = vadd.f32 %v3838, %v4496
        %v4593 = vadd.f32 %v3839, %v4499
        %v4594 = vadd.f32 %v3840, %v4504
        %v4595 = vadd.f32 %v3841, %v4507
        %v4596 = vadd.f32 %v3842, %v4512
        %v4597 = vadd.f32 %v3843, %v4515
        %v4598 = vadd.f32 %v3844, %v4520
        %v4599 = vadd.f32 %v3845, %v4523
        %v4600 = vadd.f32 %v3846, %v4528
        %v4601 = vadd.f32 %v3847, %v4531
        %v4602 = vadd.f32 %v3848, %v4536
        %v4603 = vadd.f32 %v3849, %v4539
        %v4604 = vadd.f32 %v3850, %v4544
        %v4605 = vadd.f32 %v3851, %v4547
        %v4606 = vadd.f32 %v3852, %v4552
        %v4607 = vadd.f32 %v3853, %v4555
        %v4608 = vadd.f32 %v3854, %v4560
        %v4609 = vadd.f32 %v3855, %v4563
        %v4610 = vadd.f32 %v3856, %v4568
        %v4611 = vadd.f32 %v3857, %v4571
        %v4612 = vadd.f32 %v3858, %v4576
        %v4613 = vadd.f32 %v3859, %v4579
        %v4614 = vld [vmem:[%s3473] sm:$0xe]
        %v4615 = vld [vmem:[%s3473 + $0xc] sm:$0xe]
        %v4616 = vld [vmem:[%s3473 + $0x18] sm:$0xe]
        %v4617 = vld [vmem:[%s3473 + $0x24] sm:$0xe]
        %v4618 = vld [vmem:[%s3473 + $0x30] sm:$0xe]
        %v4619 = vld [vmem:[%s3473 + $0x3c] sm:$0xe]
        %v4620 = vld [vmem:[%s3473 + $0x48] sm:$0xe]
        %v4621 = vld [vmem:[%s3473 + $0x54] sm:$0xe]
        %v4622 = vld [vmem:[%s3473 + $0x60] sm:$0xe]
        %v4623 = vld [vmem:[%s3473 + $0x6c] sm:$0xe]
        %v4624 = vld [vmem:[%s3473 + $0x78] sm:$0xe]
        %v4625 = vld [vmem:[%s3473 + $0x84] sm:$0xe]
        %v4626 = vld [vmem:[%s3473 + $0x90] sm:$0xe]
        %v4627 = vld [vmem:[%s3473 + $0x9c] sm:$0xe]
        %v4628 = vld [vmem:[%s3473 + $0xa8] sm:$0xe]
        %v4629 = vld [vmem:[%s3473 + $0xb4] sm:$0xe]
        %v4678 = vrot.slane %v4614, 5
        %v4679 = vrot.slane %v4678, 4
        %v4680 = vrot.slane %v3861, 5
        %v4681 = vsel %vm1399, %v4679, %v4680
        %v4682 = vrot.slane %v4680, 4
        %v4683 = vrot.slane %v3862, 5
        %v4684 = vsel %vm1399, %v4682, %v4683
        %v4685 = vrot.slane %v4615, 5
        %v4686 = vrot.slane %v4685, 4
        %v4687 = vrot.slane %v3864, 5
        %v4688 = vsel %vm1399, %v4686, %v4687
        %v4689 = vrot.slane %v4687, 4
        %v4690 = vrot.slane %v3865, 5
        %v4691 = vsel %vm1399, %v4689, %v4690
        %v4692 = vrot.slane %v4616, 5
        %v4693 = vrot.slane %v4692, 4
        %v4694 = vrot.slane %v3867, 5
        %v4695 = vsel %vm1399, %v4693, %v4694
        %v4696 = vrot.slane %v4694, 4
        %v4697 = vrot.slane %v3868, 5
        %v4698 = vsel %vm1399, %v4696, %v4697
        %v4699 = vrot.slane %v4617, 5
        %v4700 = vrot.slane %v4699, 4
        %v4701 = vrot.slane %v3870, 5
        %v4702 = vsel %vm1399, %v4700, %v4701
        %v4703 = vrot.slane %v4701, 4
        %v4704 = vrot.slane %v3871, 5
        %v4705 = vsel %vm1399, %v4703, %v4704
        %v4706 = vrot.slane %v4618, 5
        %v4707 = vrot.slane %v4706, 4
        %v4708 = vrot.slane %v3873, 5
        %v4709 = vsel %vm1399, %v4707, %v4708
        %v4710 = vrot.slane %v4708, 4
        %v4711 = vrot.slane %v3874, 5
        %v4712 = vsel %vm1399, %v4710, %v4711
        %v4713 = vrot.slane %v4619, 5
        %v4714 = vrot.slane %v4713, 4
        %v4715 = vrot.slane %v3876, 5
        %v4716 = vsel %vm1399, %v4714, %v4715
        %v4717 = vrot.slane %v4715, 4
        %v4718 = vrot.slane %v3877, 5
        %v4719 = vsel %vm1399, %v4717, %v4718
        %v4720 = vrot.slane %v4620, 5
        %v4721 = vrot.slane %v4720, 4
        %v4722 = vrot.slane %v3879, 5
        %v4723 = vsel %vm1399, %v4721, %v4722
        %v4724 = vrot.slane %v4722, 4
        %v4725 = vrot.slane %v3880, 5
        %v4726 = vsel %vm1399, %v4724, %v4725
        %v4727 = vrot.slane %v4621, 5
        %v4728 = vrot.slane %v4727, 4
        %v4729 = vrot.slane %v3882, 5
        %v4730 = vsel %vm1399, %v4728, %v4729
        %v4731 = vrot.slane %v4729, 4
        %v4732 = vrot.slane %v3883, 5
        %v4733 = vsel %vm1399, %v4731, %v4732
        %v4734 = vrot.slane %v4622, 5
        %v4735 = vrot.slane %v4734, 4
        %v4736 = vrot.slane %v3885, 5
        %v4737 = vsel %vm1399, %v4735, %v4736
        %v4738 = vrot.slane %v4736, 4
        %v4739 = vrot.slane %v3886, 5
        %v4740 = vsel %vm1399, %v4738, %v4739
        %v4741 = vrot.slane %v4623, 5
        %v4742 = vrot.slane %v4741, 4
        %v4743 = vrot.slane %v3888, 5
        %v4744 = vsel %vm1399, %v4742, %v4743
        %v4745 = vrot.slane %v4743, 4
        %v4746 = vrot.slane %v3889, 5
        %v4747 = vsel %vm1399, %v4745, %v4746
        %v4748 = vrot.slane %v4624, 5
        %v4749 = vrot.slane %v4748, 4
        %v4750 = vrot.slane %v3891, 5
        %v4751 = vsel %vm1399, %v4749, %v4750
        %v4752 = vrot.slane %v4750, 4
        %v4753 = vrot.slane %v3892, 5
        %v4754 = vsel %vm1399, %v4752, %v4753
        %v4755 = vrot.slane %v4625, 5
        %v4756 = vrot.slane %v4755, 4
        %v4757 = vrot.slane %v3894, 5
        %v4758 = vsel %vm1399, %v4756, %v4757
        %v4759 = vrot.slane %v4757, 4
        %v4760 = vrot.slane %v3895, 5
        %v4761 = vsel %vm1399, %v4759, %v4760
        %v4762 = vrot.slane %v4626, 5
        %v4763 = vrot.slane %v4762, 4
        %v4764 = vrot.slane %v3897, 5
        %v4765 = vsel %vm1399, %v4763, %v4764
        %v4766 = vrot.slane %v4764, 4
        %v4767 = vrot.slane %v3898, 5
        %v4768 = vsel %vm1399, %v4766, %v4767
        %v4769 = vrot.slane %v4627, 5
        %v4770 = vrot.slane %v4769, 4
        %v4771 = vrot.slane %v3900, 5
        %v4772 = vsel %vm1399, %v4770, %v4771
        %v4773 = vrot.slane %v4771, 4
        %v4774 = vrot.slane %v3901, 5
        %v4775 = vsel %vm1399, %v4773, %v4774
        %v4776 = vrot.slane %v4628, 5
        %v4777 = vrot.slane %v4776, 4
        %v4778 = vrot.slane %v3903, 5
        %v4779 = vsel %vm1399, %v4777, %v4778
        %v4780 = vrot.slane %v4778, 4
        %v4781 = vrot.slane %v3904, 5
        %v4782 = vsel %vm1399, %v4780, %v4781
        %v4783 = vrot.slane %v4629, 5
        %v4784 = vrot.slane %v4783, 4
        %v4785 = vrot.slane %v3906, 5
        %v4786 = vsel %vm1399, %v4784, %v4785
        %v4787 = vrot.slane %v4785, 4
        %v4788 = vrot.slane %v3907, 5
        %v4789 = vsel %vm1399, %v4787, %v4788
        %s4790 = scalar_lea.vmem %s2, 512
        %v4791 = vld [vmem:[%s4790] sm:$0xf]
        %v4792 = vld [vmem:[%s4790 + $0x4] sm:$0xf]
        %v4793 = vld [vmem:[%s4790 + $0x8] sm:$0xf]
        %v4794 = vld [vmem:[%s4790 + $0xc] sm:$0xf]
        %v4795 = vld [vmem:[%s4790 + $0x10] sm:$0xf]
        %v4796 = vld [vmem:[%s4790 + $0x14] sm:$0xf]
        %v4797 = vld [vmem:[%s4790 + $0x18] sm:$0xf]
        %v4798 = vld [vmem:[%s4790 + $0x1c] sm:$0xf]
        %v4799 = vld [vmem:[%s4790 + $0x20] sm:$0xf]
        %v4800 = vld [vmem:[%s4790 + $0x24] sm:$0xf]
        %v4801 = vld [vmem:[%s4790 + $0x28] sm:$0xf]
        %v4802 = vld [vmem:[%s4790 + $0x2c] sm:$0xf]
        %v4803 = vld [vmem:[%s4790 + $0x30] sm:$0xf]
        %v4804 = vld [vmem:[%s4790 + $0x34] sm:$0xf]
        %v4805 = vld [vmem:[%s4790 + $0x38] sm:$0xf]
        %v4806 = vld [vmem:[%s4790 + $0x3c] sm:$0xf]
        %v4807 = vunpack.c.l.b16 %v4681
        %v4808 = vunpack.c.l.b16 %v4684
        %v4809 = vunpack.c.l.b16 %v4688
        %v4810 = vunpack.c.l.b16 %v4691
        %v4811 = vunpack.c.l.b16 %v4695
        %v4812 = vunpack.c.l.b16 %v4698
        %v4813 = vunpack.c.l.b16 %v4702
        %v4814 = vunpack.c.l.b16 %v4705
        %v4815 = vunpack.c.l.b16 %v4709
        %v4816 = vunpack.c.l.b16 %v4712
        %v4817 = vunpack.c.l.b16 %v4716
        %v4818 = vunpack.c.l.b16 %v4719
        %v4819 = vunpack.c.l.b16 %v4723
        %v4820 = vunpack.c.l.b16 %v4726
        %v4821 = vunpack.c.l.b16 %v4730
        %v4822 = vunpack.c.l.b16 %v4733
        %v4823 = vunpack.c.l.b16 %v4737
        %v4824 = vunpack.c.l.b16 %v4740
        %v4825 = vunpack.c.l.b16 %v4744
        %v4826 = vunpack.c.l.b16 %v4747
        %v4827 = vunpack.c.l.b16 %v4751
        %v4828 = vunpack.c.l.b16 %v4754
        %v4829 = vunpack.c.l.b16 %v4758
        %v4830 = vunpack.c.l.b16 %v4761
        %v4831 = vunpack.c.l.b16 %v4765
        %v4832 = vunpack.c.l.b16 %v4768
        %v4833 = vunpack.c.l.b16 %v4772
        %v4834 = vunpack.c.l.b16 %v4775
        %v4835 = vunpack.c.l.b16 %v4779
        %v4836 = vunpack.c.l.b16 %v4782
        %v4837 = vunpack.c.l.b16 %v4786
        %v4838 = vunpack.c.l.b16 %v4789
        %v4839 = vpack.c.b16 %v4808, %v4807
        %v4840 = vpack.c.b16 %v4810, %v4809
        %v4841 = vpack.c.b16 %v4812, %v4811
        %v4842 = vpack.c.b16 %v4814, %v4813
        %v4843 = vpack.c.b16 %v4816, %v4815
        %v4844 = vpack.c.b16 %v4818, %v4817
        %v4845 = vpack.c.b16 %v4820, %v4819
        %v4846 = vpack.c.b16 %v4822, %v4821
        %v4847 = vpack.c.b16 %v4824, %v4823
        %v4848 = vpack.c.b16 %v4826, %v4825
        %v4849 = vpack.c.b16 %v4828, %v4827
        %v4850 = vpack.c.b16 %v4830, %v4829
        %v4851 = vpack.c.b16 %v4832, %v4831
        %v4852 = vpack.c.b16 %v4834, %v4833
        %v4853 = vpack.c.b16 %v4836, %v4835
        %v4854 = vpack.c.b16 %v4838, %v4837
        %v4887 = vunpack.c.l.b16 %v4791
        %v4888 = vunpack.c.l.b16 %v4792
        %v4889 = vunpack.c.l.b16 %v4793
        %v4890 = vunpack.c.l.b16 %v4794
        %v4891 = vunpack.c.l.b16 %v4795
        %v4892 = vunpack.c.l.b16 %v4796
        %v4893 = vunpack.c.l.b16 %v4797
        %v4894 = vunpack.c.l.b16 %v4798
        %v4895 = vunpack.c.l.b16 %v4799
        %v4896 = vunpack.c.l.b16 %v4800
        %v4897 = vunpack.c.l.b16 %v4801
        %v4898 = vunpack.c.l.b16 %v4802
        %v4899 = vunpack.c.l.b16 %v4803
        %v4900 = vunpack.c.l.b16 %v4804
        %v4901 = vunpack.c.l.b16 %v4805
        %v4902 = vunpack.c.l.b16 %v4806
        %v4903 = vpack.c.b16 %v4888, %v4887
        %v4904 = vpack.c.b16 %v4890, %v4889
        %v4905 = vpack.c.b16 %v4892, %v4891
        %v4906 = vpack.c.b16 %v4894, %v4893
        %v4907 = vpack.c.b16 %v4896, %v4895
        %v4908 = vpack.c.b16 %v4898, %v4897
        %v4909 = vpack.c.b16 %v4900, %v4899
        %v4910 = vpack.c.b16 %v4902, %v4901
        %4919 = vmatprep.subr.bf16.mxu0 0
        %4920 = vmatpush1.bf16.msra.mxu0 %v4910
        %4921 = vmatprep.subr.bf16.mxu0 0
        %4922 = vmatpush1.bf16.msra.mxu0 %v4909
        %4923 = vmatprep.subr.bf16.mxu0 0
        %4924 = vmatpush1.bf16.msra.mxu0 %v4908
        %4925 = vmatprep.subr.bf16.mxu0 0
        %4926 = vmatpush1.bf16.msra.mxu0 %v4907
        %4927 = vmatprep.subr.bf16.mxu0 0
        %4928 = vmatpush1.bf16.msra.mxu0 %v4906
        %4929 = vmatprep.subr.bf16.mxu0 0
        %4930 = vmatpush1.bf16.msra.mxu0 %v4905
        %4931 = vmatprep.subr.bf16.mxu0 0
        %4932 = vmatpush1.bf16.msra.mxu0 %v4904
        %4933 = vmatprep.subr.bf16.mxu0 0
        %4934 = vmatpush1.bf16.msra.mxu0 %v4903
        %4935 = vmatprep.subr.bf16.mxu0 0
        %4936 = vmatpush2.bf16.msra.mxu0 0
        %4937 = vmatprep.subr.bf16.mxu0 0
        %4938 = vmatpush2.bf16.msra.mxu0 0
        %4939 = vmatprep.subr.bf16.mxu0 0
        %4940 = vmatpush2.bf16.msra.mxu0 0
        %4941 = vmatprep.subr.bf16.mxu0 0
        %4942 = vmatpush2.bf16.msra.mxu0 0
        %4943 = vmatprep.subr.bf16.mxu0 0
        %4944 = vmatpush2.bf16.msra.mxu0 0
        %4945 = vmatprep.subr.bf16.mxu0 0
        %4946 = vmatpush2.bf16.msra.mxu0 0
        %4947 = vmatprep.subr.bf16.mxu0 0
        %4948 = vmatpush2.bf16.msra.mxu0 0
        %4949 = vmatprep.subr.bf16.mxu0 0
        %4950 = vmatpush2.bf16.msra.mxu0 0
        %4951 = vmatprep.mubr.bf16.mxu0 0
        %4952 = vmatmul.mubr.bf16.gmra.mxu0 %v4839
        %v4953 = vpop.f32.mrf.mxu0
        %v4954 = vadd.f32 0.0, %v4953
        %v4955 = vpop.f32.mrf.mxu0
        %v4956 = vpop.f32.mrf.mxu0
        %v4957 = vadd.f32 0.0, %v4956
        %v4958 = vpop.f32.mrf.mxu0
        %4959 = vmatprep.mubr.bf16.mxu0 0
        %4960 = vmatmul.mubr.bf16.gmra.mxu0 %v4840
        %v4961 = vpop.f32.mrf.mxu0
        %v4962 = vadd.f32 0.0, %v4961
        %v4963 = vpop.f32.mrf.mxu0
        %v4964 = vpop.f32.mrf.mxu0
        %v4965 = vadd.f32 0.0, %v4964
        %v4966 = vpop.f32.mrf.mxu0
        %4967 = vmatprep.mubr.bf16.mxu0 0
        %4968 = vmatmul.mubr.bf16.gmra.mxu0 %v4841
        %v4969 = vpop.f32.mrf.mxu0
        %v4970 = vadd.f32 0.0, %v4969
        %v4971 = vpop.f32.mrf.mxu0
        %v4972 = vpop.f32.mrf.mxu0
        %v4973 = vadd.f32 0.0, %v4972
        %v4974 = vpop.f32.mrf.mxu0
        %4975 = vmatprep.mubr.bf16.mxu0 0
        %4976 = vmatmul.mubr.bf16.gmra.mxu0 %v4842
        %v4977 = vpop.f32.mrf.mxu0
        %v4978 = vadd.f32 0.0, %v4977
        %v4979 = vpop.f32.mrf.mxu0
        %v4980 = vpop.f32.mrf.mxu0
        %v4981 = vadd.f32 0.0, %v4980
        %v4982 = vpop.f32.mrf.mxu0
        %4983 = vmatprep.mubr.bf16.mxu0 0
        %4984 = vmatmul.mubr.bf16.gmra.mxu0 %v4843
        %v4985 = vpop.f32.mrf.mxu0
        %v4986 = vadd.f32 0.0, %v4985
        %v4987 = vpop.f32.mrf.mxu0
        %v4988 = vpop.f32.mrf.mxu0
        %v4989 = vadd.f32 0.0, %v4988
        %v4990 = vpop.f32.mrf.mxu0
        %4991 = vmatprep.mubr.bf16.mxu0 0
        %4992 = vmatmul.mubr.bf16.gmra.mxu0 %v4844
        %v4993 = vpop.f32.mrf.mxu0
        %v4994 = vadd.f32 0.0, %v4993
        %v4995 = vpop.f32.mrf.mxu0
        %v4996 = vpop.f32.mrf.mxu0
        %v4997 = vadd.f32 0.0, %v4996
        %v4998 = vpop.f32.mrf.mxu0
        %4999 = vmatprep.mubr.bf16.mxu0 0
        %5000 = vmatmul.mubr.bf16.gmra.mxu0 %v4845
        %v5001 = vpop.f32.mrf.mxu0
        %v5002 = vadd.f32 0.0, %v5001
        %v5003 = vpop.f32.mrf.mxu0
        %v5004 = vpop.f32.mrf.mxu0
        %v5005 = vadd.f32 0.0, %v5004
        %v5006 = vpop.f32.mrf.mxu0
        %5007 = vmatprep.mubr.bf16.mxu0 0
        %5008 = vmatmul.mubr.bf16.gmra.mxu0 %v4846
        %v5009 = vpop.f32.mrf.mxu0
        %v5010 = vadd.f32 0.0, %v5009
        %v5011 = vpop.f32.mrf.mxu0
        %v5012 = vpop.f32.mrf.mxu0
        %v5013 = vadd.f32 0.0, %v5012
        %v5014 = vpop.f32.mrf.mxu0
        %5015 = vmatprep.mubr.bf16.mxu0 0
        %5016 = vmatmul.mubr.bf16.gmra.mxu0 %v4847
        %v5017 = vpop.f32.mrf.mxu0
        %v5018 = vadd.f32 0.0, %v5017
        %v5019 = vpop.f32.mrf.mxu0
        %v5020 = vpop.f32.mrf.mxu0
        %v5021 = vadd.f32 0.0, %v5020
        %v5022 = vpop.f32.mrf.mxu0
        %5023 = vmatprep.mubr.bf16.mxu0 0
        %5024 = vmatmul.mubr.bf16.gmra.mxu0 %v4848
        %v5025 = vpop.f32.mrf.mxu0
        %v5026 = vadd.f32 0.0, %v5025
        %v5027 = vpop.f32.mrf.mxu0
        %v5028 = vpop.f32.mrf.mxu0
        %v5029 = vadd.f32 0.0, %v5028
        %v5030 = vpop.f32.mrf.mxu0
        %5031 = vmatprep.mubr.bf16.mxu0 0
        %5032 = vmatmul.mubr.bf16.gmra.mxu0 %v4849
        %v5033 = vpop.f32.mrf.mxu0
        %v5034 = vadd.f32 0.0, %v5033
        %v5035 = vpop.f32.mrf.mxu0
        %v5036 = vpop.f32.mrf.mxu0
        %v5037 = vadd.f32 0.0, %v5036
        %v5038 = vpop.f32.mrf.mxu0
        %5039 = vmatprep.mubr.bf16.mxu0 0
        %5040 = vmatmul.mubr.bf16.gmra.mxu0 %v4850
        %v5041 = vpop.f32.mrf.mxu0
        %v5042 = vadd.f32 0.0, %v5041
        %v5043 = vpop.f32.mrf.mxu0
        %v5044 = vpop.f32.mrf.mxu0
        %v5045 = vadd.f32 0.0, %v5044
        %v5046 = vpop.f32.mrf.mxu0
        %5047 = vmatprep.mubr.bf16.mxu0 0
        %5048 = vmatmul.mubr.bf16.gmra.mxu0 %v4851
        %v5049 = vpop.f32.mrf.mxu0
        %v5050 = vadd.f32 0.0, %v5049
        %v5051 = vpop.f32.mrf.mxu0
        %v5052 = vpop.f32.mrf.mxu0
        %v5053 = vadd.f32 0.0, %v5052
        %v5054 = vpop.f32.mrf.mxu0
        %5055 = vmatprep.mubr.bf16.mxu0 0
        %5056 = vmatmul.mubr.bf16.gmra.mxu0 %v4852
        %v5057 = vpop.f32.mrf.mxu0
        %v5058 = vadd.f32 0.0, %v5057
        %v5059 = vpop.f32.mrf.mxu0
        %v5060 = vpop.f32.mrf.mxu0
        %v5061 = vadd.f32 0.0, %v5060
        %v5062 = vpop.f32.mrf.mxu0
        %5063 = vmatprep.mubr.bf16.mxu0 0
        %5064 = vmatmul.mubr.bf16.gmra.mxu0 %v4853
        %v5065 = vpop.f32.mrf.mxu0
        %v5066 = vadd.f32 0.0, %v5065
        %v5067 = vpop.f32.mrf.mxu0
        %v5068 = vpop.f32.mrf.mxu0
        %v5069 = vadd.f32 0.0, %v5068
        %v5070 = vpop.f32.mrf.mxu0
        %5071 = vmatprep.mubr.bf16.mxu0 0
        %5072 = vmatmul.mubr.bf16.gmra.mxu0 %v4854
        %v5073 = vpop.f32.mrf.mxu0
        %v5074 = vadd.f32 0.0, %v5073
        %v5075 = vpop.f32.mrf.mxu0
        %v5076 = vpop.f32.mrf.mxu0
        %v5077 = vadd.f32 0.0, %v5076
        %v5078 = vpop.f32.mrf.mxu0
        %5079 = vdwg.mxu0
        %v5080 = vadd.f32 %v4582, %v4954
        %v5081 = vadd.f32 %v4583, %v4957
        %v5082 = vadd.f32 %v4584, %v4962
        %v5083 = vadd.f32 %v4585, %v4965
        %v5084 = vadd.f32 %v4586, %v4970
        %v5085 = vadd.f32 %v4587, %v4973
        %v5086 = vadd.f32 %v4588, %v4978
        %v5087 = vadd.f32 %v4589, %v4981
        %v5088 = vadd.f32 %v4590, %v4986
        %v5089 = vadd.f32 %v4591, %v4989
        %v5090 = vadd.f32 %v4592, %v4994
        %v5091 = vadd.f32 %v4593, %v4997
        %v5092 = vadd.f32 %v4594, %v5002
        %v5093 = vadd.f32 %v4595, %v5005
        %v5094 = vadd.f32 %v4596, %v5010
        %v5095 = vadd.f32 %v4597, %v5013
        %v5096 = vadd.f32 %v4598, %v5018
        %v5097 = vadd.f32 %v4599, %v5021
        %v5098 = vadd.f32 %v4600, %v5026
        %v5099 = vadd.f32 %v4601, %v5029
        %v5100 = vadd.f32 %v4602, %v5034
        %v5101 = vadd.f32 %v4603, %v5037
        %v5102 = vadd.f32 %v4604, %v5042
        %v5103 = vadd.f32 %v4605, %v5045
        %v5104 = vadd.f32 %v4606, %v5050
        %v5105 = vadd.f32 %v4607, %v5053
        %v5106 = vadd.f32 %v4608, %v5058
        %v5107 = vadd.f32 %v4609, %v5061
        %v5108 = vadd.f32 %v4610, %v5066
        %v5109 = vadd.f32 %v4611, %v5069
        %v5110 = vadd.f32 %v4612, %v5074
        %v5111 = vadd.f32 %v4613, %v5077
        %v5112 = vld [vmem:[%s3] sm:$0x1]
        %v5114 = vlaneseq
        %v5115 = vshrl.u32 %v5114, 7
        %v5116 = vsub.s32 0, %v5115
        %v5117 = vrot.slane %v5112, %v5116
        %v5119 = vadd.f32 %v5080, %v5117
        %v5120 = vadd.f32 %v5081, %v5117
        %v5121 = vadd.f32 %v5082, %v5117
        %v5122 = vadd.f32 %v5083, %v5117
        %v5123 = vadd.f32 %v5084, %v5117
        %v5124 = vadd.f32 %v5085, %v5117
        %v5125 = vadd.f32 %v5086, %v5117
        %v5126 = vadd.f32 %v5087, %v5117
        %v5127 = vadd.f32 %v5088, %v5117
        %v5128 = vadd.f32 %v5089, %v5117
        %v5129 = vadd.f32 %v5090, %v5117
        %v5130 = vadd.f32 %v5091, %v5117
        %v5131 = vadd.f32 %v5092, %v5117
        %v5132 = vadd.f32 %v5093, %v5117
        %v5133 = vadd.f32 %v5094, %v5117
        %v5134 = vadd.f32 %v5095, %v5117
        %v5135 = vadd.f32 %v5096, %v5117
        %v5136 = vadd.f32 %v5097, %v5117
        %v5137 = vadd.f32 %v5098, %v5117
        %v5138 = vadd.f32 %v5099, %v5117
        %v5139 = vadd.f32 %v5100, %v5117
        %v5140 = vadd.f32 %v5101, %v5117
        %v5141 = vadd.f32 %v5102, %v5117
        %v5142 = vadd.f32 %v5103, %v5117
        %v5143 = vadd.f32 %v5104, %v5117
        %v5144 = vadd.f32 %v5105, %v5117
        %v5145 = vadd.f32 %v5106, %v5117
        %v5146 = vadd.f32 %v5107, %v5117
        %v5147 = vadd.f32 %v5108, %v5117
        %v5148 = vadd.f32 %v5109, %v5117
        %v5149 = vadd.f32 %v5110, %v5117
        %v5150 = vadd.f32 %v5111, %v5117
        %v5151 = vmax.f32 %v5119, 0.0
        %v5152 = vmax.f32 %v5120, 0.0
        %v5153 = vmax.f32 %v5121, 0.0
        %v5154 = vmax.f32 %v5122, 0.0
        %v5155 = vmax.f32 %v5123, 0.0
        %v5156 = vmax.f32 %v5124, 0.0
        %v5157 = vmax.f32 %v5125, 0.0
        %v5158 = vmax.f32 %v5126, 0.0
        %v5159 = vmax.f32 %v5127, 0.0
        %v5160 = vmax.f32 %v5128, 0.0
        %v5161 = vmax.f32 %v5129, 0.0
        %v5162 = vmax.f32 %v5130, 0.0
        %v5163 = vmax.f32 %v5131, 0.0
        %v5164 = vmax.f32 %v5132, 0.0
        %v5165 = vmax.f32 %v5133, 0.0
        %v5166 = vmax.f32 %v5134, 0.0
        %v5167 = vmax.f32 %v5135, 0.0
        %v5168 = vmax.f32 %v5136, 0.0
        %v5169 = vmax.f32 %v5137, 0.0
        %v5170 = vmax.f32 %v5138, 0.0
        %v5171 = vmax.f32 %v5139, 0.0
        %v5172 = vmax.f32 %v5140, 0.0
        %v5173 = vmax.f32 %v5141, 0.0
        %v5174 = vmax.f32 %v5142, 0.0
        %v5175 = vmax.f32 %v5143, 0.0
        %v5176 = vmax.f32 %v5144, 0.0
        %v5177 = vmax.f32 %v5145, 0.0
        %v5178 = vmax.f32 %v5146, 0.0
        %v5179 = vmax.f32 %v5147, 0.0
        %v5180 = vmax.f32 %v5148, 0.0
        %v5181 = vmax.f32 %v5149, 0.0
        %v5182 = vmax.f32 %v5150, 0.0
        %5183 = vst [vmem:[%s282] sm:$0xff] %v5151
        %5184 = vst [vmem:[%s282 + $0x8] sm:$0xff] %v5152
        %5185 = vst [vmem:[%s282 + $0x10] sm:$0xff] %v5153
        %5186 = vst [vmem:[%s282 + $0x18] sm:$0xff] %v5154
        %5187 = vst [vmem:[%s282 + $0x20] sm:$0xff] %v5155
        %5188 = vst [vmem:[%s282 + $0x28] sm:$0xff] %v5156
        %5189 = vst [vmem:[%s282 + $0x30] sm:$0xff] %v5157
        %5190 = vst [vmem:[%s282 + $0x38] sm:$0xff] %v5158
        %5191 = vst [vmem:[%s282 + $0x40] sm:$0xff] %v5159
        %5192 = vst [vmem:[%s282 + $0x48] sm:$0xff] %v5160
        %5193 = vst [vmem:[%s282 + $0x50] sm:$0xff] %v5161
        %5194 = vst [vmem:[%s282 + $0x58] sm:$0xff] %v5162
        %5195 = vst [vmem:[%s282 + $0x60] sm:$0xff] %v5163
        %5196 = vst [vmem:[%s282 + $0x68] sm:$0xff] %v5164
        %5197 = vst [vmem:[%s282 + $0x70] sm:$0xff] %v5165
        %5198 = vst [vmem:[%s282 + $0x78] sm:$0xff] %v5166
        %5199 = vst [vmem:[%s282 + $0x80] sm:$0xff] %v5167
        %5200 = vst [vmem:[%s282 + $0x88] sm:$0xff] %v5168
        %5201 = vst [vmem:[%s282 + $0x90] sm:$0xff] %v5169
        %5202 = vst [vmem:[%s282 + $0x98] sm:$0xff] %v5170
        %5203 = vst [vmem:[%s282 + $0xa0] sm:$0xff] %v5171
        %5204 = vst [vmem:[%s282 + $0xa8] sm:$0xff] %v5172
        %5205 = vst [vmem:[%s282 + $0xb0] sm:$0xff] %v5173
        %5206 = vst [vmem:[%s282 + $0xb8] sm:$0xff] %v5174
        %5207 = vst [vmem:[%s282 + $0xc0] sm:$0xff] %v5175
        %5208 = vst [vmem:[%s282 + $0xc8] sm:$0xff] %v5176
        %5209 = vst [vmem:[%s282 + $0xd0] sm:$0xff] %v5177
        %5210 = vst [vmem:[%s282 + $0xd8] sm:$0xff] %v5178
        %5211 = vst [vmem:[%s282 + $0xe0] sm:$0xff] %v5179
        %5212 = vst [vmem:[%s282 + $0xe8] sm:$0xff] %v5180
        %5213 = vst [vmem:[%s282 + $0xf0] sm:$0xff] %v5181
        %5214 = vst [vmem:[%s282 + $0xf8] sm:$0xff] %v5182
        %5215 = vmatprep.subr.mxu0 0.0
        %5216 = vmatpush1.msra.mxu0 %v5166
        %5217 = vmatprep.subr.mxu0 0.0
        %5218 = vmatpush1.msra.mxu0 %v5165
        %5219 = vmatprep.subr.mxu0 0.0
        %5220 = vmatpush1.msra.mxu0 %v5164
        %5221 = vmatprep.subr.mxu0 0.0
        %5222 = vmatpush1.msra.mxu0 %v5163
        %5223 = vmatprep.subr.mxu0 0.0
        %5224 = vmatpush1.msra.mxu0 %v5162
        %5225 = vmatprep.subr.mxu0 0.0
        %5226 = vmatpush1.msra.mxu0 %v5161
        %5227 = vmatprep.subr.mxu0 0.0
        %5228 = vmatpush1.msra.mxu0 %v5160
        %5229 = vmatprep.subr.mxu0 0.0
        %5230 = vmatpush1.msra.mxu0 %v5159
        %5231 = vmatprep.subr.mxu0 0.0
        %5232 = vmatpush1.msra.mxu0 %v5158
        %5233 = vmatprep.subr.mxu0 0.0
        %5234 = vmatpush1.msra.mxu0 %v5157
        %5235 = vmatprep.subr.mxu0 0.0
        %5236 = vmatpush1.msra.mxu0 %v5156
        %5237 = vmatprep.subr.mxu0 0.0
        %5238 = vmatpush1.msra.mxu0 %v5155
        %5239 = vmatprep.subr.mxu0 0.0
        %5240 = vmatpush1.msra.mxu0 %v5154
        %5241 = vmatprep.subr.mxu0 0.0
        %5242 = vmatpush1.msra.mxu0 %v5153
        %5243 = vmatprep.subr.mxu0 0.0
        %5244 = vmatpush1.msra.mxu0 %v5152
        %5245 = vmatprep.subr.mxu0 0.0
        %5246 = vmatpush1.msra.mxu0 %v5151
        %5247 = vmatprep.subr.mxu0 0.0
        %5248 = vmatpush2.msra.mxu0 %v5182
        %5249 = vmatprep.subr.mxu0 0.0
        %5250 = vmatpush2.msra.mxu0 %v5181
        %5251 = vmatprep.subr.mxu0 0.0
        %5252 = vmatpush2.msra.mxu0 %v5180
        %5253 = vmatprep.subr.mxu0 0.0
        %5254 = vmatpush2.msra.mxu0 %v5179
        %5255 = vmatprep.subr.mxu0 0.0
        %5256 = vmatpush2.msra.mxu0 %v5178
        %5257 = vmatprep.subr.mxu0 0.0
        %5258 = vmatpush2.msra.mxu0 %v5177
        %5259 = vmatprep.subr.mxu0 0.0
        %5260 = vmatpush2.msra.mxu0 %v5176
        %5261 = vmatprep.subr.mxu0 0.0
        %5262 = vmatpush2.msra.mxu0 %v5175
        %5263 = vmatprep.subr.mxu0 0.0
        %5264 = vmatpush2.msra.mxu0 %v5174
        %5265 = vmatprep.subr.mxu0 0.0
        %5266 = vmatpush2.msra.mxu0 %v5173
        %5267 = vmatprep.subr.mxu0 0.0
        %5268 = vmatpush2.msra.mxu0 %v5172
        %5269 = vmatprep.subr.mxu0 0.0
        %5270 = vmatpush2.msra.mxu0 %v5171
        %5271 = vmatprep.subr.mxu0 0.0
        %5272 = vmatpush2.msra.mxu0 %v5170
        %5273 = vmatprep.subr.mxu0 0.0
        %5274 = vmatpush2.msra.mxu0 %v5169
        %5275 = vmatprep.subr.mxu0 0.0
        %5276 = vmatpush2.msra.mxu0 %v5168
        %5277 = vmatprep.subr.mxu0 0.0
        %5278 = vmatpush2.msra.mxu0 %v5167
        %5279 = vmatprep.mubr.f32.mxu0 0.00390625
        %5280 = vmatmul.mubr.f32.gmra.mxu0 0.00390625
        %v5281 = vpop.f32.mrf.mxu0
        %v5282 = vadd.f32 0.0, %v5281
        %v5283 = vpop.f32.mrf.mxu0
        %5284 = vdwg.mxu0
        %v5285 = vpack.c.bf16 %v5282, %v5282
        %v5286 = vld [vmem:[%s4] sm:$0xf]
        %v5287 = vld [vmem:[%s4 + $0x4] sm:$0xf]
        %v5288 = vld [vmem:[%s4 + $0x8] sm:$0xf]
        %v5289 = vld [vmem:[%s4 + $0xc] sm:$0xf]
        %v5290 = vld [vmem:[%s4 + $0x10] sm:$0xf]
        %v5291 = vld [vmem:[%s4 + $0x14] sm:$0xf]
        %v5292 = vld [vmem:[%s4 + $0x18] sm:$0xf]
        %v5293 = vld [vmem:[%s4 + $0x1c] sm:$0xf]
        %v5294 = vld [vmem:[%s4 + $0x20] sm:$0xf]
        %v5295 = vld [vmem:[%s4 + $0x24] sm:$0xf]
        %v5296 = vld [vmem:[%s4 + $0x28] sm:$0xf]
        %v5297 = vld [vmem:[%s4 + $0x2c] sm:$0xf]
        %v5298 = vld [vmem:[%s4 + $0x30] sm:$0xf]
        %v5299 = vld [vmem:[%s4 + $0x34] sm:$0xf]
        %v5300 = vld [vmem:[%s4 + $0x38] sm:$0xf]
        %v5301 = vld [vmem:[%s4 + $0x3c] sm:$0xf]
        %v5302 = vld [vmem:[%s5] sm:$0x1]
        %v5319 = vunpack.c.l.b16 %v5286
        %v5320 = vunpack.c.l.b16 %v5287
        %v5321 = vunpack.c.l.b16 %v5288
        %v5322 = vunpack.c.l.b16 %v5289
        %v5323 = vunpack.c.l.b16 %v5290
        %v5324 = vunpack.c.l.b16 %v5291
        %v5325 = vunpack.c.l.b16 %v5292
        %v5326 = vunpack.c.l.b16 %v5293
        %v5327 = vunpack.c.l.b16 %v5294
        %v5328 = vunpack.c.l.b16 %v5295
        %v5329 = vunpack.c.l.b16 %v5296
        %v5330 = vunpack.c.l.b16 %v5297
        %v5331 = vunpack.c.l.b16 %v5298
        %v5332 = vunpack.c.l.b16 %v5299
        %v5333 = vunpack.c.l.b16 %v5300
        %v5334 = vunpack.c.l.b16 %v5301
        %v5335 = vpack.c.b16 %v5320, %v5319
        %v5336 = vpack.c.b16 %v5322, %v5321
        %v5337 = vpack.c.b16 %v5324, %v5323
        %v5338 = vpack.c.b16 %v5326, %v5325
        %v5339 = vpack.c.b16 %v5328, %v5327
        %v5340 = vpack.c.b16 %v5330, %v5329
        %v5341 = vpack.c.b16 %v5332, %v5331
        %v5342 = vpack.c.b16 %v5334, %v5333
        %5351 = vmatprep.subr.bf16.mxu0 0
        %5352 = vmatpush1.bf16.msra.mxu0 %v5342
        %5353 = vmatprep.subr.bf16.mxu0 0
        %5354 = vmatpush1.bf16.msra.mxu0 %v5341
        %5355 = vmatprep.subr.bf16.mxu0 0
        %5356 = vmatpush1.bf16.msra.mxu0 %v5340
        %5357 = vmatprep.subr.bf16.mxu0 0
        %5358 = vmatpush1.bf16.msra.mxu0 %v5339
        %5359 = vmatprep.subr.bf16.mxu0 0
        %5360 = vmatpush1.bf16.msra.mxu0 %v5338
        %5361 = vmatprep.subr.bf16.mxu0 0
        %5362 = vmatpush1.bf16.msra.mxu0 %v5337
        %5363 = vmatprep.subr.bf16.mxu0 0
        %5364 = vmatpush1.bf16.msra.mxu0 %v5336
        %5365 = vmatprep.subr.bf16.mxu0 0
        %5366 = vmatpush1.bf16.msra.mxu0 %v5335
        %5367 = vmatprep.subr.bf16.mxu0 0
        %5368 = vmatpush2.bf16.msra.mxu0 0
        %5369 = vmatprep.subr.bf16.mxu0 0
        %5370 = vmatpush2.bf16.msra.mxu0 0
        %5371 = vmatprep.subr.bf16.mxu0 0
        %5372 = vmatpush2.bf16.msra.mxu0 0
        %5373 = vmatprep.subr.bf16.mxu0 0
        %5374 = vmatpush2.bf16.msra.mxu0 0
        %5375 = vmatprep.subr.bf16.mxu0 0
        %5376 = vmatpush2.bf16.msra.mxu0 0
        %5377 = vmatprep.subr.bf16.mxu0 0
        %5378 = vmatpush2.bf16.msra.mxu0 0
        %5379 = vmatprep.subr.bf16.mxu0 0
        %5380 = vmatpush2.bf16.msra.mxu0 0
        %5381 = vmatprep.subr.bf16.mxu0 0
        %5382 = vmatpush2.bf16.msra.mxu0 0
        %5383 = vmatprep.mubr.bf16.mxu0 0
        %5384 = vmatmul.mubr.bf16.gmra.mxu0 %v5285
        %v5385 = vpop.f32.mrf.mxu0
        %v5386 = vadd.f32 %v5302, %v5385
        %v5387 = vpop.f32.mrf.mxu0
        %v5388 = vpop.f32.mrf.mxu0
        %v5389 = vpop.f32.mrf.mxu0
        %5390 = vdwg.mxu0
        %5391 = vst [vmem:[%s288] sm:$0x1] %v5386
        %v5392 = vlaneseq
        %v5393 = vand.u32 %v5392, 127
        %vm5394 = vcmp.lt.s32.totalorder %v5393, 10
        %v5395 = vsel %vm5394, %v5386, -1e+30
        %vm5396 = vcmask 1040384
        %v5397 = vsel %vm5396, %v5395, -inf
        %5398 = vmax.xlane.f32.xlu0 %v5397
        %v5399 = vpop.xlane.xlu0 %5398
        %v5400 = vsub.f32 %v5395, %v5399
        %v5401 = vmul.f32 %v5400, 1.442695
        %v5402 = vpow.pop %v5401
        %v5403 = vsel %vm5394, %v5402, 0.0
        %v5404 = vsel %vm5396, %v5403, 0.0
        %5405 = vadd.xlane.f32.xlu0 %v5404
        %v5406 = vpop.xlane.xlu0 %5405
        %v5407 = vlog2.pop %v5406
        %v5408 = vmul.f32 %v5407, 0.6931472
        %v5409 = vsub.f32 %v5400, %v5408
        %s5410 = sld [smem:[#allocation3 + %s32]]
        %v5411 = vstv %s5410
        %vm5412 = vcmp.eq.s32.totalorder %v5393, %v5411
        %v5413 = vsel %vm5412, 1, 0
        %v5414 = vcvt.s32.f32 %v5413
        %v5415 = vmul.f32 %v5414, %v5409
        %v5416 = vsel %vm5396, %v5415, 0.0
        %5417 = vadd.xlane.f32.xlu0 %v5416
        %v5418 = vpop.xlane.xlu0 %5417
        %v5419 = vsub.f32 0.0, %v5418
        %vm5420 = vcmask 0
        %5421 = vst.msk [vmem:[%s301] sm:$0x1] %vm5420, %v5419
        %s5422 = sand.u32 %s150, 1
        %s5423 = scalar_lea.sflag [#allocation5], %s5422
        %s5424 = sand.u32 %s150, 1
        %s5425 = smul.addr %s5424, 256
        %s5426 = scalar_lea.vmem [#allocation4], %s5425
        %s5427 = sand.u32 %s176, 1
        %s5428 = scalar_lea.sflag [#allocation7], %s5427
        %s5429 = sand.u32 %s176, 1
        %s5430 = scalar_lea.vmem [#allocation6], %s5429
        %p5431 = scmp.lt.s32.totalorder %s32, 1
        %s5432 = scalar_select %p5431, %s32, 1
        %s5433 = scalar_lea.vmem %s8, %s5432
        // Predicated region
        $region41: #{tpu_custom_call.1} parent=39 // pred_check
          %p5434 = pneg %p160
        $region42: #{tpu_custom_call.1} parent=39 // pred_check_branch
          %5436 = sbr.rel (%p5434) target = $region44
        $region43: #{tpu_custom_call.1} parent=39 // pred_region
          %s5438 = ssub.s32 4096, 4096
          %5439 = vsyncadd %s5423, %s5438
          %s5440 = smul.addr %s32, 32
          %s5441 = smul.addr %s5440, 128
          %s5442 = scalar_lea.hbm %s6, %s5441
          %s5443 = sshll.u32 %s5426, 4
          %s5444 = int_to_ptr.vmem [resolvable:$true] %s5443
          %5449 = dma.vmem_to_hbm [thread:$0]  %s5444, 4096, %s5442, %s5423, 128, 128, 8
        $region44: #{tpu_custom_call.1} parent=39 // pred_fallthru
          _
        // Predicated region
        $region45: #{tpu_custom_call.1} parent=39 // pred_check
          %p5450 = pneg %p186
        $region46: #{tpu_custom_call.1} parent=39 // pred_check_branch
          %5452 = sbr.rel (%p5450) target = $region48
        $region47: #{tpu_custom_call.1} parent=39 // pred_region
          %s5454 = ssub.s32 16, 16
          %5455 = vsyncadd %s5428, %s5454
          %s5456 = smul.addr %s32, 16
          %s5457 = scalar_lea.hbm %s7, %s5456
          %s5459 = sshll.u32 %s5430, 4
          %s5460 = int_to_ptr.vmem [resolvable:$true] %s5459
          %5462 = dma.vmem_to_hbm [thread:$0]  %s5460, 16, %s5457, %s5428
        $region48: #{tpu_custom_call.1} parent=39 // pred_fallthru
          _
        // Predicated region
        $region49: #{tpu_custom_call.1} parent=39 // pred_check
          %p5463 = pneg %p212
        $region50: #{tpu_custom_call.1} parent=39 // pred_check_branch
          %5465 = sbr.rel (%p5463) target = $region52
        $region51: #{tpu_custom_call.1} parent=39 // pred_region
          _
        $region52: #{tpu_custom_call.1} parent=39 // pred_fallthru
          _
      $region40: #{tpu_custom_call.1} parent=5 // pred_fallthru
        _
      %p5466 = scmp.le.s32.totalorder 2, %s27
      // Predicated region
      $region53: #{tpu_custom_call.1} parent=5 // pred_check
        %p5467 = pneg %p5466
      $region54: #{tpu_custom_call.1} parent=5 // pred_check_branch
        %5469 = sbr.rel (%p5467) target = $region56
      $region55: #{tpu_custom_call.1} parent=5 // pred_region
        %s5470 = ssub.s32 %s27, 2
        // Predicated region
        $region57: #{tpu_custom_call.1} parent=55 // pred_check
          %p5471 = pneg %p166
        $region58: #{tpu_custom_call.1} parent=55 // pred_check_branch
          %5473 = sbr.rel (%p5471) target = $region60
        $region59: #{tpu_custom_call.1} parent=55 // pred_region
          %s5474 = sand.u32 %s151, 1
          %s5475 = scalar_lea.sflag [#allocation5], %s5474
          %s5476 = sand.u32 %s151, 1
          %s5477 = smul.addr %s5476, 256
          %s5478 = scalar_lea.vmem [#allocation4], %s5477
          %5479 = dma.done %s5475, 4096
        $region60: #{tpu_custom_call.1} parent=55 // pred_fallthru
          _
        // Predicated region
        $region61: #{tpu_custom_call.1} parent=55 // pred_check
          %p5480 = pneg %p192
        $region62: #{tpu_custom_call.1} parent=55 // pred_check_branch
          %5482 = sbr.rel (%p5480) target = $region64
        $region63: #{tpu_custom_call.1} parent=55 // pred_region
          %s5483 = sand.u32 %s177, 1
          %s5484 = scalar_lea.sflag [#allocation7], %s5483
          %s5485 = sand.u32 %s177, 1
          %s5486 = scalar_lea.vmem [#allocation6], %s5485
          %5487 = dma.done %s5484, 16
        $region64: #{tpu_custom_call.1} parent=55 // pred_fallthru
          _
        // Predicated region
        $region65: #{tpu_custom_call.1} parent=55 // pred_check
          %p5488 = pneg %p218
        $region66: #{tpu_custom_call.1} parent=55 // pred_check_branch
          %5490 = sbr.rel (%p5488) target = $region68
        $region67: #{tpu_custom_call.1} parent=55 // pred_region
          %p5491 = scmp.lt.s32.totalorder %s33, 1
          %s5492 = scalar_select %p5491, %s33, 1
          %s5493 = scalar_lea.vmem %s8, %s5492
        $region68: #{tpu_custom_call.1} parent=55 // pred_fallthru
          _
      $region56: #{tpu_custom_call.1} parent=5 // pred_fallthru
        _
    $region6: #{tpu_custom_call.1} parent=1 // loop_footer
      %s31 = sadd.s32 1, %s27
    $region7: #{tpu_custom_call.1} parent=1 // loop_footer_branch
      %26 = sbr.rel target = $region3
    $region8: #{tpu_custom_call.1} parent=1 // loop_exit
      _
    %5494 = vsyncpa [#allocation5], 1
    %s5495 = scalar_lea.sflag [#allocation5], 1
    %5496 = vsyncpa %s5495, 1
    %5497 = vsyncpa [#allocation7], 1
    %s5498 = scalar_lea.sflag [#allocation7], 1
    %5499 = vsyncpa %s5498, 1

</llo_original>
